<compile_context>
chip_gen: v5e
topology: v5e:2x2
jax: 0.10.0
libtpu: 0.0.40
codegen_flags: <defaults>
</compile_context>

<pallas_src>
import functools

import jax
import jax.numpy as jnp
from jax.experimental import pallas as pl
from jax.experimental.pallas import tpu as pltpu

EPS = 1e-5


def _fused_conv_bn_relu_kernel(x_ref, w_ref, bgb_ref, out_ref, *,
                               kh, kw, width, ow, valid_count):
    """Fused conv (as 9 shifted matmuls) + clamp + training BN + ReLU.

    x_ref   : (Cin, XCOLS)  flat input, XCOLS >= OH*W + (kh-1)*W + (kw-1)
    w_ref   : (KH*KW, Cout, Cin)  conv weights, index = i*KW + j
    bgb_ref : (Cout, 3)   columns = [bias, gamma, beta]
    out_ref : (Cout, OH*W)  conv/BN/ReLU result; columns with (q % W) >= OW are junk
    """
    cout, r = out_ref.shape

    x = x_ref[...]            # one VMEM load of the whole flat input
    w = w_ref[...]            # (KH*KW, Cout, Cin)

    # Conv as 9 accumulated lane-shifted matmuls: out[:, q] uses input column
    # q + i*W + j  (q = oy*W + ox).  MXU is nearly idle, so the extra pushes
    # are free; no im2col slab is ever materialized.
    acc = jnp.zeros((cout, r), jnp.float32)
    for i in range(kh):
        for j in range(kw):
            d = i * width + j
            acc = acc + jnp.dot(
                w[i * kw + j], x[:, d:d + r],
                preferred_element_type=jnp.float32,
                precision=jax.lax.Precision.HIGHEST)

    bias = bgb_ref[:, 0:1]    # (Cout, 1)
    gamma = bgb_ref[:, 1:2]
    beta = bgb_ref[:, 2:3]

    # conv bias + clamp(-1, 1)
    v2 = jnp.clip(acc + bias, -1.0, 1.0)

    # Valid output columns: ox = q % W < OW  (oy < OH holds by construction).
    col = jax.lax.broadcasted_iota(jnp.int32, (cout, r), 1)
    mask = (col % width) < ow

    # Training-mode BatchNorm: per-channel batch stats over the valid columns,
    # two-pass (mean, then centered sum of squares), biased variance.
    inv_n = 1.0 / float(valid_count)
    mean = jnp.sum(jnp.where(mask, v2, 0.0), axis=1, keepdims=True) * inv_n
    diff = jnp.where(mask, v2 - mean, 0.0)
    var = jnp.sum(diff * diff, axis=1, keepdims=True) * inv_n

    scale = gamma * jax.lax.rsqrt(var + EPS)      # EUP rsqrt
    shift = beta - mean * scale

    # normalize + ReLU (junk columns get harmless values; host slices them off)
    out_ref[...] = jnp.maximum(v2 * scale + shift, 0.0)


def model_forward(x_nchw, conv_w, conv_b, bn_gamma, bn_beta):
    """x_nchw: (N, Cin, H, W) float32. Returns (N, Cout, H-KH+1, W-KW+1)."""
    n, cin, h, w = x_nchw.shape
    cout, _, kh, kw = conv_w.shape
    oh, ow = h - kh + 1, w - kw + 1
    if n != 1:
        # TODO(synk): N>1 would fold the batch into the lane axis / a grid axis.
        raise NotImplementedError("kernel specialized for N=1 (module spec input)")

    r = oh * w                        # in-kernel lane width (includes ow..w-1 junk cols)
    max_shift = (kh - 1) * w + (kw - 1)
    xcols = h * w + (r + max_shift - h * w)  # = r + max_shift (>= h*w here)

    # Flat input, padded by the max lane shift so every shifted slice is in bounds.
    x_flat = x_nchw.reshape(cin, h * w)
    x_flat = jnp.pad(x_flat, ((0, 0), (0, xcols - h * w)))

    # (KH, KW, Cout, Cin) -> (KH*KW, Cout, Cin); w3d[i*KW+j, co, ci] = conv_w[co, ci, i, j]
    w3d = jnp.transpose(conv_w, (2, 3, 0, 1)).reshape(kh * kw, cout, cin)

    # bias / gamma / beta packed into one operand -> single DMA.
    bgb = jnp.stack([conv_b, bn_gamma, bn_beta], axis=1)      # (Cout, 3)

    kernel = functools.partial(
        _fused_conv_bn_relu_kernel,
        kh=kh, kw=kw, width=w, ow=ow, valid_count=n * oh * ow)

    flops = 2 * cout * cin * r * kh * kw
    bytes_accessed = 4 * (cin * xcols + kh * kw * cout * cin + cout * 3 + cout * r)

    out2d = pl.pallas_call(
        kernel,
        out_shape=jax.ShapeDtypeStruct((cout, r), jnp.float32),
        # single grid point; every operand is one full block resident in VMEM
        in_specs=[
            pl.BlockSpec(memory_space=pltpu.MemorySpace.VMEM),  # x_flat (Cin, XCOLS)
            pl.BlockSpec(memory_space=pltpu.MemorySpace.VMEM),  # w3d    (9, Cout, Cin)
            pl.BlockSpec(memory_space=pltpu.MemorySpace.VMEM),  # bgb    (Cout, 3)
        ],
        out_specs=pl.BlockSpec(memory_space=pltpu.MemorySpace.VMEM),
        compiler_params=pltpu.CompilerParams(
            allow_input_fusion=[True, True, True]),
        cost_estimate=pl.CostEstimate(
            flops=flops, transcendentals=cout, bytes_accessed=bytes_accessed),
    )(x_flat, w3d, bgb)

    # (Cout, OH*W) -> (N=1, Cout, OH, OW): a pure reshape + tiny 8 KB slice.
    out = out2d.reshape(cout, oh, w)[:, :, :ow]
    return out[None]


if __name__ == "__main__":
    key = jax.random.PRNGKey(0)
    k_x, k_w, k_b = jax.random.split(key, 3)

    # Shapes from the PyTorch spec: x1 = torch.randn(1, 5, 20, 20), Conv2d(5, 5, 3, 1)
    N, CIN, H, W = 1, 5, 20, 20
    COUT, KH, KW = 5, 3, 3

    x = jax.random.normal(k_x, (N, CIN, H, W), dtype=jnp.float32)

    # Deterministic parameter init (kaiming-uniform-ish bounds like PyTorch).
    fan_in = CIN * KH * KW
    bound = 1.0 / (fan_in ** 0.5)
    conv_w = jax.random.uniform(k_w, (COUT, CIN, KH, KW),
                                minval=-bound, maxval=bound, dtype=jnp.float32)
    conv_b = jax.random.uniform(k_b, (COUT,),
                                minval=-bound, maxval=bound, dtype=jnp.float32)
    bn_gamma = jnp.ones((COUT,), jnp.float32)   # PyTorch BatchNorm defaults
    bn_beta = jnp.zeros((COUT,), jnp.float32)

    out = model_forward(x, conv_w, conv_b, bn_gamma, bn_beta)
    out = jax.block_until_ready(out)

    assert out.shape == (N, COUT, H - KH + 1, W - KW + 1), out.shape
    assert bool(jnp.all(out >= 0.0))  # ReLU post-condition

    # Pure-JAX reference (conv -> clamp -> training BN -> relu) for parity.
    ref_conv = jax.lax.conv_general_dilated(
        x, conv_w, window_strides=(1, 1), padding="VALID",
        dimension_numbers=("NCHW", "OIHW", "NCHW"),
        precision=jax.lax.Precision.HIGHEST) + conv_b[None, :, None, None]
    v2 = jnp.clip(ref_conv, -1.0, 1.0)
    mean = jnp.mean(v2, axis=(0, 2, 3), keepdims=True)
    var = jnp.mean((v2 - mean) ** 2, axis=(0, 2, 3), keepdims=True)
    ref = jnp.maximum(
        (v2 - mean) * jax.lax.rsqrt(var + EPS) * bn_gamma[None, :, None, None]
        + bn_beta[None, :, None, None], 0.0)
    max_err = float(jnp.max(jnp.abs(out - ref)))
    assert max_err < 1e-3, f"max abs error vs reference: {max_err}"

    print("KERNEL_OK")
</pallas_src>

<mosaic_0001>
module attributes {stable_mosaic.version = 11 : i64} {
  func.func @_fused_conv_bn_relu_kernel(%arg0: memref<5x402xf32, #tpu.memory_space<vmem>>, %arg1: memref<9x5x5xf32, #tpu.memory_space<vmem>>, %arg2: memref<5x3xf32, #tpu.memory_space<vmem>>, %arg3: memref<5x360xf32, #tpu.memory_space<vmem>>) attributes {dimension_semantics = [], scalar_prefetch = 0 : i64, scratch_operands = 0 : i64, tpu.core_type = #tpu.core_type<tc>} {
    %c0 = arith.constant 0 : index
    %c0_0 = arith.constant 0 : index
    %0 = vector.load %arg0[%c0, %c0_0] : memref<5x402xf32, #tpu.memory_space<vmem>>, vector<5x402xf32>
    %c0_1 = arith.constant 0 : index
    %c0_2 = arith.constant 0 : index
    %c0_3 = arith.constant 0 : index
    %1 = vector.load %arg1[%c0_1, %c0_2, %c0_3] : memref<9x5x5xf32, #tpu.memory_space<vmem>>, vector<9x5x5xf32>
    %cst = arith.constant 0.000000e+00 : f32
    %2 = vector.broadcast %cst : f32 to vector<5x360xf32>
    %3 = vector.extract_strided_slice %1 {offsets = [0, 0, 0], sizes = [1, 5, 5], strides = [1, 1, 1]} : vector<9x5x5xf32> to vector<1x5x5xf32>
    %4 = vector.shape_cast %3 : vector<1x5x5xf32> to vector<5x5xf32>
    %5 = vector.extract_strided_slice %0 {offsets = [0, 0], sizes = [5, 360], strides = [1, 1]} : vector<5x402xf32> to vector<5x360xf32>
    %cst_4 = arith.constant dense<0.000000e+00> : vector<5x360xf32>
    %6 = tpu.matmul %4, %5, %cst_4 {dimension_numbers = #tpu.dot_dimension_numbers<[1], [0], [0], [1], [0, 0, 1, 1], [], []>, precision = #tpu.contract_precision<fp32>} : vector<5x5xf32>, vector<5x360xf32>, vector<5x360xf32> -> vector<5x360xf32>
    %7 = arith.addf %2, %6 : vector<5x360xf32>
    %8 = vector.extract_strided_slice %1 {offsets = [1, 0, 0], sizes = [1, 5, 5], strides = [1, 1, 1]} : vector<9x5x5xf32> to vector<1x5x5xf32>
    %9 = vector.shape_cast %8 : vector<1x5x5xf32> to vector<5x5xf32>
    %10 = vector.extract_strided_slice %0 {offsets = [0, 1], sizes = [5, 360], strides = [1, 1]} : vector<5x402xf32> to vector<5x360xf32>
    %cst_5 = arith.constant dense<0.000000e+00> : vector<5x360xf32>
    %11 = tpu.matmul %9, %10, %cst_5 {dimension_numbers = #tpu.dot_dimension_numbers<[1], [0], [0], [1], [0, 0, 1, 1], [], []>, precision = #tpu.contract_precision<fp32>} : vector<5x5xf32>, vector<5x360xf32>, vector<5x360xf32> -> vector<5x360xf32>
    %12 = arith.addf %7, %11 : vector<5x360xf32>
    %13 = vector.extract_strided_slice %1 {offsets = [2, 0, 0], sizes = [1, 5, 5], strides = [1, 1, 1]} : vector<9x5x5xf32> to vector<1x5x5xf32>
    %14 = vector.shape_cast %13 : vector<1x5x5xf32> to vector<5x5xf32>
    %15 = vector.extract_strided_slice %0 {offsets = [0, 2], sizes = [5, 360], strides = [1, 1]} : vector<5x402xf32> to vector<5x360xf32>
    %cst_6 = arith.constant dense<0.000000e+00> : vector<5x360xf32>
    %16 = tpu.matmul %14, %15, %cst_6 {dimension_numbers = #tpu.dot_dimension_numbers<[1], [0], [0], [1], [0, 0, 1, 1], [], []>, precision = #tpu.contract_precision<fp32>} : vector<5x5xf32>, vector<5x360xf32>, vector<5x360xf32> -> vector<5x360xf32>
    %17 = arith.addf %12, %16 : vector<5x360xf32>
    %18 = vector.extract_strided_slice %1 {offsets = [3, 0, 0], sizes = [1, 5, 5], strides = [1, 1, 1]} : vector<9x5x5xf32> to vector<1x5x5xf32>
    %19 = vector.shape_cast %18 : vector<1x5x5xf32> to vector<5x5xf32>
    %20 = vector.extract_strided_slice %0 {offsets = [0, 20], sizes = [5, 360], strides = [1, 1]} : vector<5x402xf32> to vector<5x360xf32>
    %cst_7 = arith.constant dense<0.000000e+00> : vector<5x360xf32>
    %21 = tpu.matmul %19, %20, %cst_7 {dimension_numbers = #tpu.dot_dimension_numbers<[1], [0], [0], [1], [0, 0, 1, 1], [], []>, precision = #tpu.contract_precision<fp32>} : vector<5x5xf32>, vector<5x360xf32>, vector<5x360xf32> -> vector<5x360xf32>
    %22 = arith.addf %17, %21 : vector<5x360xf32>
    %23 = vector.extract_strided_slice %1 {offsets = [4, 0, 0], sizes = [1, 5, 5], strides = [1, 1, 1]} : vector<9x5x5xf32> to vector<1x5x5xf32>
    %24 = vector.shape_cast %23 : vector<1x5x5xf32> to vector<5x5xf32>
    %25 = vector.extract_strided_slice %0 {offsets = [0, 21], sizes = [5, 360], strides = [1, 1]} : vector<5x402xf32> to vector<5x360xf32>
    %cst_8 = arith.constant dense<0.000000e+00> : vector<5x360xf32>
    %26 = tpu.matmul %24, %25, %cst_8 {dimension_numbers = #tpu.dot_dimension_numbers<[1], [0], [0], [1], [0, 0, 1, 1], [], []>, precision = #tpu.contract_precision<fp32>} : vector<5x5xf32>, vector<5x360xf32>, vector<5x360xf32> -> vector<5x360xf32>
    %27 = arith.addf %22, %26 : vector<5x360xf32>
    %28 = vector.extract_strided_slice %1 {offsets = [5, 0, 0], sizes = [1, 5, 5], strides = [1, 1, 1]} : vector<9x5x5xf32> to vector<1x5x5xf32>
    %29 = vector.shape_cast %28 : vector<1x5x5xf32> to vector<5x5xf32>
    %30 = vector.extract_strided_slice %0 {offsets = [0, 22], sizes = [5, 360], strides = [1, 1]} : vector<5x402xf32> to vector<5x360xf32>
    %cst_9 = arith.constant dense<0.000000e+00> : vector<5x360xf32>
    %31 = tpu.matmul %29, %30, %cst_9 {dimension_numbers = #tpu.dot_dimension_numbers<[1], [0], [0], [1], [0, 0, 1, 1], [], []>, precision = #tpu.contract_precision<fp32>} : vector<5x5xf32>, vector<5x360xf32>, vector<5x360xf32> -> vector<5x360xf32>
    %32 = arith.addf %27, %31 : vector<5x360xf32>
    %33 = vector.extract_strided_slice %1 {offsets = [6, 0, 0], sizes = [1, 5, 5], strides = [1, 1, 1]} : vector<9x5x5xf32> to vector<1x5x5xf32>
    %34 = vector.shape_cast %33 : vector<1x5x5xf32> to vector<5x5xf32>
    %35 = vector.extract_strided_slice %0 {offsets = [0, 40], sizes = [5, 360], strides = [1, 1]} : vector<5x402xf32> to vector<5x360xf32>
    %cst_10 = arith.constant dense<0.000000e+00> : vector<5x360xf32>
    %36 = tpu.matmul %34, %35, %cst_10 {dimension_numbers = #tpu.dot_dimension_numbers<[1], [0], [0], [1], [0, 0, 1, 1], [], []>, precision = #tpu.contract_precision<fp32>} : vector<5x5xf32>, vector<5x360xf32>, vector<5x360xf32> -> vector<5x360xf32>
    %37 = arith.addf %32, %36 : vector<5x360xf32>
    %38 = vector.extract_strided_slice %1 {offsets = [7, 0, 0], sizes = [1, 5, 5], strides = [1, 1, 1]} : vector<9x5x5xf32> to vector<1x5x5xf32>
    %39 = vector.shape_cast %38 : vector<1x5x5xf32> to vector<5x5xf32>
    %40 = vector.extract_strided_slice %0 {offsets = [0, 41], sizes = [5, 360], strides = [1, 1]} : vector<5x402xf32> to vector<5x360xf32>
    %cst_11 = arith.constant dense<0.000000e+00> : vector<5x360xf32>
    %41 = tpu.matmul %39, %40, %cst_11 {dimension_numbers = #tpu.dot_dimension_numbers<[1], [0], [0], [1], [0, 0, 1, 1], [], []>, precision = #tpu.contract_precision<fp32>} : vector<5x5xf32>, vector<5x360xf32>, vector<5x360xf32> -> vector<5x360xf32>
    %42 = arith.addf %37, %41 : vector<5x360xf32>
    %43 = vector.extract_strided_slice %1 {offsets = [8, 0, 0], sizes = [1, 5, 5], strides = [1, 1, 1]} : vector<9x5x5xf32> to vector<1x5x5xf32>
    %44 = vector.shape_cast %43 : vector<1x5x5xf32> to vector<5x5xf32>
    %45 = vector.extract_strided_slice %0 {offsets = [0, 42], sizes = [5, 360], strides = [1, 1]} : vector<5x402xf32> to vector<5x360xf32>
    %cst_12 = arith.constant dense<0.000000e+00> : vector<5x360xf32>
    %46 = tpu.matmul %44, %45, %cst_12 {dimension_numbers = #tpu.dot_dimension_numbers<[1], [0], [0], [1], [0, 0, 1, 1], [], []>, precision = #tpu.contract_precision<fp32>} : vector<5x5xf32>, vector<5x360xf32>, vector<5x360xf32> -> vector<5x360xf32>
    %47 = arith.addf %42, %46 : vector<5x360xf32>
    %c0_13 = arith.constant 0 : index
    %c0_14 = arith.constant 0 : index
    %48 = vector.load %arg2[%c0_13, %c0_14] : memref<5x3xf32, #tpu.memory_space<vmem>>, vector<5x1xf32>
    %c0_15 = arith.constant 0 : index
    %c1 = arith.constant 1 : index
    %49 = vector.load %arg2[%c0_15, %c1] : memref<5x3xf32, #tpu.memory_space<vmem>>, vector<5x1xf32>
    %c0_16 = arith.constant 0 : index
    %c2 = arith.constant 2 : index
    %50 = vector.load %arg2[%c0_16, %c2] : memref<5x3xf32, #tpu.memory_space<vmem>>, vector<5x1xf32>
    %51 = vector.broadcast %48 : vector<5x1xf32> to vector<5x360xf32>
    %52 = arith.addf %47, %51 : vector<5x360xf32>
    %cst_17 = arith.constant -1.000000e+00 : f32
    %cst_18 = arith.constant 1.000000e+00 : f32
    %53 = vector.broadcast %cst_17 : f32 to vector<5x360xf32>
    %54 = arith.maximumf %53, %52 : vector<5x360xf32>
    %55 = vector.broadcast %cst_18 : f32 to vector<5x360xf32>
    %56 = arith.minimumf %55, %54 : vector<5x360xf32>
    %57 = tpu.iota {dimensions = array<i32: 1>} : vector<5x360xi32>
    %c20_i32 = arith.constant 20 : i32
    %c0_i32 = arith.constant 0 : i32
    %58 = arith.cmpi eq, %c20_i32, %c0_i32 : i32
    %c1_i32 = arith.constant 1 : i32
    %59 = arith.select %58, %c1_i32, %c20_i32 : i32
    %60 = vector.broadcast %59 : i32 to vector<5x360xi32>
    %61 = arith.remsi %57, %60 : vector<5x360xi32>
    %c0_i32_19 = arith.constant 0 : i32
    %62 = vector.broadcast %c0_i32_19 : i32 to vector<5x360xi32>
    %63 = arith.cmpi ne, %61, %62 : vector<5x360xi32>
    %c0_i32_20 = arith.constant 0 : i32
    %64 = vector.broadcast %c0_i32_20 : i32 to vector<5x360xi32>
    %65 = arith.cmpi slt, %61, %64 : vector<5x360xi32>
    %c0_i32_21 = arith.constant 0 : i32
    %66 = arith.cmpi slt, %59, %c0_i32_21 : i32
    %67 = vector.broadcast %66 : i1 to vector<5x360xi1>
    %68 = vector.broadcast %67 : vector<5x360xi1> to vector<5x360xi1>
    %69 = arith.xori %65, %68 : vector<5x360xi1>
    %70 = arith.andi %69, %63 : vector<5x360xi1>
    %71 = vector.broadcast %59 : i32 to vector<5x360xi32>
    %72 = arith.addi %61, %71 : vector<5x360xi32>
    %73 = arith.select %70, %72, %61 : vector<5x360xi1>, vector<5x360xi32>
    %c18_i32 = arith.constant 18 : i32
    %74 = vector.broadcast %c18_i32 : i32 to vector<5x360xi32>
    %75 = arith.cmpi slt, %73, %74 : vector<5x360xi32>
    %cst_22 = arith.constant 0.000000e+00 : f32
    %76 = vector.broadcast %cst_22 : f32 to vector<5x360xf32>
    %77 = arith.select %75, %56, %76 : vector<5x360xi1>, vector<5x360xf32>
    %cst_23 = arith.constant dense<0.000000e+00> : vector<5xf32>
    %78 = vector.multi_reduction <add>, %77, %cst_23 [1] : vector<5x360xf32> to vector<5xf32>
    %79 = vector.shape_cast %78 : vector<5xf32> to vector<5x1xf32>
    %cst_24 = arith.constant 0.00308641978 : f32
    %80 = vector.broadcast %cst_24 : f32 to vector<5x1xf32>
    %81 = arith.mulf %79, %80 : vector<5x1xf32>
    %82 = vector.broadcast %81 : vector<5x1xf32> to vector<5x360xf32>
    %83 = arith.subf %56, %82 : vector<5x360xf32>
    %cst_25 = arith.constant 0.000000e+00 : f32
    %84 = vector.broadcast %cst_25 : f32 to vector<5x360xf32>
    %85 = arith.select %75, %83, %84 : vector<5x360xi1>, vector<5x360xf32>
    %86 = arith.mulf %85, %85 : vector<5x360xf32>
    %cst_26 = arith.constant dense<0.000000e+00> : vector<5xf32>
    %87 = vector.multi_reduction <add>, %86, %cst_26 [1] : vector<5x360xf32> to vector<5xf32>
    %88 = vector.shape_cast %87 : vector<5xf32> to vector<5x1xf32>
    %cst_27 = arith.constant 0.00308641978 : f32
    %89 = vector.broadcast %cst_27 : f32 to vector<5x1xf32>
    %90 = arith.mulf %88, %89 : vector<5x1xf32>
    %cst_28 = arith.constant 9.99999974E-6 : f32
    %91 = vector.broadcast %cst_28 : f32 to vector<5x1xf32>
    %92 = arith.addf %90, %91 : vector<5x1xf32>
    %93 = math.rsqrt %92 : vector<5x1xf32>
    %94 = arith.mulf %49, %93 : vector<5x1xf32>
    %95 = arith.mulf %81, %94 : vector<5x1xf32>
    %96 = arith.subf %50, %95 : vector<5x1xf32>
    %97 = vector.broadcast %94 : vector<5x1xf32> to vector<5x360xf32>
    %98 = arith.mulf %56, %97 : vector<5x360xf32>
    %99 = vector.broadcast %96 : vector<5x1xf32> to vector<5x360xf32>
    %100 = arith.addf %98, %99 : vector<5x360xf32>
    %cst_29 = arith.constant 0.000000e+00 : f32
    %101 = vector.broadcast %cst_29 : f32 to vector<5x360xf32>
    %102 = arith.maximumf %100, %101 : vector<5x360xf32>
    %c0_30 = arith.constant 0 : index
    %c0_31 = arith.constant 0 : index
    %103 = vector.load %arg3[%c0_30, %c0_31] : memref<5x360xf32, #tpu.memory_space<vmem>>, vector<5x360xf32>
    tpu.vector_store %arg3[%c0_30, %c0_31], %102 {strides = array<i32>} : memref<5x360xf32, #tpu.memory_space<vmem>>, vector<5x360xf32>,
    return
  }
}

</mosaic_0001>

<llo_original>
// kernel: tpu_custom_call.1
$region0: #{tpu_custom_call.1}
  #allocation0 [shape = 'u32[]', space=smem, size = 0x4, offset = 0x4, fixed_abs, tag = 'smem constant byte address 0x4 - core index']
  #allocation1 [shape = 'u32[72,128]{1,0:T(1,128)}', space=vmem, size = 0x9000, scoped, tag = 'internal scratch']
  %s0 = inlined_call_operand.vmem [shape: f32[5,402], index: 0, kind: input, shape index: {}]
  %s1 = inlined_call_operand.vmem [shape: f32[9,5,5], index: 1, kind: input, shape index: {}]
  %s2 = inlined_call_operand.vmem [shape: f32[5,3], index: 2, kind: input, shape index: {}]
  %s3 = inlined_call_operand.hbm [shape: f32[5,360], index: 3, kind: output, shape index: {}]
  %s4 = sld [smem:[#allocation0]]
  $region22: #{tpu_custom_call.1} parent=0
    _
  %s6 = ssub.s32 1, %s4
  %s7 = scalar_select 0, %s6, %s4
  $region1: #{tpu_custom_call.1} parent=0
    #allocation2 [shape = 'u8[12288]{0}', space=vmem, size = 0x3000, scoped, tag = 'output window, operand 0, single buffered']
    #allocation3 [shape = 's32[1]{0}', space=sflag, size = 0x4, scoped, tag = 'scoped memory for tpu_custom_call.1']
    %8 = vsyncpa [#allocation3], 0
    // Predicated region
    $region2: #{tpu_custom_call.1} parent=1 // pred_check
      _
    $region3: #{tpu_custom_call.1} parent=1 // pred_check_branch
      %10 = sbr.rel (0) target = $region5
    $region4: #{tpu_custom_call.1} parent=1 // pred_region
      _
    $region5: #{tpu_custom_call.1} parent=1 // pred_fallthru
      _
    // Predicated region
    $region6: #{tpu_custom_call.1} parent=1 // pred_check
      _
    $region7: #{tpu_custom_call.1} parent=1 // pred_check_branch
      %12 = sbr.rel (0) target = $region9
    $region8: #{tpu_custom_call.1} parent=1 // pred_region
      _
    $region9: #{tpu_custom_call.1} parent=1 // pred_fallthru
      _
    // Predicated region
    $region10: #{tpu_custom_call.1} parent=1 // pred_check
      _
    $region11: #{tpu_custom_call.1} parent=1 // pred_check_branch
      %14 = sbr.rel (0) target = $region13
    $region12: #{tpu_custom_call.1} parent=1 // pred_region
      _
    $region13: #{tpu_custom_call.1} parent=1 // pred_fallthru
      _
    %v15 = vld [vmem:[%s0] sm:$0x1f]
    %v16 = vld [vmem:[%s0 + $0x8] sm:$0x1f]
    %v17 = vld [vmem:[%s0 + $0x10] sm:$0x1f]
    %v18 = vld [vmem:[%s0 + $0x18] sm:$0x1f]
    %v19 = vld [vmem:[%s1] sm:$0x1f]
    %v20 = vld [vmem:[%s1 + $0x8] sm:$0x1f]
    %v21 = vld [vmem:[%s1 + $0x10] sm:$0x1f]
    %v22 = vld [vmem:[%s1 + $0x18] sm:$0x1f]
    %v23 = vld [vmem:[%s1 + $0x20] sm:$0x1f]
    %v24 = vld [vmem:[%s1 + $0x28] sm:$0x1f]
    %v25 = vld [vmem:[%s1 + $0x30] sm:$0x1f]
    %v26 = vld [vmem:[%s1 + $0x38] sm:$0x1f]
    %v27 = vld [vmem:[%s1 + $0x40] sm:$0x1f]
    %31 = vrot.lane.b32.xlu0 %v15, 127
    %v32 = vpop.permute.xlu0 %31
    %33 = vrot.lane.b32.xlu0 %v16, 127
    %v34 = vpop.permute.xlu0 %33
    %35 = vrot.lane.b32.xlu0 %v17, 127
    %v36 = vpop.permute.xlu0 %35
    %vm37 = vcmask 1039360
    %v38 = vsel %vm37, %v32, %v34
    %v39 = vsel %vm37, %v34, %v36
    %vm40 = vcmask 39936
    %v42 = vsel %vm40, %v20, 0
    %vm44 = vcmask 1044480
    %v45 = vsel %vm44, %v38, 0
    %v47 = vsel %vm44, %v39, 0
    %v49 = vsel %vm44, %v36, 0
    %51 = vmatpush.msra.mxu0 0.0
    %52 = vmatpush.msra.mxu0 0.0
    %53 = vmatpush.msra.mxu0 0.0
    %54 = vmatpush.msra.mxu0 0.0
    %55 = vmatpush.msra.mxu0 0.0
    %56 = vmatpush.msra.mxu0 0.0
    %57 = vmatpush.msra.mxu0 0.0
    %58 = vmatpush.msra.mxu0 0.0
    %59 = vmatpush.msra.mxu0 0.0
    %60 = vmatpush.msra.mxu0 0.0
    %61 = vmatpush.msra.mxu0 0.0
    %62 = vmatpush.msra.mxu0 0.0
    %63 = vmatpush.msra.mxu0 0.0
    %64 = vmatpush.msra.mxu0 0.0
    %65 = vmatpush.msra.mxu0 0.0
    %v66 = vand.u32 %v45, 4294901760
    %67 = vmatpush.msra.mxu0 %v66
    %v68 = vand.u32 %v42, 4294901760
    %v69 = vsub.f32 %v42, %v68
    %v70 = vand.u32 %v69, 4294901760
    %v71 = vsub.f32 %v69, %v70
    %v72 = vand.u32 %v71, 4294901760
    %73 = vmatmul.f32.gmra.mxu0 %v72
    %v74 = vpop.f32.mrf.mxu0
    %v75 = vadd.f32 0.0, %v74
    %76 = vdwg.mxu0
    %77 = vmatpush.msra.mxu0 0.0
    %78 = vmatpush.msra.mxu0 0.0
    %79 = vmatpush.msra.mxu0 0.0
    %80 = vmatpush.msra.mxu0 0.0
    %81 = vmatpush.msra.mxu0 0.0
    %82 = vmatpush.msra.mxu0 0.0
    %83 = vmatpush.msra.mxu0 0.0
    %84 = vmatpush.msra.mxu0 0.0
    %85 = vmatpush.msra.mxu0 0.0
    %86 = vmatpush.msra.mxu0 0.0
    %87 = vmatpush.msra.mxu0 0.0
    %88 = vmatpush.msra.mxu0 0.0
    %89 = vmatpush.msra.mxu0 0.0
    %90 = vmatpush.msra.mxu0 0.0
    %91 = vmatpush.msra.mxu0 0.0
    %v92 = vand.u32 %v45, 4294901760
    %v93 = vsub.f32 %v45, %v92
    %v94 = vand.u32 %v93, 4294901760
    %v95 = vsub.f32 %v93, %v94
    %v96 = vand.u32 %v95, 4294901760
    %97 = vmatpush.msra.mxu0 %v96
    %v98 = vand.u32 %v42, 4294901760
    %99 = vmatmul.f32.gmra.mxu0 %v98
    %v100 = vpop.f32.mrf.mxu0
    %v101 = vadd.f32 %v75, %v100
    %102 = vdwg.mxu0
    %103 = vmatpush.msra.mxu0 0.0
    %104 = vmatpush.msra.mxu0 0.0
    %105 = vmatpush.msra.mxu0 0.0
    %106 = vmatpush.msra.mxu0 0.0
    %107 = vmatpush.msra.mxu0 0.0
    %108 = vmatpush.msra.mxu0 0.0
    %109 = vmatpush.msra.mxu0 0.0
    %110 = vmatpush.msra.mxu0 0.0
    %111 = vmatpush.msra.mxu0 0.0
    %112 = vmatpush.msra.mxu0 0.0
    %113 = vmatpush.msra.mxu0 0.0
    %114 = vmatpush.msra.mxu0 0.0
    %115 = vmatpush.msra.mxu0 0.0
    %116 = vmatpush.msra.mxu0 0.0
    %117 = vmatpush.msra.mxu0 0.0
    %v118 = vand.u32 %v45, 4294901760
    %v119 = vsub.f32 %v45, %v118
    %120 = vmatpush.msra.mxu0 %v119
    %v121 = vand.u32 %v42, 4294901760
    %v122 = vsub.f32 %v42, %v121
    %123 = vmatmul.f32.gmra.mxu0 %v122
    %v124 = vpop.f32.mrf.mxu0
    %v125 = vadd.f32 %v101, %v124
    %126 = vdwg.mxu0
    %127 = vmatpush.msra.mxu0 0.0
    %128 = vmatpush.msra.mxu0 0.0
    %129 = vmatpush.msra.mxu0 0.0
    %130 = vmatpush.msra.mxu0 0.0
    %131 = vmatpush.msra.mxu0 0.0
    %132 = vmatpush.msra.mxu0 0.0
    %133 = vmatpush.msra.mxu0 0.0
    %134 = vmatpush.msra.mxu0 0.0
    %135 = vmatpush.msra.mxu0 0.0
    %136 = vmatpush.msra.mxu0 0.0
    %137 = vmatpush.msra.mxu0 0.0
    %138 = vmatpush.msra.mxu0 0.0
    %139 = vmatpush.msra.mxu0 0.0
    %140 = vmatpush.msra.mxu0 0.0
    %141 = vmatpush.msra.mxu0 0.0
    %v142 = vand.u32 %v45, 4294901760
    %143 = vmatpush.msra.mxu0 %v142
    %v144 = vand.u32 %v42, 4294901760
    %v145 = vsub.f32 %v42, %v144
    %v146 = vand.u32 %v145, 4294901760
    %147 = vmatmul.f32.gmra.mxu0 %v146
    %v148 = vpop.f32.mrf.mxu0
    %v149 = vadd.f32 %v125, %v148
    %150 = vdwg.mxu0
    %151 = vmatpush.msra.mxu0 0.0
    %152 = vmatpush.msra.mxu0 0.0
    %153 = vmatpush.msra.mxu0 0.0
    %154 = vmatpush.msra.mxu0 0.0
    %155 = vmatpush.msra.mxu0 0.0
    %156 = vmatpush.msra.mxu0 0.0
    %157 = vmatpush.msra.mxu0 0.0
    %158 = vmatpush.msra.mxu0 0.0
    %159 = vmatpush.msra.mxu0 0.0
    %160 = vmatpush.msra.mxu0 0.0
    %161 = vmatpush.msra.mxu0 0.0
    %162 = vmatpush.msra.mxu0 0.0
    %163 = vmatpush.msra.mxu0 0.0
    %164 = vmatpush.msra.mxu0 0.0
    %165 = vmatpush.msra.mxu0 0.0
    %v166 = vand.u32 %v45, 4294901760
    %v167 = vsub.f32 %v45, %v166
    %v168 = vand.u32 %v167, 4294901760
    %169 = vmatpush.msra.mxu0 %v168
    %v170 = vand.u32 %v42, 4294901760
    %171 = vmatmul.f32.gmra.mxu0 %v170
    %v172 = vpop.f32.mrf.mxu0
    %v173 = vadd.f32 %v149, %v172
    %174 = vdwg.mxu0
    %175 = vmatpush.msra.mxu0 0.0
    %176 = vmatpush.msra.mxu0 0.0
    %177 = vmatpush.msra.mxu0 0.0
    %178 = vmatpush.msra.mxu0 0.0
    %179 = vmatpush.msra.mxu0 0.0
    %180 = vmatpush.msra.mxu0 0.0
    %181 = vmatpush.msra.mxu0 0.0
    %182 = vmatpush.msra.mxu0 0.0
    %183 = vmatpush.msra.mxu0 0.0
    %184 = vmatpush.msra.mxu0 0.0
    %185 = vmatpush.msra.mxu0 0.0
    %186 = vmatpush.msra.mxu0 0.0
    %187 = vmatpush.msra.mxu0 0.0
    %188 = vmatpush.msra.mxu0 0.0
    %189 = vmatpush.msra.mxu0 0.0
    %v190 = vand.u32 %v45, 4294901760
    %191 = vmatpush.msra.mxu0 %v190
    %v192 = vand.u32 %v42, 4294901760
    %193 = vmatmul.f32.gmra.mxu0 %v192
    %v194 = vpop.f32.mrf.mxu0
    %v195 = vadd.f32 %v173, %v194
    %196 = vdwg.mxu0
    %197 = vmatpush.msra.mxu0 0.0
    %198 = vmatpush.msra.mxu0 0.0
    %199 = vmatpush.msra.mxu0 0.0
    %200 = vmatpush.msra.mxu0 0.0
    %201 = vmatpush.msra.mxu0 0.0
    %202 = vmatpush.msra.mxu0 0.0
    %203 = vmatpush.msra.mxu0 0.0
    %204 = vmatpush.msra.mxu0 0.0
    %205 = vmatpush.msra.mxu0 0.0
    %206 = vmatpush.msra.mxu0 0.0
    %207 = vmatpush.msra.mxu0 0.0
    %208 = vmatpush.msra.mxu0 0.0
    %209 = vmatpush.msra.mxu0 0.0
    %210 = vmatpush.msra.mxu0 0.0
    %211 = vmatpush.msra.mxu0 0.0
    %v212 = vand.u32 %v47, 4294901760
    %213 = vmatpush.msra.mxu0 %v212
    %v214 = vand.u32 %v42, 4294901760
    %v215 = vsub.f32 %v42, %v214
    %v216 = vand.u32 %v215, 4294901760
    %v217 = vsub.f32 %v215, %v216
    %v218 = vand.u32 %v217, 4294901760
    %219 = vmatmul.f32.gmra.mxu0 %v218
    %v220 = vpop.f32.mrf.mxu0
    %v221 = vadd.f32 0.0, %v220
    %222 = vdwg.mxu0
    %223 = vmatpush.msra.mxu0 0.0
    %224 = vmatpush.msra.mxu0 0.0
    %225 = vmatpush.msra.mxu0 0.0
    %226 = vmatpush.msra.mxu0 0.0
    %227 = vmatpush.msra.mxu0 0.0
    %228 = vmatpush.msra.mxu0 0.0
    %229 = vmatpush.msra.mxu0 0.0
    %230 = vmatpush.msra.mxu0 0.0
    %231 = vmatpush.msra.mxu0 0.0
    %232 = vmatpush.msra.mxu0 0.0
    %233 = vmatpush.msra.mxu0 0.0
    %234 = vmatpush.msra.mxu0 0.0
    %235 = vmatpush.msra.mxu0 0.0
    %236 = vmatpush.msra.mxu0 0.0
    %237 = vmatpush.msra.mxu0 0.0
    %v238 = vand.u32 %v47, 4294901760
    %v239 = vsub.f32 %v47, %v238
    %v240 = vand.u32 %v239, 4294901760
    %v241 = vsub.f32 %v239, %v240
    %v242 = vand.u32 %v241, 4294901760
    %243 = vmatpush.msra.mxu0 %v242
    %v244 = vand.u32 %v42, 4294901760
    %245 = vmatmul.f32.gmra.mxu0 %v244
    %v246 = vpop.f32.mrf.mxu0
    %v247 = vadd.f32 %v221, %v246
    %248 = vdwg.mxu0
    %249 = vmatpush.msra.mxu0 0.0
    %250 = vmatpush.msra.mxu0 0.0
    %251 = vmatpush.msra.mxu0 0.0
    %252 = vmatpush.msra.mxu0 0.0
    %253 = vmatpush.msra.mxu0 0.0
    %254 = vmatpush.msra.mxu0 0.0
    %255 = vmatpush.msra.mxu0 0.0
    %256 = vmatpush.msra.mxu0 0.0
    %257 = vmatpush.msra.mxu0 0.0
    %258 = vmatpush.msra.mxu0 0.0
    %259 = vmatpush.msra.mxu0 0.0
    %260 = vmatpush.msra.mxu0 0.0
    %261 = vmatpush.msra.mxu0 0.0
    %262 = vmatpush.msra.mxu0 0.0
    %263 = vmatpush.msra.mxu0 0.0
    %v264 = vand.u32 %v47, 4294901760
    %v265 = vsub.f32 %v47, %v264
    %266 = vmatpush.msra.mxu0 %v265
    %v267 = vand.u32 %v42, 4294901760
    %v268 = vsub.f32 %v42, %v267
    %269 = vmatmul.f32.gmra.mxu0 %v268
    %v270 = vpop.f32.mrf.mxu0
    %v271 = vadd.f32 %v247, %v270
    %272 = vdwg.mxu0
    %273 = vmatpush.msra.mxu0 0.0
    %274 = vmatpush.msra.mxu0 0.0
    %275 = vmatpush.msra.mxu0 0.0
    %276 = vmatpush.msra.mxu0 0.0
    %277 = vmatpush.msra.mxu0 0.0
    %278 = vmatpush.msra.mxu0 0.0
    %279 = vmatpush.msra.mxu0 0.0
    %280 = vmatpush.msra.mxu0 0.0
    %281 = vmatpush.msra.mxu0 0.0
    %282 = vmatpush.msra.mxu0 0.0
    %283 = vmatpush.msra.mxu0 0.0
    %284 = vmatpush.msra.mxu0 0.0
    %285 = vmatpush.msra.mxu0 0.0
    %286 = vmatpush.msra.mxu0 0.0
    %287 = vmatpush.msra.mxu0 0.0
    %v288 = vand.u32 %v47, 4294901760
    %289 = vmatpush.msra.mxu0 %v288
    %v290 = vand.u32 %v42, 4294901760
    %v291 = vsub.f32 %v42, %v290
    %v292 = vand.u32 %v291, 4294901760
    %293 = vmatmul.f32.gmra.mxu0 %v292
    %v294 = vpop.f32.mrf.mxu0
    %v295 = vadd.f32 %v271, %v294
    %296 = vdwg.mxu0
    %297 = vmatpush.msra.mxu0 0.0
    %298 = vmatpush.msra.mxu0 0.0
    %299 = vmatpush.msra.mxu0 0.0
    %300 = vmatpush.msra.mxu0 0.0
    %301 = vmatpush.msra.mxu0 0.0
    %302 = vmatpush.msra.mxu0 0.0
    %303 = vmatpush.msra.mxu0 0.0
    %304 = vmatpush.msra.mxu0 0.0
    %305 = vmatpush.msra.mxu0 0.0
    %306 = vmatpush.msra.mxu0 0.0
    %307 = vmatpush.msra.mxu0 0.0
    %308 = vmatpush.msra.mxu0 0.0
    %309 = vmatpush.msra.mxu0 0.0
    %310 = vmatpush.msra.mxu0 0.0
    %311 = vmatpush.msra.mxu0 0.0
    %v312 = vand.u32 %v47, 4294901760
    %v313 = vsub.f32 %v47, %v312
    %v314 = vand.u32 %v313, 4294901760
    %315 = vmatpush.msra.mxu0 %v314
    %v316 = vand.u32 %v42, 4294901760
    %317 = vmatmul.f32.gmra.mxu0 %v316
    %v318 = vpop.f32.mrf.mxu0
    %v319 = vadd.f32 %v295, %v318
    %320 = vdwg.mxu0
    %321 = vmatpush.msra.mxu0 0.0
    %322 = vmatpush.msra.mxu0 0.0
    %323 = vmatpush.msra.mxu0 0.0
    %324 = vmatpush.msra.mxu0 0.0
    %325 = vmatpush.msra.mxu0 0.0
    %326 = vmatpush.msra.mxu0 0.0
    %327 = vmatpush.msra.mxu0 0.0
    %328 = vmatpush.msra.mxu0 0.0
    %329 = vmatpush.msra.mxu0 0.0
    %330 = vmatpush.msra.mxu0 0.0
    %331 = vmatpush.msra.mxu0 0.0
    %332 = vmatpush.msra.mxu0 0.0
    %333 = vmatpush.msra.mxu0 0.0
    %334 = vmatpush.msra.mxu0 0.0
    %335 = vmatpush.msra.mxu0 0.0
    %v336 = vand.u32 %v47, 4294901760
    %337 = vmatpush.msra.mxu0 %v336
    %v338 = vand.u32 %v42, 4294901760
    %339 = vmatmul.f32.gmra.mxu0 %v338
    %v340 = vpop.f32.mrf.mxu0
    %v341 = vadd.f32 %v319, %v340
    %342 = vdwg.mxu0
    %343 = vmatpush.msra.mxu0 0.0
    %344 = vmatpush.msra.mxu0 0.0
    %345 = vmatpush.msra.mxu0 0.0
    %346 = vmatpush.msra.mxu0 0.0
    %347 = vmatpush.msra.mxu0 0.0
    %348 = vmatpush.msra.mxu0 0.0
    %349 = vmatpush.msra.mxu0 0.0
    %350 = vmatpush.msra.mxu0 0.0
    %351 = vmatpush.msra.mxu0 0.0
    %352 = vmatpush.msra.mxu0 0.0
    %353 = vmatpush.msra.mxu0 0.0
    %354 = vmatpush.msra.mxu0 0.0
    %355 = vmatpush.msra.mxu0 0.0
    %356 = vmatpush.msra.mxu0 0.0
    %357 = vmatpush.msra.mxu0 0.0
    %v358 = vand.u32 %v49, 4294901760
    %359 = vmatpush.msra.mxu0 %v358
    %v360 = vand.u32 %v42, 4294901760
    %v361 = vsub.f32 %v42, %v360
    %v362 = vand.u32 %v361, 4294901760
    %v363 = vsub.f32 %v361, %v362
    %v364 = vand.u32 %v363, 4294901760
    %365 = vmatmul.f32.gmra.mxu0 %v364
    %v366 = vpop.f32.mrf.mxu0
    %v367 = vadd.f32 0.0, %v366
    %368 = vdwg.mxu0
    %369 = vmatpush.msra.mxu0 0.0
    %370 = vmatpush.msra.mxu0 0.0
    %371 = vmatpush.msra.mxu0 0.0
    %372 = vmatpush.msra.mxu0 0.0
    %373 = vmatpush.msra.mxu0 0.0
    %374 = vmatpush.msra.mxu0 0.0
    %375 = vmatpush.msra.mxu0 0.0
    %376 = vmatpush.msra.mxu0 0.0
    %377 = vmatpush.msra.mxu0 0.0
    %378 = vmatpush.msra.mxu0 0.0
    %379 = vmatpush.msra.mxu0 0.0
    %380 = vmatpush.msra.mxu0 0.0
    %381 = vmatpush.msra.mxu0 0.0
    %382 = vmatpush.msra.mxu0 0.0
    %383 = vmatpush.msra.mxu0 0.0
    %v384 = vand.u32 %v49, 4294901760
    %v385 = vsub.f32 %v49, %v384
    %v386 = vand.u32 %v385, 4294901760
    %v387 = vsub.f32 %v385, %v386
    %v388 = vand.u32 %v387, 4294901760
    %389 = vmatpush.msra.mxu0 %v388
    %v390 = vand.u32 %v42, 4294901760
    %391 = vmatmul.f32.gmra.mxu0 %v390
    %v392 = vpop.f32.mrf.mxu0
    %v393 = vadd.f32 %v367, %v392
    %394 = vdwg.mxu0
    %395 = vmatpush.msra.mxu0 0.0
    %396 = vmatpush.msra.mxu0 0.0
    %397 = vmatpush.msra.mxu0 0.0
    %398 = vmatpush.msra.mxu0 0.0
    %399 = vmatpush.msra.mxu0 0.0
    %400 = vmatpush.msra.mxu0 0.0
    %401 = vmatpush.msra.mxu0 0.0
    %402 = vmatpush.msra.mxu0 0.0
    %403 = vmatpush.msra.mxu0 0.0
    %404 = vmatpush.msra.mxu0 0.0
    %405 = vmatpush.msra.mxu0 0.0
    %406 = vmatpush.msra.mxu0 0.0
    %407 = vmatpush.msra.mxu0 0.0
    %408 = vmatpush.msra.mxu0 0.0
    %409 = vmatpush.msra.mxu0 0.0
    %v410 = vand.u32 %v49, 4294901760
    %v411 = vsub.f32 %v49, %v410
    %412 = vmatpush.msra.mxu0 %v411
    %v413 = vand.u32 %v42, 4294901760
    %v414 = vsub.f32 %v42, %v413
    %415 = vmatmul.f32.gmra.mxu0 %v414
    %v416 = vpop.f32.mrf.mxu0
    %v417 = vadd.f32 %v393, %v416
    %418 = vdwg.mxu0
    %419 = vmatpush.msra.mxu0 0.0
    %420 = vmatpush.msra.mxu0 0.0
    %421 = vmatpush.msra.mxu0 0.0
    %422 = vmatpush.msra.mxu0 0.0
    %423 = vmatpush.msra.mxu0 0.0
    %424 = vmatpush.msra.mxu0 0.0
    %425 = vmatpush.msra.mxu0 0.0
    %426 = vmatpush.msra.mxu0 0.0
    %427 = vmatpush.msra.mxu0 0.0
    %428 = vmatpush.msra.mxu0 0.0
    %429 = vmatpush.msra.mxu0 0.0
    %430 = vmatpush.msra.mxu0 0.0
    %431 = vmatpush.msra.mxu0 0.0
    %432 = vmatpush.msra.mxu0 0.0
    %433 = vmatpush.msra.mxu0 0.0
    %v434 = vand.u32 %v49, 4294901760
    %435 = vmatpush.msra.mxu0 %v434
    %v436 = vand.u32 %v42, 4294901760
    %v437 = vsub.f32 %v42, %v436
    %v438 = vand.u32 %v437, 4294901760
    %439 = vmatmul.f32.gmra.mxu0 %v438
    %v440 = vpop.f32.mrf.mxu0
    %v441 = vadd.f32 %v417, %v440
    %442 = vdwg.mxu0
    %443 = vmatpush.msra.mxu0 0.0
    %444 = vmatpush.msra.mxu0 0.0
    %445 = vmatpush.msra.mxu0 0.0
    %446 = vmatpush.msra.mxu0 0.0
    %447 = vmatpush.msra.mxu0 0.0
    %448 = vmatpush.msra.mxu0 0.0
    %449 = vmatpush.msra.mxu0 0.0
    %450 = vmatpush.msra.mxu0 0.0
    %451 = vmatpush.msra.mxu0 0.0
    %452 = vmatpush.msra.mxu0 0.0
    %453 = vmatpush.msra.mxu0 0.0
    %454 = vmatpush.msra.mxu0 0.0
    %455 = vmatpush.msra.mxu0 0.0
    %456 = vmatpush.msra.mxu0 0.0
    %457 = vmatpush.msra.mxu0 0.0
    %v458 = vand.u32 %v49, 4294901760
    %v459 = vsub.f32 %v49, %v458
    %v460 = vand.u32 %v459, 4294901760
    %461 = vmatpush.msra.mxu0 %v460
    %v462 = vand.u32 %v42, 4294901760
    %463 = vmatmul.f32.gmra.mxu0 %v462
    %v464 = vpop.f32.mrf.mxu0
    %v465 = vadd.f32 %v441, %v464
    %466 = vdwg.mxu0
    %467 = vmatpush.msra.mxu0 0.0
    %468 = vmatpush.msra.mxu0 0.0
    %469 = vmatpush.msra.mxu0 0.0
    %470 = vmatpush.msra.mxu0 0.0
    %471 = vmatpush.msra.mxu0 0.0
    %472 = vmatpush.msra.mxu0 0.0
    %473 = vmatpush.msra.mxu0 0.0
    %474 = vmatpush.msra.mxu0 0.0
    %475 = vmatpush.msra.mxu0 0.0
    %476 = vmatpush.msra.mxu0 0.0
    %477 = vmatpush.msra.mxu0 0.0
    %478 = vmatpush.msra.mxu0 0.0
    %479 = vmatpush.msra.mxu0 0.0
    %480 = vmatpush.msra.mxu0 0.0
    %481 = vmatpush.msra.mxu0 0.0
    %v482 = vand.u32 %v49, 4294901760
    %483 = vmatpush.msra.mxu0 %v482
    %v484 = vand.u32 %v42, 4294901760
    %485 = vmatmul.f32.gmra.mxu0 %v484
    %v486 = vpop.f32.mrf.mxu0
    %v487 = vadd.f32 %v465, %v486
    %488 = vdwg.mxu0
    %v490 = vsel %vm40, %v19, 0
    %v492 = vsel %vm44, %v15, 0
    %v494 = vsel %vm44, %v16, 0
    %v496 = vsel %vm44, %v17, 0
    %498 = vmatpush.msra.mxu0 0.0
    %499 = vmatpush.msra.mxu0 0.0
    %500 = vmatpush.msra.mxu0 0.0
    %501 = vmatpush.msra.mxu0 0.0
    %502 = vmatpush.msra.mxu0 0.0
    %503 = vmatpush.msra.mxu0 0.0
    %504 = vmatpush.msra.mxu0 0.0
    %505 = vmatpush.msra.mxu0 0.0
    %506 = vmatpush.msra.mxu0 0.0
    %507 = vmatpush.msra.mxu0 0.0
    %508 = vmatpush.msra.mxu0 0.0
    %509 = vmatpush.msra.mxu0 0.0
    %510 = vmatpush.msra.mxu0 0.0
    %511 = vmatpush.msra.mxu0 0.0
    %512 = vmatpush.msra.mxu0 0.0
    %v513 = vand.u32 %v492, 4294901760
    %514 = vmatpush.msra.mxu0 %v513
    %v515 = vand.u32 %v490, 4294901760
    %v516 = vsub.f32 %v490, %v515
    %v517 = vand.u32 %v516, 4294901760
    %v518 = vsub.f32 %v516, %v517
    %v519 = vand.u32 %v518, 4294901760
    %520 = vmatmul.f32.gmra.mxu0 %v519
    %v521 = vpop.f32.mrf.mxu0
    %v522 = vadd.f32 %v195, %v521
    %523 = vdwg.mxu0
    %524 = vmatpush.msra.mxu0 0.0
    %525 = vmatpush.msra.mxu0 0.0
    %526 = vmatpush.msra.mxu0 0.0
    %527 = vmatpush.msra.mxu0 0.0
    %528 = vmatpush.msra.mxu0 0.0
    %529 = vmatpush.msra.mxu0 0.0
    %530 = vmatpush.msra.mxu0 0.0
    %531 = vmatpush.msra.mxu0 0.0
    %532 = vmatpush.msra.mxu0 0.0
    %533 = vmatpush.msra.mxu0 0.0
    %534 = vmatpush.msra.mxu0 0.0
    %535 = vmatpush.msra.mxu0 0.0
    %536 = vmatpush.msra.mxu0 0.0
    %537 = vmatpush.msra.mxu0 0.0
    %538 = vmatpush.msra.mxu0 0.0
    %v539 = vand.u32 %v492, 4294901760
    %v540 = vsub.f32 %v492, %v539
    %v541 = vand.u32 %v540, 4294901760
    %v542 = vsub.f32 %v540, %v541
    %v543 = vand.u32 %v542, 4294901760
    %544 = vmatpush.msra.mxu0 %v543
    %v545 = vand.u32 %v490, 4294901760
    %546 = vmatmul.f32.gmra.mxu0 %v545
    %v547 = vpop.f32.mrf.mxu0
    %v548 = vadd.f32 %v522, %v547
    %549 = vdwg.mxu0
    %550 = vmatpush.msra.mxu0 0.0
    %551 = vmatpush.msra.mxu0 0.0
    %552 = vmatpush.msra.mxu0 0.0
    %553 = vmatpush.msra.mxu0 0.0
    %554 = vmatpush.msra.mxu0 0.0
    %555 = vmatpush.msra.mxu0 0.0
    %556 = vmatpush.msra.mxu0 0.0
    %557 = vmatpush.msra.mxu0 0.0
    %558 = vmatpush.msra.mxu0 0.0
    %559 = vmatpush.msra.mxu0 0.0
    %560 = vmatpush.msra.mxu0 0.0
    %561 = vmatpush.msra.mxu0 0.0
    %562 = vmatpush.msra.mxu0 0.0
    %563 = vmatpush.msra.mxu0 0.0
    %564 = vmatpush.msra.mxu0 0.0
    %v565 = vand.u32 %v492, 4294901760
    %v566 = vsub.f32 %v492, %v565
    %567 = vmatpush.msra.mxu0 %v566
    %v568 = vand.u32 %v490, 4294901760
    %v569 = vsub.f32 %v490, %v568
    %570 = vmatmul.f32.gmra.mxu0 %v569
    %v571 = vpop.f32.mrf.mxu0
    %v572 = vadd.f32 %v548, %v571
    %573 = vdwg.mxu0
    %574 = vmatpush.msra.mxu0 0.0
    %575 = vmatpush.msra.mxu0 0.0
    %576 = vmatpush.msra.mxu0 0.0
    %577 = vmatpush.msra.mxu0 0.0
    %578 = vmatpush.msra.mxu0 0.0
    %579 = vmatpush.msra.mxu0 0.0
    %580 = vmatpush.msra.mxu0 0.0
    %581 = vmatpush.msra.mxu0 0.0
    %582 = vmatpush.msra.mxu0 0.0
    %583 = vmatpush.msra.mxu0 0.0
    %584 = vmatpush.msra.mxu0 0.0
    %585 = vmatpush.msra.mxu0 0.0
    %586 = vmatpush.msra.mxu0 0.0
    %587 = vmatpush.msra.mxu0 0.0
    %588 = vmatpush.msra.mxu0 0.0
    %v589 = vand.u32 %v492, 4294901760
    %590 = vmatpush.msra.mxu0 %v589
    %v591 = vand.u32 %v490, 4294901760
    %v592 = vsub.f32 %v490, %v591
    %v593 = vand.u32 %v592, 4294901760
    %594 = vmatmul.f32.gmra.mxu0 %v593
    %v595 = vpop.f32.mrf.mxu0
    %v596 = vadd.f32 %v572, %v595
    %597 = vdwg.mxu0
    %598 = vmatpush.msra.mxu0 0.0
    %599 = vmatpush.msra.mxu0 0.0
    %600 = vmatpush.msra.mxu0 0.0
    %601 = vmatpush.msra.mxu0 0.0
    %602 = vmatpush.msra.mxu0 0.0
    %603 = vmatpush.msra.mxu0 0.0
    %604 = vmatpush.msra.mxu0 0.0
    %605 = vmatpush.msra.mxu0 0.0
    %606 = vmatpush.msra.mxu0 0.0
    %607 = vmatpush.msra.mxu0 0.0
    %608 = vmatpush.msra.mxu0 0.0
    %609 = vmatpush.msra.mxu0 0.0
    %610 = vmatpush.msra.mxu0 0.0
    %611 = vmatpush.msra.mxu0 0.0
    %612 = vmatpush.msra.mxu0 0.0
    %v613 = vand.u32 %v492, 4294901760
    %v614 = vsub.f32 %v492, %v613
    %v615 = vand.u32 %v614, 4294901760
    %616 = vmatpush.msra.mxu0 %v615
    %v617 = vand.u32 %v490, 4294901760
    %618 = vmatmul.f32.gmra.mxu0 %v617
    %v619 = vpop.f32.mrf.mxu0
    %v620 = vadd.f32 %v596, %v619
    %621 = vdwg.mxu0
    %622 = vmatpush.msra.mxu0 0.0
    %623 = vmatpush.msra.mxu0 0.0
    %624 = vmatpush.msra.mxu0 0.0
    %625 = vmatpush.msra.mxu0 0.0
    %626 = vmatpush.msra.mxu0 0.0
    %627 = vmatpush.msra.mxu0 0.0
    %628 = vmatpush.msra.mxu0 0.0
    %629 = vmatpush.msra.mxu0 0.0
    %630 = vmatpush.msra.mxu0 0.0
    %631 = vmatpush.msra.mxu0 0.0
    %632 = vmatpush.msra.mxu0 0.0
    %633 = vmatpush.msra.mxu0 0.0
    %634 = vmatpush.msra.mxu0 0.0
    %635 = vmatpush.msra.mxu0 0.0
    %636 = vmatpush.msra.mxu0 0.0
    %v637 = vand.u32 %v492, 4294901760
    %638 = vmatpush.msra.mxu0 %v637
    %v639 = vand.u32 %v490, 4294901760
    %640 = vmatmul.f32.gmra.mxu0 %v639
    %v641 = vpop.f32.mrf.mxu0
    %v642 = vadd.f32 %v620, %v641
    %643 = vdwg.mxu0
    %644 = vmatpush.msra.mxu0 0.0
    %645 = vmatpush.msra.mxu0 0.0
    %646 = vmatpush.msra.mxu0 0.0
    %647 = vmatpush.msra.mxu0 0.0
    %648 = vmatpush.msra.mxu0 0.0
    %649 = vmatpush.msra.mxu0 0.0
    %650 = vmatpush.msra.mxu0 0.0
    %651 = vmatpush.msra.mxu0 0.0
    %652 = vmatpush.msra.mxu0 0.0
    %653 = vmatpush.msra.mxu0 0.0
    %654 = vmatpush.msra.mxu0 0.0
    %655 = vmatpush.msra.mxu0 0.0
    %656 = vmatpush.msra.mxu0 0.0
    %657 = vmatpush.msra.mxu0 0.0
    %658 = vmatpush.msra.mxu0 0.0
    %v659 = vand.u32 %v494, 4294901760
    %660 = vmatpush.msra.mxu0 %v659
    %v661 = vand.u32 %v490, 4294901760
    %v662 = vsub.f32 %v490, %v661
    %v663 = vand.u32 %v662, 4294901760
    %v664 = vsub.f32 %v662, %v663
    %v665 = vand.u32 %v664, 4294901760
    %666 = vmatmul.f32.gmra.mxu0 %v665
    %v667 = vpop.f32.mrf.mxu0
    %v668 = vadd.f32 %v341, %v667
    %669 = vdwg.mxu0
    %670 = vmatpush.msra.mxu0 0.0
    %671 = vmatpush.msra.mxu0 0.0
    %672 = vmatpush.msra.mxu0 0.0
    %673 = vmatpush.msra.mxu0 0.0
    %674 = vmatpush.msra.mxu0 0.0
    %675 = vmatpush.msra.mxu0 0.0
    %676 = vmatpush.msra.mxu0 0.0
    %677 = vmatpush.msra.mxu0 0.0
    %678 = vmatpush.msra.mxu0 0.0
    %679 = vmatpush.msra.mxu0 0.0
    %680 = vmatpush.msra.mxu0 0.0
    %681 = vmatpush.msra.mxu0 0.0
    %682 = vmatpush.msra.mxu0 0.0
    %683 = vmatpush.msra.mxu0 0.0
    %684 = vmatpush.msra.mxu0 0.0
    %v685 = vand.u32 %v494, 4294901760
    %v686 = vsub.f32 %v494, %v685
    %v687 = vand.u32 %v686, 4294901760
    %v688 = vsub.f32 %v686, %v687
    %v689 = vand.u32 %v688, 4294901760
    %690 = vmatpush.msra.mxu0 %v689
    %v691 = vand.u32 %v490, 4294901760
    %692 = vmatmul.f32.gmra.mxu0 %v691
    %v693 = vpop.f32.mrf.mxu0
    %v694 = vadd.f32 %v668, %v693
    %695 = vdwg.mxu0
    %696 = vmatpush.msra.mxu0 0.0
    %697 = vmatpush.msra.mxu0 0.0
    %698 = vmatpush.msra.mxu0 0.0
    %699 = vmatpush.msra.mxu0 0.0
    %700 = vmatpush.msra.mxu0 0.0
    %701 = vmatpush.msra.mxu0 0.0
    %702 = vmatpush.msra.mxu0 0.0
    %703 = vmatpush.msra.mxu0 0.0
    %704 = vmatpush.msra.mxu0 0.0
    %705 = vmatpush.msra.mxu0 0.0
    %706 = vmatpush.msra.mxu0 0.0
    %707 = vmatpush.msra.mxu0 0.0
    %708 = vmatpush.msra.mxu0 0.0
    %709 = vmatpush.msra.mxu0 0.0
    %710 = vmatpush.msra.mxu0 0.0
    %v711 = vand.u32 %v494, 4294901760
    %v712 = vsub.f32 %v494, %v711
    %713 = vmatpush.msra.mxu0 %v712
    %v714 = vand.u32 %v490, 4294901760
    %v715 = vsub.f32 %v490, %v714
    %716 = vmatmul.f32.gmra.mxu0 %v715
    %v717 = vpop.f32.mrf.mxu0
    %v718 = vadd.f32 %v694, %v717
    %719 = vdwg.mxu0
    %720 = vmatpush.msra.mxu0 0.0
    %721 = vmatpush.msra.mxu0 0.0
    %722 = vmatpush.msra.mxu0 0.0
    %723 = vmatpush.msra.mxu0 0.0
    %724 = vmatpush.msra.mxu0 0.0
    %725 = vmatpush.msra.mxu0 0.0
    %726 = vmatpush.msra.mxu0 0.0
    %727 = vmatpush.msra.mxu0 0.0
    %728 = vmatpush.msra.mxu0 0.0
    %729 = vmatpush.msra.mxu0 0.0
    %730 = vmatpush.msra.mxu0 0.0
    %731 = vmatpush.msra.mxu0 0.0
    %732 = vmatpush.msra.mxu0 0.0
    %733 = vmatpush.msra.mxu0 0.0
    %734 = vmatpush.msra.mxu0 0.0
    %v735 = vand.u32 %v494, 4294901760
    %736 = vmatpush.msra.mxu0 %v735
    %v737 = vand.u32 %v490, 4294901760
    %v738 = vsub.f32 %v490, %v737
    %v739 = vand.u32 %v738, 4294901760
    %740 = vmatmul.f32.gmra.mxu0 %v739
    %v741 = vpop.f32.mrf.mxu0
    %v742 = vadd.f32 %v718, %v741
    %743 = vdwg.mxu0
    %744 = vmatpush.msra.mxu0 0.0
    %745 = vmatpush.msra.mxu0 0.0
    %746 = vmatpush.msra.mxu0 0.0
    %747 = vmatpush.msra.mxu0 0.0
    %748 = vmatpush.msra.mxu0 0.0
    %749 = vmatpush.msra.mxu0 0.0
    %750 = vmatpush.msra.mxu0 0.0
    %751 = vmatpush.msra.mxu0 0.0
    %752 = vmatpush.msra.mxu0 0.0
    %753 = vmatpush.msra.mxu0 0.0
    %754 = vmatpush.msra.mxu0 0.0
    %755 = vmatpush.msra.mxu0 0.0
    %756 = vmatpush.msra.mxu0 0.0
    %757 = vmatpush.msra.mxu0 0.0
    %758 = vmatpush.msra.mxu0 0.0
    %v759 = vand.u32 %v494, 4294901760
    %v760 = vsub.f32 %v494, %v759
    %v761 = vand.u32 %v760, 4294901760
    %762 = vmatpush.msra.mxu0 %v761
    %v763 = vand.u32 %v490, 4294901760
    %764 = vmatmul.f32.gmra.mxu0 %v763
    %v765 = vpop.f32.mrf.mxu0
    %v766 = vadd.f32 %v742, %v765
    %767 = vdwg.mxu0
    %768 = vmatpush.msra.mxu0 0.0
    %769 = vmatpush.msra.mxu0 0.0
    %770 = vmatpush.msra.mxu0 0.0
    %771 = vmatpush.msra.mxu0 0.0
    %772 = vmatpush.msra.mxu0 0.0
    %773 = vmatpush.msra.mxu0 0.0
    %774 = vmatpush.msra.mxu0 0.0
    %775 = vmatpush.msra.mxu0 0.0
    %776 = vmatpush.msra.mxu0 0.0
    %777 = vmatpush.msra.mxu0 0.0
    %778 = vmatpush.msra.mxu0 0.0
    %779 = vmatpush.msra.mxu0 0.0
    %780 = vmatpush.msra.mxu0 0.0
    %781 = vmatpush.msra.mxu0 0.0
    %782 = vmatpush.msra.mxu0 0.0
    %v783 = vand.u32 %v494, 4294901760
    %784 = vmatpush.msra.mxu0 %v783
    %v785 = vand.u32 %v490, 4294901760
    %786 = vmatmul.f32.gmra.mxu0 %v785
    %v787 = vpop.f32.mrf.mxu0
    %v788 = vadd.f32 %v766, %v787
    %789 = vdwg.mxu0
    %790 = vmatpush.msra.mxu0 0.0
    %791 = vmatpush.msra.mxu0 0.0
    %792 = vmatpush.msra.mxu0 0.0
    %793 = vmatpush.msra.mxu0 0.0
    %794 = vmatpush.msra.mxu0 0.0
    %795 = vmatpush.msra.mxu0 0.0
    %796 = vmatpush.msra.mxu0 0.0
    %797 = vmatpush.msra.mxu0 0.0
    %798 = vmatpush.msra.mxu0 0.0
    %799 = vmatpush.msra.mxu0 0.0
    %800 = vmatpush.msra.mxu0 0.0
    %801 = vmatpush.msra.mxu0 0.0
    %802 = vmatpush.msra.mxu0 0.0
    %803 = vmatpush.msra.mxu0 0.0
    %804 = vmatpush.msra.mxu0 0.0
    %v805 = vand.u32 %v496, 4294901760
    %806 = vmatpush.msra.mxu0 %v805
    %v807 = vand.u32 %v490, 4294901760
    %v808 = vsub.f32 %v490, %v807
    %v809 = vand.u32 %v808, 4294901760
    %v810 = vsub.f32 %v808, %v809
    %v811 = vand.u32 %v810, 4294901760
    %812 = vmatmul.f32.gmra.mxu0 %v811
    %v813 = vpop.f32.mrf.mxu0
    %v814 = vadd.f32 %v487, %v813
    %815 = vdwg.mxu0
    %816 = vmatpush.msra.mxu0 0.0
    %817 = vmatpush.msra.mxu0 0.0
    %818 = vmatpush.msra.mxu0 0.0
    %819 = vmatpush.msra.mxu0 0.0
    %820 = vmatpush.msra.mxu0 0.0
    %821 = vmatpush.msra.mxu0 0.0
    %822 = vmatpush.msra.mxu0 0.0
    %823 = vmatpush.msra.mxu0 0.0
    %824 = vmatpush.msra.mxu0 0.0
    %825 = vmatpush.msra.mxu0 0.0
    %826 = vmatpush.msra.mxu0 0.0
    %827 = vmatpush.msra.mxu0 0.0
    %828 = vmatpush.msra.mxu0 0.0
    %829 = vmatpush.msra.mxu0 0.0
    %830 = vmatpush.msra.mxu0 0.0
    %v831 = vand.u32 %v496, 4294901760
    %v832 = vsub.f32 %v496, %v831
    %v833 = vand.u32 %v832, 4294901760
    %v834 = vsub.f32 %v832, %v833
    %v835 = vand.u32 %v834, 4294901760
    %836 = vmatpush.msra.mxu0 %v835
    %v837 = vand.u32 %v490, 4294901760
    %838 = vmatmul.f32.gmra.mxu0 %v837
    %v839 = vpop.f32.mrf.mxu0
    %v840 = vadd.f32 %v814, %v839
    %841 = vdwg.mxu0
    %842 = vmatpush.msra.mxu0 0.0
    %843 = vmatpush.msra.mxu0 0.0
    %844 = vmatpush.msra.mxu0 0.0
    %845 = vmatpush.msra.mxu0 0.0
    %846 = vmatpush.msra.mxu0 0.0
    %847 = vmatpush.msra.mxu0 0.0
    %848 = vmatpush.msra.mxu0 0.0
    %849 = vmatpush.msra.mxu0 0.0
    %850 = vmatpush.msra.mxu0 0.0
    %851 = vmatpush.msra.mxu0 0.0
    %852 = vmatpush.msra.mxu0 0.0
    %853 = vmatpush.msra.mxu0 0.0
    %854 = vmatpush.msra.mxu0 0.0
    %855 = vmatpush.msra.mxu0 0.0
    %856 = vmatpush.msra.mxu0 0.0
    %v857 = vand.u32 %v496, 4294901760
    %v858 = vsub.f32 %v496, %v857
    %859 = vmatpush.msra.mxu0 %v858
    %v860 = vand.u32 %v490, 4294901760
    %v861 = vsub.f32 %v490, %v860
    %862 = vmatmul.f32.gmra.mxu0 %v861
    %v863 = vpop.f32.mrf.mxu0
    %v864 = vadd.f32 %v840, %v863
    %865 = vdwg.mxu0
    %866 = vmatpush.msra.mxu0 0.0
    %867 = vmatpush.msra.mxu0 0.0
    %868 = vmatpush.msra.mxu0 0.0
    %869 = vmatpush.msra.mxu0 0.0
    %870 = vmatpush.msra.mxu0 0.0
    %871 = vmatpush.msra.mxu0 0.0
    %872 = vmatpush.msra.mxu0 0.0
    %873 = vmatpush.msra.mxu0 0.0
    %874 = vmatpush.msra.mxu0 0.0
    %875 = vmatpush.msra.mxu0 0.0
    %876 = vmatpush.msra.mxu0 0.0
    %877 = vmatpush.msra.mxu0 0.0
    %878 = vmatpush.msra.mxu0 0.0
    %879 = vmatpush.msra.mxu0 0.0
    %880 = vmatpush.msra.mxu0 0.0
    %v881 = vand.u32 %v496, 4294901760
    %882 = vmatpush.msra.mxu0 %v881
    %v883 = vand.u32 %v490, 4294901760
    %v884 = vsub.f32 %v490, %v883
    %v885 = vand.u32 %v884, 4294901760
    %886 = vmatmul.f32.gmra.mxu0 %v885
    %v887 = vpop.f32.mrf.mxu0
    %v888 = vadd.f32 %v864, %v887
    %889 = vdwg.mxu0
    %890 = vmatpush.msra.mxu0 0.0
    %891 = vmatpush.msra.mxu0 0.0
    %892 = vmatpush.msra.mxu0 0.0
    %893 = vmatpush.msra.mxu0 0.0
    %894 = vmatpush.msra.mxu0 0.0
    %895 = vmatpush.msra.mxu0 0.0
    %896 = vmatpush.msra.mxu0 0.0
    %897 = vmatpush.msra.mxu0 0.0
    %898 = vmatpush.msra.mxu0 0.0
    %899 = vmatpush.msra.mxu0 0.0
    %900 = vmatpush.msra.mxu0 0.0
    %901 = vmatpush.msra.mxu0 0.0
    %902 = vmatpush.msra.mxu0 0.0
    %903 = vmatpush.msra.mxu0 0.0
    %904 = vmatpush.msra.mxu0 0.0
    %v905 = vand.u32 %v496, 4294901760
    %v906 = vsub.f32 %v496, %v905
    %v907 = vand.u32 %v906, 4294901760
    %908 = vmatpush.msra.mxu0 %v907
    %v909 = vand.u32 %v490, 4294901760
    %910 = vmatmul.f32.gmra.mxu0 %v909
    %v911 = vpop.f32.mrf.mxu0
    %v912 = vadd.f32 %v888, %v911
    %913 = vdwg.mxu0
    %914 = vmatpush.msra.mxu0 0.0
    %915 = vmatpush.msra.mxu0 0.0
    %916 = vmatpush.msra.mxu0 0.0
    %917 = vmatpush.msra.mxu0 0.0
    %918 = vmatpush.msra.mxu0 0.0
    %919 = vmatpush.msra.mxu0 0.0
    %920 = vmatpush.msra.mxu0 0.0
    %921 = vmatpush.msra.mxu0 0.0
    %922 = vmatpush.msra.mxu0 0.0
    %923 = vmatpush.msra.mxu0 0.0
    %924 = vmatpush.msra.mxu0 0.0
    %925 = vmatpush.msra.mxu0 0.0
    %926 = vmatpush.msra.mxu0 0.0
    %927 = vmatpush.msra.mxu0 0.0
    %928 = vmatpush.msra.mxu0 0.0
    %v929 = vand.u32 %v496, 4294901760
    %930 = vmatpush.msra.mxu0 %v929
    %v931 = vand.u32 %v490, 4294901760
    %932 = vmatmul.f32.gmra.mxu0 %v931
    %v933 = vpop.f32.mrf.mxu0
    %v934 = vadd.f32 %v912, %v933
    %935 = vdwg.mxu0
    %936 = vrot.lane.b32.xlu0 %v15, 126
    %v937 = vpop.permute.xlu0 %936
    %938 = vrot.lane.b32.xlu0 %v16, 126
    %v939 = vpop.permute.xlu0 %938
    %940 = vrot.lane.b32.xlu0 %v17, 126
    %v941 = vpop.permute.xlu0 %940
    %vm942 = vcmask 1031168
    %v943 = vsel %vm942, %v937, %v939
    %v944 = vsel %vm942, %v939, %v941
    %v946 = vsel %vm40, %v21, 0
    %v948 = vsel %vm44, %v943, 0
    %v950 = vsel %vm44, %v944, 0
    %v952 = vsel %vm44, %v941, 0
    %954 = vmatpush.msra.mxu0 0.0
    %955 = vmatpush.msra.mxu0 0.0
    %956 = vmatpush.msra.mxu0 0.0
    %957 = vmatpush.msra.mxu0 0.0
    %958 = vmatpush.msra.mxu0 0.0
    %959 = vmatpush.msra.mxu0 0.0
    %960 = vmatpush.msra.mxu0 0.0
    %961 = vmatpush.msra.mxu0 0.0
    %962 = vmatpush.msra.mxu0 0.0
    %963 = vmatpush.msra.mxu0 0.0
    %964 = vmatpush.msra.mxu0 0.0
    %965 = vmatpush.msra.mxu0 0.0
    %966 = vmatpush.msra.mxu0 0.0
    %967 = vmatpush.msra.mxu0 0.0
    %968 = vmatpush.msra.mxu0 0.0
    %v969 = vand.u32 %v948, 4294901760
    %970 = vmatpush.msra.mxu0 %v969
    %v971 = vand.u32 %v946, 4294901760
    %v972 = vsub.f32 %v946, %v971
    %v973 = vand.u32 %v972, 4294901760
    %v974 = vsub.f32 %v972, %v973
    %v975 = vand.u32 %v974, 4294901760
    %976 = vmatmul.f32.gmra.mxu0 %v975
    %v977 = vpop.f32.mrf.mxu0
    %v978 = vadd.f32 0.0, %v977
    %979 = vdwg.mxu0
    %980 = vmatpush.msra.mxu0 0.0
    %981 = vmatpush.msra.mxu0 0.0
    %982 = vmatpush.msra.mxu0 0.0
    %983 = vmatpush.msra.mxu0 0.0
    %984 = vmatpush.msra.mxu0 0.0
    %985 = vmatpush.msra.mxu0 0.0
    %986 = vmatpush.msra.mxu0 0.0
    %987 = vmatpush.msra.mxu0 0.0
    %988 = vmatpush.msra.mxu0 0.0
    %989 = vmatpush.msra.mxu0 0.0
    %990 = vmatpush.msra.mxu0 0.0
    %991 = vmatpush.msra.mxu0 0.0
    %992 = vmatpush.msra.mxu0 0.0
    %993 = vmatpush.msra.mxu0 0.0
    %994 = vmatpush.msra.mxu0 0.0
    %v995 = vand.u32 %v948, 4294901760
    %v996 = vsub.f32 %v948, %v995
    %v997 = vand.u32 %v996, 4294901760
    %v998 = vsub.f32 %v996, %v997
    %v999 = vand.u32 %v998, 4294901760
    %1000 = vmatpush.msra.mxu0 %v999
    %v1001 = vand.u32 %v946, 4294901760
    %1002 = vmatmul.f32.gmra.mxu0 %v1001
    %v1003 = vpop.f32.mrf.mxu0
    %v1004 = vadd.f32 %v978, %v1003
    %1005 = vdwg.mxu0
    %1006 = vmatpush.msra.mxu0 0.0
    %1007 = vmatpush.msra.mxu0 0.0
    %1008 = vmatpush.msra.mxu0 0.0
    %1009 = vmatpush.msra.mxu0 0.0
    %1010 = vmatpush.msra.mxu0 0.0
    %1011 = vmatpush.msra.mxu0 0.0
    %1012 = vmatpush.msra.mxu0 0.0
    %1013 = vmatpush.msra.mxu0 0.0
    %1014 = vmatpush.msra.mxu0 0.0
    %1015 = vmatpush.msra.mxu0 0.0
    %1016 = vmatpush.msra.mxu0 0.0
    %1017 = vmatpush.msra.mxu0 0.0
    %1018 = vmatpush.msra.mxu0 0.0
    %1019 = vmatpush.msra.mxu0 0.0
    %1020 = vmatpush.msra.mxu0 0.0
    %v1021 = vand.u32 %v948, 4294901760
    %v1022 = vsub.f32 %v948, %v1021
    %1023 = vmatpush.msra.mxu0 %v1022
    %v1024 = vand.u32 %v946, 4294901760
    %v1025 = vsub.f32 %v946, %v1024
    %1026 = vmatmul.f32.gmra.mxu0 %v1025
    %v1027 = vpop.f32.mrf.mxu0
    %v1028 = vadd.f32 %v1004, %v1027
    %1029 = vdwg.mxu0
    %1030 = vmatpush.msra.mxu0 0.0
    %1031 = vmatpush.msra.mxu0 0.0
    %1032 = vmatpush.msra.mxu0 0.0
    %1033 = vmatpush.msra.mxu0 0.0
    %1034 = vmatpush.msra.mxu0 0.0
    %1035 = vmatpush.msra.mxu0 0.0
    %1036 = vmatpush.msra.mxu0 0.0
    %1037 = vmatpush.msra.mxu0 0.0
    %1038 = vmatpush.msra.mxu0 0.0
    %1039 = vmatpush.msra.mxu0 0.0
    %1040 = vmatpush.msra.mxu0 0.0
    %1041 = vmatpush.msra.mxu0 0.0
    %1042 = vmatpush.msra.mxu0 0.0
    %1043 = vmatpush.msra.mxu0 0.0
    %1044 = vmatpush.msra.mxu0 0.0
    %v1045 = vand.u32 %v948, 4294901760
    %1046 = vmatpush.msra.mxu0 %v1045
    %v1047 = vand.u32 %v946, 4294901760
    %v1048 = vsub.f32 %v946, %v1047
    %v1049 = vand.u32 %v1048, 4294901760
    %1050 = vmatmul.f32.gmra.mxu0 %v1049
    %v1051 = vpop.f32.mrf.mxu0
    %v1052 = vadd.f32 %v1028, %v1051
    %1053 = vdwg.mxu0
    %1054 = vmatpush.msra.mxu0 0.0
    %1055 = vmatpush.msra.mxu0 0.0
    %1056 = vmatpush.msra.mxu0 0.0
    %1057 = vmatpush.msra.mxu0 0.0
    %1058 = vmatpush.msra.mxu0 0.0
    %1059 = vmatpush.msra.mxu0 0.0
    %1060 = vmatpush.msra.mxu0 0.0
    %1061 = vmatpush.msra.mxu0 0.0
    %1062 = vmatpush.msra.mxu0 0.0
    %1063 = vmatpush.msra.mxu0 0.0
    %1064 = vmatpush.msra.mxu0 0.0
    %1065 = vmatpush.msra.mxu0 0.0
    %1066 = vmatpush.msra.mxu0 0.0
    %1067 = vmatpush.msra.mxu0 0.0
    %1068 = vmatpush.msra.mxu0 0.0
    %v1069 = vand.u32 %v948, 4294901760
    %v1070 = vsub.f32 %v948, %v1069
    %v1071 = vand.u32 %v1070, 4294901760
    %1072 = vmatpush.msra.mxu0 %v1071
    %v1073 = vand.u32 %v946, 4294901760
    %1074 = vmatmul.f32.gmra.mxu0 %v1073
    %v1075 = vpop.f32.mrf.mxu0
    %v1076 = vadd.f32 %v1052, %v1075
    %1077 = vdwg.mxu0
    %1078 = vmatpush.msra.mxu0 0.0
    %1079 = vmatpush.msra.mxu0 0.0
    %1080 = vmatpush.msra.mxu0 0.0
    %1081 = vmatpush.msra.mxu0 0.0
    %1082 = vmatpush.msra.mxu0 0.0
    %1083 = vmatpush.msra.mxu0 0.0
    %1084 = vmatpush.msra.mxu0 0.0
    %1085 = vmatpush.msra.mxu0 0.0
    %1086 = vmatpush.msra.mxu0 0.0
    %1087 = vmatpush.msra.mxu0 0.0
    %1088 = vmatpush.msra.mxu0 0.0
    %1089 = vmatpush.msra.mxu0 0.0
    %1090 = vmatpush.msra.mxu0 0.0
    %1091 = vmatpush.msra.mxu0 0.0
    %1092 = vmatpush.msra.mxu0 0.0
    %v1093 = vand.u32 %v948, 4294901760
    %1094 = vmatpush.msra.mxu0 %v1093
    %v1095 = vand.u32 %v946, 4294901760
    %1096 = vmatmul.f32.gmra.mxu0 %v1095
    %v1097 = vpop.f32.mrf.mxu0
    %v1098 = vadd.f32 %v1076, %v1097
    %1099 = vdwg.mxu0
    %1100 = vmatpush.msra.mxu0 0.0
    %1101 = vmatpush.msra.mxu0 0.0
    %1102 = vmatpush.msra.mxu0 0.0
    %1103 = vmatpush.msra.mxu0 0.0
    %1104 = vmatpush.msra.mxu0 0.0
    %1105 = vmatpush.msra.mxu0 0.0
    %1106 = vmatpush.msra.mxu0 0.0
    %1107 = vmatpush.msra.mxu0 0.0
    %1108 = vmatpush.msra.mxu0 0.0
    %1109 = vmatpush.msra.mxu0 0.0
    %1110 = vmatpush.msra.mxu0 0.0
    %1111 = vmatpush.msra.mxu0 0.0
    %1112 = vmatpush.msra.mxu0 0.0
    %1113 = vmatpush.msra.mxu0 0.0
    %1114 = vmatpush.msra.mxu0 0.0
    %v1115 = vand.u32 %v950, 4294901760
    %1116 = vmatpush.msra.mxu0 %v1115
    %v1117 = vand.u32 %v946, 4294901760
    %v1118 = vsub.f32 %v946, %v1117
    %v1119 = vand.u32 %v1118, 4294901760
    %v1120 = vsub.f32 %v1118, %v1119
    %v1121 = vand.u32 %v1120, 4294901760
    %1122 = vmatmul.f32.gmra.mxu0 %v1121
    %v1123 = vpop.f32.mrf.mxu0
    %v1124 = vadd.f32 0.0, %v1123
    %1125 = vdwg.mxu0
    %1126 = vmatpush.msra.mxu0 0.0
    %1127 = vmatpush.msra.mxu0 0.0
    %1128 = vmatpush.msra.mxu0 0.0
    %1129 = vmatpush.msra.mxu0 0.0
    %1130 = vmatpush.msra.mxu0 0.0
    %1131 = vmatpush.msra.mxu0 0.0
    %1132 = vmatpush.msra.mxu0 0.0
    %1133 = vmatpush.msra.mxu0 0.0
    %1134 = vmatpush.msra.mxu0 0.0
    %1135 = vmatpush.msra.mxu0 0.0
    %1136 = vmatpush.msra.mxu0 0.0
    %1137 = vmatpush.msra.mxu0 0.0
    %1138 = vmatpush.msra.mxu0 0.0
    %1139 = vmatpush.msra.mxu0 0.0
    %1140 = vmatpush.msra.mxu0 0.0
    %v1141 = vand.u32 %v950, 4294901760
    %v1142 = vsub.f32 %v950, %v1141
    %v1143 = vand.u32 %v1142, 4294901760
    %v1144 = vsub.f32 %v1142, %v1143
    %v1145 = vand.u32 %v1144, 4294901760
    %1146 = vmatpush.msra.mxu0 %v1145
    %v1147 = vand.u32 %v946, 4294901760
    %1148 = vmatmul.f32.gmra.mxu0 %v1147
    %v1149 = vpop.f32.mrf.mxu0
    %v1150 = vadd.f32 %v1124, %v1149
    %1151 = vdwg.mxu0
    %1152 = vmatpush.msra.mxu0 0.0
    %1153 = vmatpush.msra.mxu0 0.0
    %1154 = vmatpush.msra.mxu0 0.0
    %1155 = vmatpush.msra.mxu0 0.0
    %1156 = vmatpush.msra.mxu0 0.0
    %1157 = vmatpush.msra.mxu0 0.0
    %1158 = vmatpush.msra.mxu0 0.0
    %1159 = vmatpush.msra.mxu0 0.0
    %1160 = vmatpush.msra.mxu0 0.0
    %1161 = vmatpush.msra.mxu0 0.0
    %1162 = vmatpush.msra.mxu0 0.0
    %1163 = vmatpush.msra.mxu0 0.0
    %1164 = vmatpush.msra.mxu0 0.0
    %1165 = vmatpush.msra.mxu0 0.0
    %1166 = vmatpush.msra.mxu0 0.0
    %v1167 = vand.u32 %v950, 4294901760
    %v1168 = vsub.f32 %v950, %v1167
    %1169 = vmatpush.msra.mxu0 %v1168
    %v1170 = vand.u32 %v946, 4294901760
    %v1171 = vsub.f32 %v946, %v1170
    %1172 = vmatmul.f32.gmra.mxu0 %v1171
    %v1173 = vpop.f32.mrf.mxu0
    %v1174 = vadd.f32 %v1150, %v1173
    %1175 = vdwg.mxu0
    %1176 = vmatpush.msra.mxu0 0.0
    %1177 = vmatpush.msra.mxu0 0.0
    %1178 = vmatpush.msra.mxu0 0.0
    %1179 = vmatpush.msra.mxu0 0.0
    %1180 = vmatpush.msra.mxu0 0.0
    %1181 = vmatpush.msra.mxu0 0.0
    %1182 = vmatpush.msra.mxu0 0.0
    %1183 = vmatpush.msra.mxu0 0.0
    %1184 = vmatpush.msra.mxu0 0.0
    %1185 = vmatpush.msra.mxu0 0.0
    %1186 = vmatpush.msra.mxu0 0.0
    %1187 = vmatpush.msra.mxu0 0.0
    %1188 = vmatpush.msra.mxu0 0.0
    %1189 = vmatpush.msra.mxu0 0.0
    %1190 = vmatpush.msra.mxu0 0.0
    %v1191 = vand.u32 %v950, 4294901760
    %1192 = vmatpush.msra.mxu0 %v1191
    %v1193 = vand.u32 %v946, 4294901760
    %v1194 = vsub.f32 %v946, %v1193
    %v1195 = vand.u32 %v1194, 4294901760
    %1196 = vmatmul.f32.gmra.mxu0 %v1195
    %v1197 = vpop.f32.mrf.mxu0
    %v1198 = vadd.f32 %v1174, %v1197
    %1199 = vdwg.mxu0
    %1200 = vmatpush.msra.mxu0 0.0
    %1201 = vmatpush.msra.mxu0 0.0
    %1202 = vmatpush.msra.mxu0 0.0
    %1203 = vmatpush.msra.mxu0 0.0
    %1204 = vmatpush.msra.mxu0 0.0
    %1205 = vmatpush.msra.mxu0 0.0
    %1206 = vmatpush.msra.mxu0 0.0
    %1207 = vmatpush.msra.mxu0 0.0
    %1208 = vmatpush.msra.mxu0 0.0
    %1209 = vmatpush.msra.mxu0 0.0
    %1210 = vmatpush.msra.mxu0 0.0
    %1211 = vmatpush.msra.mxu0 0.0
    %1212 = vmatpush.msra.mxu0 0.0
    %1213 = vmatpush.msra.mxu0 0.0
    %1214 = vmatpush.msra.mxu0 0.0
    %v1215 = vand.u32 %v950, 4294901760
    %v1216 = vsub.f32 %v950, %v1215
    %v1217 = vand.u32 %v1216, 4294901760
    %1218 = vmatpush.msra.mxu0 %v1217
    %v1219 = vand.u32 %v946, 4294901760
    %1220 = vmatmul.f32.gmra.mxu0 %v1219
    %v1221 = vpop.f32.mrf.mxu0
    %v1222 = vadd.f32 %v1198, %v1221
    %1223 = vdwg.mxu0
    %1224 = vmatpush.msra.mxu0 0.0
    %1225 = vmatpush.msra.mxu0 0.0
    %1226 = vmatpush.msra.mxu0 0.0
    %1227 = vmatpush.msra.mxu0 0.0
    %1228 = vmatpush.msra.mxu0 0.0
    %1229 = vmatpush.msra.mxu0 0.0
    %1230 = vmatpush.msra.mxu0 0.0
    %1231 = vmatpush.msra.mxu0 0.0
    %1232 = vmatpush.msra.mxu0 0.0
    %1233 = vmatpush.msra.mxu0 0.0
    %1234 = vmatpush.msra.mxu0 0.0
    %1235 = vmatpush.msra.mxu0 0.0
    %1236 = vmatpush.msra.mxu0 0.0
    %1237 = vmatpush.msra.mxu0 0.0
    %1238 = vmatpush.msra.mxu0 0.0
    %v1239 = vand.u32 %v950, 4294901760
    %1240 = vmatpush.msra.mxu0 %v1239
    %v1241 = vand.u32 %v946, 4294901760
    %1242 = vmatmul.f32.gmra.mxu0 %v1241
    %v1243 = vpop.f32.mrf.mxu0
    %v1244 = vadd.f32 %v1222, %v1243
    %1245 = vdwg.mxu0
    %1246 = vmatpush.msra.mxu0 0.0
    %1247 = vmatpush.msra.mxu0 0.0
    %1248 = vmatpush.msra.mxu0 0.0
    %1249 = vmatpush.msra.mxu0 0.0
    %1250 = vmatpush.msra.mxu0 0.0
    %1251 = vmatpush.msra.mxu0 0.0
    %1252 = vmatpush.msra.mxu0 0.0
    %1253 = vmatpush.msra.mxu0 0.0
    %1254 = vmatpush.msra.mxu0 0.0
    %1255 = vmatpush.msra.mxu0 0.0
    %1256 = vmatpush.msra.mxu0 0.0
    %1257 = vmatpush.msra.mxu0 0.0
    %1258 = vmatpush.msra.mxu0 0.0
    %1259 = vmatpush.msra.mxu0 0.0
    %1260 = vmatpush.msra.mxu0 0.0
    %v1261 = vand.u32 %v952, 4294901760
    %1262 = vmatpush.msra.mxu0 %v1261
    %v1263 = vand.u32 %v946, 4294901760
    %v1264 = vsub.f32 %v946, %v1263
    %v1265 = vand.u32 %v1264, 4294901760
    %v1266 = vsub.f32 %v1264, %v1265
    %v1267 = vand.u32 %v1266, 4294901760
    %1268 = vmatmul.f32.gmra.mxu0 %v1267
    %v1269 = vpop.f32.mrf.mxu0
    %v1270 = vadd.f32 0.0, %v1269
    %1271 = vdwg.mxu0
    %1272 = vmatpush.msra.mxu0 0.0
    %1273 = vmatpush.msra.mxu0 0.0
    %1274 = vmatpush.msra.mxu0 0.0
    %1275 = vmatpush.msra.mxu0 0.0
    %1276 = vmatpush.msra.mxu0 0.0
    %1277 = vmatpush.msra.mxu0 0.0
    %1278 = vmatpush.msra.mxu0 0.0
    %1279 = vmatpush.msra.mxu0 0.0
    %1280 = vmatpush.msra.mxu0 0.0
    %1281 = vmatpush.msra.mxu0 0.0
    %1282 = vmatpush.msra.mxu0 0.0
    %1283 = vmatpush.msra.mxu0 0.0
    %1284 = vmatpush.msra.mxu0 0.0
    %1285 = vmatpush.msra.mxu0 0.0
    %1286 = vmatpush.msra.mxu0 0.0
    %v1287 = vand.u32 %v952, 4294901760
    %v1288 = vsub.f32 %v952, %v1287
    %v1289 = vand.u32 %v1288, 4294901760
    %v1290 = vsub.f32 %v1288, %v1289
    %v1291 = vand.u32 %v1290, 4294901760
    %1292 = vmatpush.msra.mxu0 %v1291
    %v1293 = vand.u32 %v946, 4294901760
    %1294 = vmatmul.f32.gmra.mxu0 %v1293
    %v1295 = vpop.f32.mrf.mxu0
    %v1296 = vadd.f32 %v1270, %v1295
    %1297 = vdwg.mxu0
    %1298 = vmatpush.msra.mxu0 0.0
    %1299 = vmatpush.msra.mxu0 0.0
    %1300 = vmatpush.msra.mxu0 0.0
    %1301 = vmatpush.msra.mxu0 0.0
    %1302 = vmatpush.msra.mxu0 0.0
    %1303 = vmatpush.msra.mxu0 0.0
    %1304 = vmatpush.msra.mxu0 0.0
    %1305 = vmatpush.msra.mxu0 0.0
    %1306 = vmatpush.msra.mxu0 0.0
    %1307 = vmatpush.msra.mxu0 0.0
    %1308 = vmatpush.msra.mxu0 0.0
    %1309 = vmatpush.msra.mxu0 0.0
    %1310 = vmatpush.msra.mxu0 0.0
    %1311 = vmatpush.msra.mxu0 0.0
    %1312 = vmatpush.msra.mxu0 0.0
    %v1313 = vand.u32 %v952, 4294901760
    %v1314 = vsub.f32 %v952, %v1313
    %1315 = vmatpush.msra.mxu0 %v1314
    %v1316 = vand.u32 %v946, 4294901760
    %v1317 = vsub.f32 %v946, %v1316
    %1318 = vmatmul.f32.gmra.mxu0 %v1317
    %v1319 = vpop.f32.mrf.mxu0
    %v1320 = vadd.f32 %v1296, %v1319
    %1321 = vdwg.mxu0
    %1322 = vmatpush.msra.mxu0 0.0
    %1323 = vmatpush.msra.mxu0 0.0
    %1324 = vmatpush.msra.mxu0 0.0
    %1325 = vmatpush.msra.mxu0 0.0
    %1326 = vmatpush.msra.mxu0 0.0
    %1327 = vmatpush.msra.mxu0 0.0
    %1328 = vmatpush.msra.mxu0 0.0
    %1329 = vmatpush.msra.mxu0 0.0
    %1330 = vmatpush.msra.mxu0 0.0
    %1331 = vmatpush.msra.mxu0 0.0
    %1332 = vmatpush.msra.mxu0 0.0
    %1333 = vmatpush.msra.mxu0 0.0
    %1334 = vmatpush.msra.mxu0 0.0
    %1335 = vmatpush.msra.mxu0 0.0
    %1336 = vmatpush.msra.mxu0 0.0
    %v1337 = vand.u32 %v952, 4294901760
    %1338 = vmatpush.msra.mxu0 %v1337
    %v1339 = vand.u32 %v946, 4294901760
    %v1340 = vsub.f32 %v946, %v1339
    %v1341 = vand.u32 %v1340, 4294901760
    %1342 = vmatmul.f32.gmra.mxu0 %v1341
    %v1343 = vpop.f32.mrf.mxu0
    %v1344 = vadd.f32 %v1320, %v1343
    %1345 = vdwg.mxu0
    %1346 = vmatpush.msra.mxu0 0.0
    %1347 = vmatpush.msra.mxu0 0.0
    %1348 = vmatpush.msra.mxu0 0.0
    %1349 = vmatpush.msra.mxu0 0.0
    %1350 = vmatpush.msra.mxu0 0.0
    %1351 = vmatpush.msra.mxu0 0.0
    %1352 = vmatpush.msra.mxu0 0.0
    %1353 = vmatpush.msra.mxu0 0.0
    %1354 = vmatpush.msra.mxu0 0.0
    %1355 = vmatpush.msra.mxu0 0.0
    %1356 = vmatpush.msra.mxu0 0.0
    %1357 = vmatpush.msra.mxu0 0.0
    %1358 = vmatpush.msra.mxu0 0.0
    %1359 = vmatpush.msra.mxu0 0.0
    %1360 = vmatpush.msra.mxu0 0.0
    %v1361 = vand.u32 %v952, 4294901760
    %v1362 = vsub.f32 %v952, %v1361
    %v1363 = vand.u32 %v1362, 4294901760
    %1364 = vmatpush.msra.mxu0 %v1363
    %v1365 = vand.u32 %v946, 4294901760
    %1366 = vmatmul.f32.gmra.mxu0 %v1365
    %v1367 = vpop.f32.mrf.mxu0
    %v1368 = vadd.f32 %v1344, %v1367
    %1369 = vdwg.mxu0
    %1370 = vmatpush.msra.mxu0 0.0
    %1371 = vmatpush.msra.mxu0 0.0
    %1372 = vmatpush.msra.mxu0 0.0
    %1373 = vmatpush.msra.mxu0 0.0
    %1374 = vmatpush.msra.mxu0 0.0
    %1375 = vmatpush.msra.mxu0 0.0
    %1376 = vmatpush.msra.mxu0 0.0
    %1377 = vmatpush.msra.mxu0 0.0
    %1378 = vmatpush.msra.mxu0 0.0
    %1379 = vmatpush.msra.mxu0 0.0
    %1380 = vmatpush.msra.mxu0 0.0
    %1381 = vmatpush.msra.mxu0 0.0
    %1382 = vmatpush.msra.mxu0 0.0
    %1383 = vmatpush.msra.mxu0 0.0
    %1384 = vmatpush.msra.mxu0 0.0
    %v1385 = vand.u32 %v952, 4294901760
    %1386 = vmatpush.msra.mxu0 %v1385
    %v1387 = vand.u32 %v946, 4294901760
    %1388 = vmatmul.f32.gmra.mxu0 %v1387
    %v1389 = vpop.f32.mrf.mxu0
    %v1390 = vadd.f32 %v1368, %v1389
    %1391 = vdwg.mxu0
    %v1392 = vadd.f32 %v642, %v1098
    %v1393 = vadd.f32 %v788, %v1244
    %v1394 = vadd.f32 %v934, %v1390
    %1395 = vrot.lane.b32.xlu0 %v15, 108
    %v1396 = vpop.permute.xlu0 %1395
    %1397 = vrot.lane.b32.xlu0 %v16, 108
    %v1398 = vpop.permute.xlu0 %1397
    %1399 = vrot.lane.b32.xlu0 %v17, 108
    %v1400 = vpop.permute.xlu0 %1399
    %vm1401 = vcmask 883712
    %v1402 = vsel %vm1401, %v1396, %v1398
    %v1403 = vsel %vm1401, %v1398, %v1400
    %v1405 = vsel %vm40, %v22, 0
    %v1407 = vsel %vm44, %v1402, 0
    %v1409 = vsel %vm44, %v1403, 0
    %v1411 = vsel %vm44, %v1400, 0
    %1413 = vmatpush.msra.mxu0 0.0
    %1414 = vmatpush.msra.mxu0 0.0
    %1415 = vmatpush.msra.mxu0 0.0
    %1416 = vmatpush.msra.mxu0 0.0
    %1417 = vmatpush.msra.mxu0 0.0
    %1418 = vmatpush.msra.mxu0 0.0
    %1419 = vmatpush.msra.mxu0 0.0
    %1420 = vmatpush.msra.mxu0 0.0
    %1421 = vmatpush.msra.mxu0 0.0
    %1422 = vmatpush.msra.mxu0 0.0
    %1423 = vmatpush.msra.mxu0 0.0
    %1424 = vmatpush.msra.mxu0 0.0
    %1425 = vmatpush.msra.mxu0 0.0
    %1426 = vmatpush.msra.mxu0 0.0
    %1427 = vmatpush.msra.mxu0 0.0
    %v1428 = vand.u32 %v1407, 4294901760
    %1429 = vmatpush.msra.mxu0 %v1428
    %v1430 = vand.u32 %v1405, 4294901760
    %v1431 = vsub.f32 %v1405, %v1430
    %v1432 = vand.u32 %v1431, 4294901760
    %v1433 = vsub.f32 %v1431, %v1432
    %v1434 = vand.u32 %v1433, 4294901760
    %1435 = vmatmul.f32.gmra.mxu0 %v1434
    %v1436 = vpop.f32.mrf.mxu0
    %v1437 = vadd.f32 0.0, %v1436
    %1438 = vdwg.mxu0
    %1439 = vmatpush.msra.mxu0 0.0
    %1440 = vmatpush.msra.mxu0 0.0
    %1441 = vmatpush.msra.mxu0 0.0
    %1442 = vmatpush.msra.mxu0 0.0
    %1443 = vmatpush.msra.mxu0 0.0
    %1444 = vmatpush.msra.mxu0 0.0
    %1445 = vmatpush.msra.mxu0 0.0
    %1446 = vmatpush.msra.mxu0 0.0
    %1447 = vmatpush.msra.mxu0 0.0
    %1448 = vmatpush.msra.mxu0 0.0
    %1449 = vmatpush.msra.mxu0 0.0
    %1450 = vmatpush.msra.mxu0 0.0
    %1451 = vmatpush.msra.mxu0 0.0
    %1452 = vmatpush.msra.mxu0 0.0
    %1453 = vmatpush.msra.mxu0 0.0
    %v1454 = vand.u32 %v1407, 4294901760
    %v1455 = vsub.f32 %v1407, %v1454
    %v1456 = vand.u32 %v1455, 4294901760
    %v1457 = vsub.f32 %v1455, %v1456
    %v1458 = vand.u32 %v1457, 4294901760
    %1459 = vmatpush.msra.mxu0 %v1458
    %v1460 = vand.u32 %v1405, 4294901760
    %1461 = vmatmul.f32.gmra.mxu0 %v1460
    %v1462 = vpop.f32.mrf.mxu0
    %v1463 = vadd.f32 %v1437, %v1462
    %1464 = vdwg.mxu0
    %1465 = vmatpush.msra.mxu0 0.0
    %1466 = vmatpush.msra.mxu0 0.0
    %1467 = vmatpush.msra.mxu0 0.0
    %1468 = vmatpush.msra.mxu0 0.0
    %1469 = vmatpush.msra.mxu0 0.0
    %1470 = vmatpush.msra.mxu0 0.0
    %1471 = vmatpush.msra.mxu0 0.0
    %1472 = vmatpush.msra.mxu0 0.0
    %1473 = vmatpush.msra.mxu0 0.0
    %1474 = vmatpush.msra.mxu0 0.0
    %1475 = vmatpush.msra.mxu0 0.0
    %1476 = vmatpush.msra.mxu0 0.0
    %1477 = vmatpush.msra.mxu0 0.0
    %1478 = vmatpush.msra.mxu0 0.0
    %1479 = vmatpush.msra.mxu0 0.0
    %v1480 = vand.u32 %v1407, 4294901760
    %v1481 = vsub.f32 %v1407, %v1480
    %1482 = vmatpush.msra.mxu0 %v1481
    %v1483 = vand.u32 %v1405, 4294901760
    %v1484 = vsub.f32 %v1405, %v1483
    %1485 = vmatmul.f32.gmra.mxu0 %v1484
    %v1486 = vpop.f32.mrf.mxu0
    %v1487 = vadd.f32 %v1463, %v1486
    %1488 = vdwg.mxu0
    %1489 = vmatpush.msra.mxu0 0.0
    %1490 = vmatpush.msra.mxu0 0.0
    %1491 = vmatpush.msra.mxu0 0.0
    %1492 = vmatpush.msra.mxu0 0.0
    %1493 = vmatpush.msra.mxu0 0.0
    %1494 = vmatpush.msra.mxu0 0.0
    %1495 = vmatpush.msra.mxu0 0.0
    %1496 = vmatpush.msra.mxu0 0.0
    %1497 = vmatpush.msra.mxu0 0.0
    %1498 = vmatpush.msra.mxu0 0.0
    %1499 = vmatpush.msra.mxu0 0.0
    %1500 = vmatpush.msra.mxu0 0.0
    %1501 = vmatpush.msra.mxu0 0.0
    %1502 = vmatpush.msra.mxu0 0.0
    %1503 = vmatpush.msra.mxu0 0.0
    %v1504 = vand.u32 %v1407, 4294901760
    %1505 = vmatpush.msra.mxu0 %v1504
    %v1506 = vand.u32 %v1405, 4294901760
    %v1507 = vsub.f32 %v1405, %v1506
    %v1508 = vand.u32 %v1507, 4294901760
    %1509 = vmatmul.f32.gmra.mxu0 %v1508
    %v1510 = vpop.f32.mrf.mxu0
    %v1511 = vadd.f32 %v1487, %v1510
    %1512 = vdwg.mxu0
    %1513 = vmatpush.msra.mxu0 0.0
    %1514 = vmatpush.msra.mxu0 0.0
    %1515 = vmatpush.msra.mxu0 0.0
    %1516 = vmatpush.msra.mxu0 0.0
    %1517 = vmatpush.msra.mxu0 0.0
    %1518 = vmatpush.msra.mxu0 0.0
    %1519 = vmatpush.msra.mxu0 0.0
    %1520 = vmatpush.msra.mxu0 0.0
    %1521 = vmatpush.msra.mxu0 0.0
    %1522 = vmatpush.msra.mxu0 0.0
    %1523 = vmatpush.msra.mxu0 0.0
    %1524 = vmatpush.msra.mxu0 0.0
    %1525 = vmatpush.msra.mxu0 0.0
    %1526 = vmatpush.msra.mxu0 0.0
    %1527 = vmatpush.msra.mxu0 0.0
    %v1528 = vand.u32 %v1407, 4294901760
    %v1529 = vsub.f32 %v1407, %v1528
    %v1530 = vand.u32 %v1529, 4294901760
    %1531 = vmatpush.msra.mxu0 %v1530
    %v1532 = vand.u32 %v1405, 4294901760
    %1533 = vmatmul.f32.gmra.mxu0 %v1532
    %v1534 = vpop.f32.mrf.mxu0
    %v1535 = vadd.f32 %v1511, %v1534
    %1536 = vdwg.mxu0
    %1537 = vmatpush.msra.mxu0 0.0
    %1538 = vmatpush.msra.mxu0 0.0
    %1539 = vmatpush.msra.mxu0 0.0
    %1540 = vmatpush.msra.mxu0 0.0
    %1541 = vmatpush.msra.mxu0 0.0
    %1542 = vmatpush.msra.mxu0 0.0
    %1543 = vmatpush.msra.mxu0 0.0
    %1544 = vmatpush.msra.mxu0 0.0
    %1545 = vmatpush.msra.mxu0 0.0
    %1546 = vmatpush.msra.mxu0 0.0
    %1547 = vmatpush.msra.mxu0 0.0
    %1548 = vmatpush.msra.mxu0 0.0
    %1549 = vmatpush.msra.mxu0 0.0
    %1550 = vmatpush.msra.mxu0 0.0
    %1551 = vmatpush.msra.mxu0 0.0
    %v1552 = vand.u32 %v1407, 4294901760
    %1553 = vmatpush.msra.mxu0 %v1552
    %v1554 = vand.u32 %v1405, 4294901760
    %1555 = vmatmul.f32.gmra.mxu0 %v1554
    %v1556 = vpop.f32.mrf.mxu0
    %v1557 = vadd.f32 %v1535, %v1556
    %1558 = vdwg.mxu0
    %1559 = vmatpush.msra.mxu0 0.0
    %1560 = vmatpush.msra.mxu0 0.0
    %1561 = vmatpush.msra.mxu0 0.0
    %1562 = vmatpush.msra.mxu0 0.0
    %1563 = vmatpush.msra.mxu0 0.0
    %1564 = vmatpush.msra.mxu0 0.0
    %1565 = vmatpush.msra.mxu0 0.0
    %1566 = vmatpush.msra.mxu0 0.0
    %1567 = vmatpush.msra.mxu0 0.0
    %1568 = vmatpush.msra.mxu0 0.0
    %1569 = vmatpush.msra.mxu0 0.0
    %1570 = vmatpush.msra.mxu0 0.0
    %1571 = vmatpush.msra.mxu0 0.0
    %1572 = vmatpush.msra.mxu0 0.0
    %1573 = vmatpush.msra.mxu0 0.0
    %v1574 = vand.u32 %v1409, 4294901760
    %1575 = vmatpush.msra.mxu0 %v1574
    %v1576 = vand.u32 %v1405, 4294901760
    %v1577 = vsub.f32 %v1405, %v1576
    %v1578 = vand.u32 %v1577, 4294901760
    %v1579 = vsub.f32 %v1577, %v1578
    %v1580 = vand.u32 %v1579, 4294901760
    %1581 = vmatmul.f32.gmra.mxu0 %v1580
    %v1582 = vpop.f32.mrf.mxu0
    %v1583 = vadd.f32 0.0, %v1582
    %1584 = vdwg.mxu0
    %1585 = vmatpush.msra.mxu0 0.0
    %1586 = vmatpush.msra.mxu0 0.0
    %1587 = vmatpush.msra.mxu0 0.0
    %1588 = vmatpush.msra.mxu0 0.0
    %1589 = vmatpush.msra.mxu0 0.0
    %1590 = vmatpush.msra.mxu0 0.0
    %1591 = vmatpush.msra.mxu0 0.0
    %1592 = vmatpush.msra.mxu0 0.0
    %1593 = vmatpush.msra.mxu0 0.0
    %1594 = vmatpush.msra.mxu0 0.0
    %1595 = vmatpush.msra.mxu0 0.0
    %1596 = vmatpush.msra.mxu0 0.0
    %1597 = vmatpush.msra.mxu0 0.0
    %1598 = vmatpush.msra.mxu0 0.0
    %1599 = vmatpush.msra.mxu0 0.0
    %v1600 = vand.u32 %v1409, 4294901760
    %v1601 = vsub.f32 %v1409, %v1600
    %v1602 = vand.u32 %v1601, 4294901760
    %v1603 = vsub.f32 %v1601, %v1602
    %v1604 = vand.u32 %v1603, 4294901760
    %1605 = vmatpush.msra.mxu0 %v1604
    %v1606 = vand.u32 %v1405, 4294901760
    %1607 = vmatmul.f32.gmra.mxu0 %v1606
    %v1608 = vpop.f32.mrf.mxu0
    %v1609 = vadd.f32 %v1583, %v1608
    %1610 = vdwg.mxu0
    %1611 = vmatpush.msra.mxu0 0.0
    %1612 = vmatpush.msra.mxu0 0.0
    %1613 = vmatpush.msra.mxu0 0.0
    %1614 = vmatpush.msra.mxu0 0.0
    %1615 = vmatpush.msra.mxu0 0.0
    %1616 = vmatpush.msra.mxu0 0.0
    %1617 = vmatpush.msra.mxu0 0.0
    %1618 = vmatpush.msra.mxu0 0.0
    %1619 = vmatpush.msra.mxu0 0.0
    %1620 = vmatpush.msra.mxu0 0.0
    %1621 = vmatpush.msra.mxu0 0.0
    %1622 = vmatpush.msra.mxu0 0.0
    %1623 = vmatpush.msra.mxu0 0.0
    %1624 = vmatpush.msra.mxu0 0.0
    %1625 = vmatpush.msra.mxu0 0.0
    %v1626 = vand.u32 %v1409, 4294901760
    %v1627 = vsub.f32 %v1409, %v1626
    %1628 = vmatpush.msra.mxu0 %v1627
    %v1629 = vand.u32 %v1405, 4294901760
    %v1630 = vsub.f32 %v1405, %v1629
    %1631 = vmatmul.f32.gmra.mxu0 %v1630
    %v1632 = vpop.f32.mrf.mxu0
    %v1633 = vadd.f32 %v1609, %v1632
    %1634 = vdwg.mxu0
    %1635 = vmatpush.msra.mxu0 0.0
    %1636 = vmatpush.msra.mxu0 0.0
    %1637 = vmatpush.msra.mxu0 0.0
    %1638 = vmatpush.msra.mxu0 0.0
    %1639 = vmatpush.msra.mxu0 0.0
    %1640 = vmatpush.msra.mxu0 0.0
    %1641 = vmatpush.msra.mxu0 0.0
    %1642 = vmatpush.msra.mxu0 0.0
    %1643 = vmatpush.msra.mxu0 0.0
    %1644 = vmatpush.msra.mxu0 0.0
    %1645 = vmatpush.msra.mxu0 0.0
    %1646 = vmatpush.msra.mxu0 0.0
    %1647 = vmatpush.msra.mxu0 0.0
    %1648 = vmatpush.msra.mxu0 0.0
    %1649 = vmatpush.msra.mxu0 0.0
    %v1650 = vand.u32 %v1409, 4294901760
    %1651 = vmatpush.msra.mxu0 %v1650
    %v1652 = vand.u32 %v1405, 4294901760
    %v1653 = vsub.f32 %v1405, %v1652
    %v1654 = vand.u32 %v1653, 4294901760
    %1655 = vmatmul.f32.gmra.mxu0 %v1654
    %v1656 = vpop.f32.mrf.mxu0
    %v1657 = vadd.f32 %v1633, %v1656
    %1658 = vdwg.mxu0
    %1659 = vmatpush.msra.mxu0 0.0
    %1660 = vmatpush.msra.mxu0 0.0
    %1661 = vmatpush.msra.mxu0 0.0
    %1662 = vmatpush.msra.mxu0 0.0
    %1663 = vmatpush.msra.mxu0 0.0
    %1664 = vmatpush.msra.mxu0 0.0
    %1665 = vmatpush.msra.mxu0 0.0
    %1666 = vmatpush.msra.mxu0 0.0
    %1667 = vmatpush.msra.mxu0 0.0
    %1668 = vmatpush.msra.mxu0 0.0
    %1669 = vmatpush.msra.mxu0 0.0
    %1670 = vmatpush.msra.mxu0 0.0
    %1671 = vmatpush.msra.mxu0 0.0
    %1672 = vmatpush.msra.mxu0 0.0
    %1673 = vmatpush.msra.mxu0 0.0
    %v1674 = vand.u32 %v1409, 4294901760
    %v1675 = vsub.f32 %v1409, %v1674
    %v1676 = vand.u32 %v1675, 4294901760
    %1677 = vmatpush.msra.mxu0 %v1676
    %v1678 = vand.u32 %v1405, 4294901760
    %1679 = vmatmul.f32.gmra.mxu0 %v1678
    %v1680 = vpop.f32.mrf.mxu0
    %v1681 = vadd.f32 %v1657, %v1680
    %1682 = vdwg.mxu0
    %1683 = vmatpush.msra.mxu0 0.0
    %1684 = vmatpush.msra.mxu0 0.0
    %1685 = vmatpush.msra.mxu0 0.0
    %1686 = vmatpush.msra.mxu0 0.0
    %1687 = vmatpush.msra.mxu0 0.0
    %1688 = vmatpush.msra.mxu0 0.0
    %1689 = vmatpush.msra.mxu0 0.0
    %1690 = vmatpush.msra.mxu0 0.0
    %1691 = vmatpush.msra.mxu0 0.0
    %1692 = vmatpush.msra.mxu0 0.0
    %1693 = vmatpush.msra.mxu0 0.0
    %1694 = vmatpush.msra.mxu0 0.0
    %1695 = vmatpush.msra.mxu0 0.0
    %1696 = vmatpush.msra.mxu0 0.0
    %1697 = vmatpush.msra.mxu0 0.0
    %v1698 = vand.u32 %v1409, 4294901760
    %1699 = vmatpush.msra.mxu0 %v1698
    %v1700 = vand.u32 %v1405, 4294901760
    %1701 = vmatmul.f32.gmra.mxu0 %v1700
    %v1702 = vpop.f32.mrf.mxu0
    %v1703 = vadd.f32 %v1681, %v1702
    %1704 = vdwg.mxu0
    %1705 = vmatpush.msra.mxu0 0.0
    %1706 = vmatpush.msra.mxu0 0.0
    %1707 = vmatpush.msra.mxu0 0.0
    %1708 = vmatpush.msra.mxu0 0.0
    %1709 = vmatpush.msra.mxu0 0.0
    %1710 = vmatpush.msra.mxu0 0.0
    %1711 = vmatpush.msra.mxu0 0.0
    %1712 = vmatpush.msra.mxu0 0.0
    %1713 = vmatpush.msra.mxu0 0.0
    %1714 = vmatpush.msra.mxu0 0.0
    %1715 = vmatpush.msra.mxu0 0.0
    %1716 = vmatpush.msra.mxu0 0.0
    %1717 = vmatpush.msra.mxu0 0.0
    %1718 = vmatpush.msra.mxu0 0.0
    %1719 = vmatpush.msra.mxu0 0.0
    %v1720 = vand.u32 %v1411, 4294901760
    %1721 = vmatpush.msra.mxu0 %v1720
    %v1722 = vand.u32 %v1405, 4294901760
    %v1723 = vsub.f32 %v1405, %v1722
    %v1724 = vand.u32 %v1723, 4294901760
    %v1725 = vsub.f32 %v1723, %v1724
    %v1726 = vand.u32 %v1725, 4294901760
    %1727 = vmatmul.f32.gmra.mxu0 %v1726
    %v1728 = vpop.f32.mrf.mxu0
    %v1729 = vadd.f32 0.0, %v1728
    %1730 = vdwg.mxu0
    %1731 = vmatpush.msra.mxu0 0.0
    %1732 = vmatpush.msra.mxu0 0.0
    %1733 = vmatpush.msra.mxu0 0.0
    %1734 = vmatpush.msra.mxu0 0.0
    %1735 = vmatpush.msra.mxu0 0.0
    %1736 = vmatpush.msra.mxu0 0.0
    %1737 = vmatpush.msra.mxu0 0.0
    %1738 = vmatpush.msra.mxu0 0.0
    %1739 = vmatpush.msra.mxu0 0.0
    %1740 = vmatpush.msra.mxu0 0.0
    %1741 = vmatpush.msra.mxu0 0.0
    %1742 = vmatpush.msra.mxu0 0.0
    %1743 = vmatpush.msra.mxu0 0.0
    %1744 = vmatpush.msra.mxu0 0.0
    %1745 = vmatpush.msra.mxu0 0.0
    %v1746 = vand.u32 %v1411, 4294901760
    %v1747 = vsub.f32 %v1411, %v1746
    %v1748 = vand.u32 %v1747, 4294901760
    %v1749 = vsub.f32 %v1747, %v1748
    %v1750 = vand.u32 %v1749, 4294901760
    %1751 = vmatpush.msra.mxu0 %v1750
    %v1752 = vand.u32 %v1405, 4294901760
    %1753 = vmatmul.f32.gmra.mxu0 %v1752
    %v1754 = vpop.f32.mrf.mxu0
    %v1755 = vadd.f32 %v1729, %v1754
    %1756 = vdwg.mxu0
    %1757 = vmatpush.msra.mxu0 0.0
    %1758 = vmatpush.msra.mxu0 0.0
    %1759 = vmatpush.msra.mxu0 0.0
    %1760 = vmatpush.msra.mxu0 0.0
    %1761 = vmatpush.msra.mxu0 0.0
    %1762 = vmatpush.msra.mxu0 0.0
    %1763 = vmatpush.msra.mxu0 0.0
    %1764 = vmatpush.msra.mxu0 0.0
    %1765 = vmatpush.msra.mxu0 0.0
    %1766 = vmatpush.msra.mxu0 0.0
    %1767 = vmatpush.msra.mxu0 0.0
    %1768 = vmatpush.msra.mxu0 0.0
    %1769 = vmatpush.msra.mxu0 0.0
    %1770 = vmatpush.msra.mxu0 0.0
    %1771 = vmatpush.msra.mxu0 0.0
    %v1772 = vand.u32 %v1411, 4294901760
    %v1773 = vsub.f32 %v1411, %v1772
    %1774 = vmatpush.msra.mxu0 %v1773
    %v1775 = vand.u32 %v1405, 4294901760
    %v1776 = vsub.f32 %v1405, %v1775
    %1777 = vmatmul.f32.gmra.mxu0 %v1776
    %v1778 = vpop.f32.mrf.mxu0
    %v1779 = vadd.f32 %v1755, %v1778
    %1780 = vdwg.mxu0
    %1781 = vmatpush.msra.mxu0 0.0
    %1782 = vmatpush.msra.mxu0 0.0
    %1783 = vmatpush.msra.mxu0 0.0
    %1784 = vmatpush.msra.mxu0 0.0
    %1785 = vmatpush.msra.mxu0 0.0
    %1786 = vmatpush.msra.mxu0 0.0
    %1787 = vmatpush.msra.mxu0 0.0
    %1788 = vmatpush.msra.mxu0 0.0
    %1789 = vmatpush.msra.mxu0 0.0
    %1790 = vmatpush.msra.mxu0 0.0
    %1791 = vmatpush.msra.mxu0 0.0
    %1792 = vmatpush.msra.mxu0 0.0
    %1793 = vmatpush.msra.mxu0 0.0
    %1794 = vmatpush.msra.mxu0 0.0
    %1795 = vmatpush.msra.mxu0 0.0
    %v1796 = vand.u32 %v1411, 4294901760
    %1797 = vmatpush.msra.mxu0 %v1796
    %v1798 = vand.u32 %v1405, 4294901760
    %v1799 = vsub.f32 %v1405, %v1798
    %v1800 = vand.u32 %v1799, 4294901760
    %1801 = vmatmul.f32.gmra.mxu0 %v1800
    %v1802 = vpop.f32.mrf.mxu0
    %v1803 = vadd.f32 %v1779, %v1802
    %1804 = vdwg.mxu0
    %1805 = vmatpush.msra.mxu0 0.0
    %1806 = vmatpush.msra.mxu0 0.0
    %1807 = vmatpush.msra.mxu0 0.0
    %1808 = vmatpush.msra.mxu0 0.0
    %1809 = vmatpush.msra.mxu0 0.0
    %1810 = vmatpush.msra.mxu0 0.0
    %1811 = vmatpush.msra.mxu0 0.0
    %1812 = vmatpush.msra.mxu0 0.0
    %1813 = vmatpush.msra.mxu0 0.0
    %1814 = vmatpush.msra.mxu0 0.0
    %1815 = vmatpush.msra.mxu0 0.0
    %1816 = vmatpush.msra.mxu0 0.0
    %1817 = vmatpush.msra.mxu0 0.0
    %1818 = vmatpush.msra.mxu0 0.0
    %1819 = vmatpush.msra.mxu0 0.0
    %v1820 = vand.u32 %v1411, 4294901760
    %v1821 = vsub.f32 %v1411, %v1820
    %v1822 = vand.u32 %v1821, 4294901760
    %1823 = vmatpush.msra.mxu0 %v1822
    %v1824 = vand.u32 %v1405, 4294901760
    %1825 = vmatmul.f32.gmra.mxu0 %v1824
    %v1826 = vpop.f32.mrf.mxu0
    %v1827 = vadd.f32 %v1803, %v1826
    %1828 = vdwg.mxu0
    %1829 = vmatpush.msra.mxu0 0.0
    %1830 = vmatpush.msra.mxu0 0.0
    %1831 = vmatpush.msra.mxu0 0.0
    %1832 = vmatpush.msra.mxu0 0.0
    %1833 = vmatpush.msra.mxu0 0.0
    %1834 = vmatpush.msra.mxu0 0.0
    %1835 = vmatpush.msra.mxu0 0.0
    %1836 = vmatpush.msra.mxu0 0.0
    %1837 = vmatpush.msra.mxu0 0.0
    %1838 = vmatpush.msra.mxu0 0.0
    %1839 = vmatpush.msra.mxu0 0.0
    %1840 = vmatpush.msra.mxu0 0.0
    %1841 = vmatpush.msra.mxu0 0.0
    %1842 = vmatpush.msra.mxu0 0.0
    %1843 = vmatpush.msra.mxu0 0.0
    %v1844 = vand.u32 %v1411, 4294901760
    %1845 = vmatpush.msra.mxu0 %v1844
    %v1846 = vand.u32 %v1405, 4294901760
    %1847 = vmatmul.f32.gmra.mxu0 %v1846
    %v1848 = vpop.f32.mrf.mxu0
    %v1849 = vadd.f32 %v1827, %v1848
    %1850 = vdwg.mxu0
    %v1851 = vadd.f32 %v1392, %v1557
    %v1852 = vadd.f32 %v1393, %v1703
    %v1853 = vadd.f32 %v1394, %v1849
    %1854 = vrot.lane.b32.xlu0 %v15, 107
    %v1855 = vpop.permute.xlu0 %1854
    %1856 = vrot.lane.b32.xlu0 %v16, 107
    %v1857 = vpop.permute.xlu0 %1856
    %1858 = vrot.lane.b32.xlu0 %v17, 107
    %v1859 = vpop.permute.xlu0 %1858
    %vm1860 = vcmask 875520
    %v1861 = vsel %vm1860, %v1855, %v1857
    %v1862 = vsel %vm1860, %v1857, %v1859
    %v1864 = vsel %vm40, %v23, 0
    %v1866 = vsel %vm44, %v1861, 0
    %v1868 = vsel %vm44, %v1862, 0
    %v1870 = vsel %vm44, %v1859, 0
    %1872 = vmatpush.msra.mxu0 0.0
    %1873 = vmatpush.msra.mxu0 0.0
    %1874 = vmatpush.msra.mxu0 0.0
    %1875 = vmatpush.msra.mxu0 0.0
    %1876 = vmatpush.msra.mxu0 0.0
    %1877 = vmatpush.msra.mxu0 0.0
    %1878 = vmatpush.msra.mxu0 0.0
    %1879 = vmatpush.msra.mxu0 0.0
    %1880 = vmatpush.msra.mxu0 0.0
    %1881 = vmatpush.msra.mxu0 0.0
    %1882 = vmatpush.msra.mxu0 0.0
    %1883 = vmatpush.msra.mxu0 0.0
    %1884 = vmatpush.msra.mxu0 0.0
    %1885 = vmatpush.msra.mxu0 0.0
    %1886 = vmatpush.msra.mxu0 0.0
    %v1887 = vand.u32 %v1866, 4294901760
    %1888 = vmatpush.msra.mxu0 %v1887
    %v1889 = vand.u32 %v1864, 4294901760
    %v1890 = vsub.f32 %v1864, %v1889
    %v1891 = vand.u32 %v1890, 4294901760
    %v1892 = vsub.f32 %v1890, %v1891
    %v1893 = vand.u32 %v1892, 4294901760
    %1894 = vmatmul.f32.gmra.mxu0 %v1893
    %v1895 = vpop.f32.mrf.mxu0
    %v1896 = vadd.f32 0.0, %v1895
    %1897 = vdwg.mxu0
    %1898 = vmatpush.msra.mxu0 0.0
    %1899 = vmatpush.msra.mxu0 0.0
    %1900 = vmatpush.msra.mxu0 0.0
    %1901 = vmatpush.msra.mxu0 0.0
    %1902 = vmatpush.msra.mxu0 0.0
    %1903 = vmatpush.msra.mxu0 0.0
    %1904 = vmatpush.msra.mxu0 0.0
    %1905 = vmatpush.msra.mxu0 0.0
    %1906 = vmatpush.msra.mxu0 0.0
    %1907 = vmatpush.msra.mxu0 0.0
    %1908 = vmatpush.msra.mxu0 0.0
    %1909 = vmatpush.msra.mxu0 0.0
    %1910 = vmatpush.msra.mxu0 0.0
    %1911 = vmatpush.msra.mxu0 0.0
    %1912 = vmatpush.msra.mxu0 0.0
    %v1913 = vand.u32 %v1866, 4294901760
    %v1914 = vsub.f32 %v1866, %v1913
    %v1915 = vand.u32 %v1914, 4294901760
    %v1916 = vsub.f32 %v1914, %v1915
    %v1917 = vand.u32 %v1916, 4294901760
    %1918 = vmatpush.msra.mxu0 %v1917
    %v1919 = vand.u32 %v1864, 4294901760
    %1920 = vmatmul.f32.gmra.mxu0 %v1919
    %v1921 = vpop.f32.mrf.mxu0
    %v1922 = vadd.f32 %v1896, %v1921
    %1923 = vdwg.mxu0
    %1924 = vmatpush.msra.mxu0 0.0
    %1925 = vmatpush.msra.mxu0 0.0
    %1926 = vmatpush.msra.mxu0 0.0
    %1927 = vmatpush.msra.mxu0 0.0
    %1928 = vmatpush.msra.mxu0 0.0
    %1929 = vmatpush.msra.mxu0 0.0
    %1930 = vmatpush.msra.mxu0 0.0
    %1931 = vmatpush.msra.mxu0 0.0
    %1932 = vmatpush.msra.mxu0 0.0
    %1933 = vmatpush.msra.mxu0 0.0
    %1934 = vmatpush.msra.mxu0 0.0
    %1935 = vmatpush.msra.mxu0 0.0
    %1936 = vmatpush.msra.mxu0 0.0
    %1937 = vmatpush.msra.mxu0 0.0
    %1938 = vmatpush.msra.mxu0 0.0
    %v1939 = vand.u32 %v1866, 4294901760
    %v1940 = vsub.f32 %v1866, %v1939
    %1941 = vmatpush.msra.mxu0 %v1940
    %v1942 = vand.u32 %v1864, 4294901760
    %v1943 = vsub.f32 %v1864, %v1942
    %1944 = vmatmul.f32.gmra.mxu0 %v1943
    %v1945 = vpop.f32.mrf.mxu0
    %v1946 = vadd.f32 %v1922, %v1945
    %1947 = vdwg.mxu0
    %1948 = vmatpush.msra.mxu0 0.0
    %1949 = vmatpush.msra.mxu0 0.0
    %1950 = vmatpush.msra.mxu0 0.0
    %1951 = vmatpush.msra.mxu0 0.0
    %1952 = vmatpush.msra.mxu0 0.0
    %1953 = vmatpush.msra.mxu0 0.0
    %1954 = vmatpush.msra.mxu0 0.0
    %1955 = vmatpush.msra.mxu0 0.0
    %1956 = vmatpush.msra.mxu0 0.0
    %1957 = vmatpush.msra.mxu0 0.0
    %1958 = vmatpush.msra.mxu0 0.0
    %1959 = vmatpush.msra.mxu0 0.0
    %1960 = vmatpush.msra.mxu0 0.0
    %1961 = vmatpush.msra.mxu0 0.0
    %1962 = vmatpush.msra.mxu0 0.0
    %v1963 = vand.u32 %v1866, 4294901760
    %1964 = vmatpush.msra.mxu0 %v1963
    %v1965 = vand.u32 %v1864, 4294901760
    %v1966 = vsub.f32 %v1864, %v1965
    %v1967 = vand.u32 %v1966, 4294901760
    %1968 = vmatmul.f32.gmra.mxu0 %v1967
    %v1969 = vpop.f32.mrf.mxu0
    %v1970 = vadd.f32 %v1946, %v1969
    %1971 = vdwg.mxu0
    %1972 = vmatpush.msra.mxu0 0.0
    %1973 = vmatpush.msra.mxu0 0.0
    %1974 = vmatpush.msra.mxu0 0.0
    %1975 = vmatpush.msra.mxu0 0.0
    %1976 = vmatpush.msra.mxu0 0.0
    %1977 = vmatpush.msra.mxu0 0.0
    %1978 = vmatpush.msra.mxu0 0.0
    %1979 = vmatpush.msra.mxu0 0.0
    %1980 = vmatpush.msra.mxu0 0.0
    %1981 = vmatpush.msra.mxu0 0.0
    %1982 = vmatpush.msra.mxu0 0.0
    %1983 = vmatpush.msra.mxu0 0.0
    %1984 = vmatpush.msra.mxu0 0.0
    %1985 = vmatpush.msra.mxu0 0.0
    %1986 = vmatpush.msra.mxu0 0.0
    %v1987 = vand.u32 %v1866, 4294901760
    %v1988 = vsub.f32 %v1866, %v1987
    %v1989 = vand.u32 %v1988, 4294901760
    %1990 = vmatpush.msra.mxu0 %v1989
    %v1991 = vand.u32 %v1864, 4294901760
    %1992 = vmatmul.f32.gmra.mxu0 %v1991
    %v1993 = vpop.f32.mrf.mxu0
    %v1994 = vadd.f32 %v1970, %v1993
    %1995 = vdwg.mxu0
    %1996 = vmatpush.msra.mxu0 0.0
    %1997 = vmatpush.msra.mxu0 0.0
    %1998 = vmatpush.msra.mxu0 0.0
    %1999 = vmatpush.msra.mxu0 0.0
    %2000 = vmatpush.msra.mxu0 0.0
    %2001 = vmatpush.msra.mxu0 0.0
    %2002 = vmatpush.msra.mxu0 0.0
    %2003 = vmatpush.msra.mxu0 0.0
    %2004 = vmatpush.msra.mxu0 0.0
    %2005 = vmatpush.msra.mxu0 0.0
    %2006 = vmatpush.msra.mxu0 0.0
    %2007 = vmatpush.msra.mxu0 0.0
    %2008 = vmatpush.msra.mxu0 0.0
    %2009 = vmatpush.msra.mxu0 0.0
    %2010 = vmatpush.msra.mxu0 0.0
    %v2011 = vand.u32 %v1866, 4294901760
    %2012 = vmatpush.msra.mxu0 %v2011
    %v2013 = vand.u32 %v1864, 4294901760
    %2014 = vmatmul.f32.gmra.mxu0 %v2013
    %v2015 = vpop.f32.mrf.mxu0
    %v2016 = vadd.f32 %v1994, %v2015
    %2017 = vdwg.mxu0
    %2018 = vmatpush.msra.mxu0 0.0
    %2019 = vmatpush.msra.mxu0 0.0
    %2020 = vmatpush.msra.mxu0 0.0
    %2021 = vmatpush.msra.mxu0 0.0
    %2022 = vmatpush.msra.mxu0 0.0
    %2023 = vmatpush.msra.mxu0 0.0
    %2024 = vmatpush.msra.mxu0 0.0
    %2025 = vmatpush.msra.mxu0 0.0
    %2026 = vmatpush.msra.mxu0 0.0
    %2027 = vmatpush.msra.mxu0 0.0
    %2028 = vmatpush.msra.mxu0 0.0
    %2029 = vmatpush.msra.mxu0 0.0
    %2030 = vmatpush.msra.mxu0 0.0
    %2031 = vmatpush.msra.mxu0 0.0
    %2032 = vmatpush.msra.mxu0 0.0
    %v2033 = vand.u32 %v1868, 4294901760
    %2034 = vmatpush.msra.mxu0 %v2033
    %v2035 = vand.u32 %v1864, 4294901760
    %v2036 = vsub.f32 %v1864, %v2035
    %v2037 = vand.u32 %v2036, 4294901760
    %v2038 = vsub.f32 %v2036, %v2037
    %v2039 = vand.u32 %v2038, 4294901760
    %2040 = vmatmul.f32.gmra.mxu0 %v2039
    %v2041 = vpop.f32.mrf.mxu0
    %v2042 = vadd.f32 0.0, %v2041
    %2043 = vdwg.mxu0
    %2044 = vmatpush.msra.mxu0 0.0
    %2045 = vmatpush.msra.mxu0 0.0
    %2046 = vmatpush.msra.mxu0 0.0
    %2047 = vmatpush.msra.mxu0 0.0
    %2048 = vmatpush.msra.mxu0 0.0
    %2049 = vmatpush.msra.mxu0 0.0
    %2050 = vmatpush.msra.mxu0 0.0
    %2051 = vmatpush.msra.mxu0 0.0
    %2052 = vmatpush.msra.mxu0 0.0
    %2053 = vmatpush.msra.mxu0 0.0
    %2054 = vmatpush.msra.mxu0 0.0
    %2055 = vmatpush.msra.mxu0 0.0
    %2056 = vmatpush.msra.mxu0 0.0
    %2057 = vmatpush.msra.mxu0 0.0
    %2058 = vmatpush.msra.mxu0 0.0
    %v2059 = vand.u32 %v1868, 4294901760
    %v2060 = vsub.f32 %v1868, %v2059
    %v2061 = vand.u32 %v2060, 4294901760
    %v2062 = vsub.f32 %v2060, %v2061
    %v2063 = vand.u32 %v2062, 4294901760
    %2064 = vmatpush.msra.mxu0 %v2063
    %v2065 = vand.u32 %v1864, 4294901760
    %2066 = vmatmul.f32.gmra.mxu0 %v2065
    %v2067 = vpop.f32.mrf.mxu0
    %v2068 = vadd.f32 %v2042, %v2067
    %2069 = vdwg.mxu0
    %2070 = vmatpush.msra.mxu0 0.0
    %2071 = vmatpush.msra.mxu0 0.0
    %2072 = vmatpush.msra.mxu0 0.0
    %2073 = vmatpush.msra.mxu0 0.0
    %2074 = vmatpush.msra.mxu0 0.0
    %2075 = vmatpush.msra.mxu0 0.0
    %2076 = vmatpush.msra.mxu0 0.0
    %2077 = vmatpush.msra.mxu0 0.0
    %2078 = vmatpush.msra.mxu0 0.0
    %2079 = vmatpush.msra.mxu0 0.0
    %2080 = vmatpush.msra.mxu0 0.0
    %2081 = vmatpush.msra.mxu0 0.0
    %2082 = vmatpush.msra.mxu0 0.0
    %2083 = vmatpush.msra.mxu0 0.0
    %2084 = vmatpush.msra.mxu0 0.0
    %v2085 = vand.u32 %v1868, 4294901760
    %v2086 = vsub.f32 %v1868, %v2085
    %2087 = vmatpush.msra.mxu0 %v2086
    %v2088 = vand.u32 %v1864, 4294901760
    %v2089 = vsub.f32 %v1864, %v2088
    %2090 = vmatmul.f32.gmra.mxu0 %v2089
    %v2091 = vpop.f32.mrf.mxu0
    %v2092 = vadd.f32 %v2068, %v2091
    %2093 = vdwg.mxu0
    %2094 = vmatpush.msra.mxu0 0.0
    %2095 = vmatpush.msra.mxu0 0.0
    %2096 = vmatpush.msra.mxu0 0.0
    %2097 = vmatpush.msra.mxu0 0.0
    %2098 = vmatpush.msra.mxu0 0.0
    %2099 = vmatpush.msra.mxu0 0.0
    %2100 = vmatpush.msra.mxu0 0.0
    %2101 = vmatpush.msra.mxu0 0.0
    %2102 = vmatpush.msra.mxu0 0.0
    %2103 = vmatpush.msra.mxu0 0.0
    %2104 = vmatpush.msra.mxu0 0.0
    %2105 = vmatpush.msra.mxu0 0.0
    %2106 = vmatpush.msra.mxu0 0.0
    %2107 = vmatpush.msra.mxu0 0.0
    %2108 = vmatpush.msra.mxu0 0.0
    %v2109 = vand.u32 %v1868, 4294901760
    %2110 = vmatpush.msra.mxu0 %v2109
    %v2111 = vand.u32 %v1864, 4294901760
    %v2112 = vsub.f32 %v1864, %v2111
    %v2113 = vand.u32 %v2112, 4294901760
    %2114 = vmatmul.f32.gmra.mxu0 %v2113
    %v2115 = vpop.f32.mrf.mxu0
    %v2116 = vadd.f32 %v2092, %v2115
    %2117 = vdwg.mxu0
    %2118 = vmatpush.msra.mxu0 0.0
    %2119 = vmatpush.msra.mxu0 0.0
    %2120 = vmatpush.msra.mxu0 0.0
    %2121 = vmatpush.msra.mxu0 0.0
    %2122 = vmatpush.msra.mxu0 0.0
    %2123 = vmatpush.msra.mxu0 0.0
    %2124 = vmatpush.msra.mxu0 0.0
    %2125 = vmatpush.msra.mxu0 0.0
    %2126 = vmatpush.msra.mxu0 0.0
    %2127 = vmatpush.msra.mxu0 0.0
    %2128 = vmatpush.msra.mxu0 0.0
    %2129 = vmatpush.msra.mxu0 0.0
    %2130 = vmatpush.msra.mxu0 0.0
    %2131 = vmatpush.msra.mxu0 0.0
    %2132 = vmatpush.msra.mxu0 0.0
    %v2133 = vand.u32 %v1868, 4294901760
    %v2134 = vsub.f32 %v1868, %v2133
    %v2135 = vand.u32 %v2134, 4294901760
    %2136 = vmatpush.msra.mxu0 %v2135
    %v2137 = vand.u32 %v1864, 4294901760
    %2138 = vmatmul.f32.gmra.mxu0 %v2137
    %v2139 = vpop.f32.mrf.mxu0
    %v2140 = vadd.f32 %v2116, %v2139
    %2141 = vdwg.mxu0
    %2142 = vmatpush.msra.mxu0 0.0
    %2143 = vmatpush.msra.mxu0 0.0
    %2144 = vmatpush.msra.mxu0 0.0
    %2145 = vmatpush.msra.mxu0 0.0
    %2146 = vmatpush.msra.mxu0 0.0
    %2147 = vmatpush.msra.mxu0 0.0
    %2148 = vmatpush.msra.mxu0 0.0
    %2149 = vmatpush.msra.mxu0 0.0
    %2150 = vmatpush.msra.mxu0 0.0
    %2151 = vmatpush.msra.mxu0 0.0
    %2152 = vmatpush.msra.mxu0 0.0
    %2153 = vmatpush.msra.mxu0 0.0
    %2154 = vmatpush.msra.mxu0 0.0
    %2155 = vmatpush.msra.mxu0 0.0
    %2156 = vmatpush.msra.mxu0 0.0
    %v2157 = vand.u32 %v1868, 4294901760
    %2158 = vmatpush.msra.mxu0 %v2157
    %v2159 = vand.u32 %v1864, 4294901760
    %2160 = vmatmul.f32.gmra.mxu0 %v2159
    %v2161 = vpop.f32.mrf.mxu0
    %v2162 = vadd.f32 %v2140, %v2161
    %2163 = vdwg.mxu0
    %2164 = vmatpush.msra.mxu0 0.0
    %2165 = vmatpush.msra.mxu0 0.0
    %2166 = vmatpush.msra.mxu0 0.0
    %2167 = vmatpush.msra.mxu0 0.0
    %2168 = vmatpush.msra.mxu0 0.0
    %2169 = vmatpush.msra.mxu0 0.0
    %2170 = vmatpush.msra.mxu0 0.0
    %2171 = vmatpush.msra.mxu0 0.0
    %2172 = vmatpush.msra.mxu0 0.0
    %2173 = vmatpush.msra.mxu0 0.0
    %2174 = vmatpush.msra.mxu0 0.0
    %2175 = vmatpush.msra.mxu0 0.0
    %2176 = vmatpush.msra.mxu0 0.0
    %2177 = vmatpush.msra.mxu0 0.0
    %2178 = vmatpush.msra.mxu0 0.0
    %v2179 = vand.u32 %v1870, 4294901760
    %2180 = vmatpush.msra.mxu0 %v2179
    %v2181 = vand.u32 %v1864, 4294901760
    %v2182 = vsub.f32 %v1864, %v2181
    %v2183 = vand.u32 %v2182, 4294901760
    %v2184 = vsub.f32 %v2182, %v2183
    %v2185 = vand.u32 %v2184, 4294901760
    %2186 = vmatmul.f32.gmra.mxu0 %v2185
    %v2187 = vpop.f32.mrf.mxu0
    %v2188 = vadd.f32 0.0, %v2187
    %2189 = vdwg.mxu0
    %2190 = vmatpush.msra.mxu0 0.0
    %2191 = vmatpush.msra.mxu0 0.0
    %2192 = vmatpush.msra.mxu0 0.0
    %2193 = vmatpush.msra.mxu0 0.0
    %2194 = vmatpush.msra.mxu0 0.0
    %2195 = vmatpush.msra.mxu0 0.0
    %2196 = vmatpush.msra.mxu0 0.0
    %2197 = vmatpush.msra.mxu0 0.0
    %2198 = vmatpush.msra.mxu0 0.0
    %2199 = vmatpush.msra.mxu0 0.0
    %2200 = vmatpush.msra.mxu0 0.0
    %2201 = vmatpush.msra.mxu0 0.0
    %2202 = vmatpush.msra.mxu0 0.0
    %2203 = vmatpush.msra.mxu0 0.0
    %2204 = vmatpush.msra.mxu0 0.0
    %v2205 = vand.u32 %v1870, 4294901760
    %v2206 = vsub.f32 %v1870, %v2205
    %v2207 = vand.u32 %v2206, 4294901760
    %v2208 = vsub.f32 %v2206, %v2207
    %v2209 = vand.u32 %v2208, 4294901760
    %2210 = vmatpush.msra.mxu0 %v2209
    %v2211 = vand.u32 %v1864, 4294901760
    %2212 = vmatmul.f32.gmra.mxu0 %v2211
    %v2213 = vpop.f32.mrf.mxu0
    %v2214 = vadd.f32 %v2188, %v2213
    %2215 = vdwg.mxu0
    %2216 = vmatpush.msra.mxu0 0.0
    %2217 = vmatpush.msra.mxu0 0.0
    %2218 = vmatpush.msra.mxu0 0.0
    %2219 = vmatpush.msra.mxu0 0.0
    %2220 = vmatpush.msra.mxu0 0.0
    %2221 = vmatpush.msra.mxu0 0.0
    %2222 = vmatpush.msra.mxu0 0.0
    %2223 = vmatpush.msra.mxu0 0.0
    %2224 = vmatpush.msra.mxu0 0.0
    %2225 = vmatpush.msra.mxu0 0.0
    %2226 = vmatpush.msra.mxu0 0.0
    %2227 = vmatpush.msra.mxu0 0.0
    %2228 = vmatpush.msra.mxu0 0.0
    %2229 = vmatpush.msra.mxu0 0.0
    %2230 = vmatpush.msra.mxu0 0.0
    %v2231 = vand.u32 %v1870, 4294901760
    %v2232 = vsub.f32 %v1870, %v2231
    %2233 = vmatpush.msra.mxu0 %v2232
    %v2234 = vand.u32 %v1864, 4294901760
    %v2235 = vsub.f32 %v1864, %v2234
    %2236 = vmatmul.f32.gmra.mxu0 %v2235
    %v2237 = vpop.f32.mrf.mxu0
    %v2238 = vadd.f32 %v2214, %v2237
    %2239 = vdwg.mxu0
    %2240 = vmatpush.msra.mxu0 0.0
    %2241 = vmatpush.msra.mxu0 0.0
    %2242 = vmatpush.msra.mxu0 0.0
    %2243 = vmatpush.msra.mxu0 0.0
    %2244 = vmatpush.msra.mxu0 0.0
    %2245 = vmatpush.msra.mxu0 0.0
    %2246 = vmatpush.msra.mxu0 0.0
    %2247 = vmatpush.msra.mxu0 0.0
    %2248 = vmatpush.msra.mxu0 0.0
    %2249 = vmatpush.msra.mxu0 0.0
    %2250 = vmatpush.msra.mxu0 0.0
    %2251 = vmatpush.msra.mxu0 0.0
    %2252 = vmatpush.msra.mxu0 0.0
    %2253 = vmatpush.msra.mxu0 0.0
    %2254 = vmatpush.msra.mxu0 0.0
    %v2255 = vand.u32 %v1870, 4294901760
    %2256 = vmatpush.msra.mxu0 %v2255
    %v2257 = vand.u32 %v1864, 4294901760
    %v2258 = vsub.f32 %v1864, %v2257
    %v2259 = vand.u32 %v2258, 4294901760
    %2260 = vmatmul.f32.gmra.mxu0 %v2259
    %v2261 = vpop.f32.mrf.mxu0
    %v2262 = vadd.f32 %v2238, %v2261
    %2263 = vdwg.mxu0
    %2264 = vmatpush.msra.mxu0 0.0
    %2265 = vmatpush.msra.mxu0 0.0
    %2266 = vmatpush.msra.mxu0 0.0
    %2267 = vmatpush.msra.mxu0 0.0
    %2268 = vmatpush.msra.mxu0 0.0
    %2269 = vmatpush.msra.mxu0 0.0
    %2270 = vmatpush.msra.mxu0 0.0
    %2271 = vmatpush.msra.mxu0 0.0
    %2272 = vmatpush.msra.mxu0 0.0
    %2273 = vmatpush.msra.mxu0 0.0
    %2274 = vmatpush.msra.mxu0 0.0
    %2275 = vmatpush.msra.mxu0 0.0
    %2276 = vmatpush.msra.mxu0 0.0
    %2277 = vmatpush.msra.mxu0 0.0
    %2278 = vmatpush.msra.mxu0 0.0
    %v2279 = vand.u32 %v1870, 4294901760
    %v2280 = vsub.f32 %v1870, %v2279
    %v2281 = vand.u32 %v2280, 4294901760
    %2282 = vmatpush.msra.mxu0 %v2281
    %v2283 = vand.u32 %v1864, 4294901760
    %2284 = vmatmul.f32.gmra.mxu0 %v2283
    %v2285 = vpop.f32.mrf.mxu0
    %v2286 = vadd.f32 %v2262, %v2285
    %2287 = vdwg.mxu0
    %2288 = vmatpush.msra.mxu0 0.0
    %2289 = vmatpush.msra.mxu0 0.0
    %2290 = vmatpush.msra.mxu0 0.0
    %2291 = vmatpush.msra.mxu0 0.0
    %2292 = vmatpush.msra.mxu0 0.0
    %2293 = vmatpush.msra.mxu0 0.0
    %2294 = vmatpush.msra.mxu0 0.0
    %2295 = vmatpush.msra.mxu0 0.0
    %2296 = vmatpush.msra.mxu0 0.0
    %2297 = vmatpush.msra.mxu0 0.0
    %2298 = vmatpush.msra.mxu0 0.0
    %2299 = vmatpush.msra.mxu0 0.0
    %2300 = vmatpush.msra.mxu0 0.0
    %2301 = vmatpush.msra.mxu0 0.0
    %2302 = vmatpush.msra.mxu0 0.0
    %v2303 = vand.u32 %v1870, 4294901760
    %2304 = vmatpush.msra.mxu0 %v2303
    %v2305 = vand.u32 %v1864, 4294901760
    %2306 = vmatmul.f32.gmra.mxu0 %v2305
    %v2307 = vpop.f32.mrf.mxu0
    %v2308 = vadd.f32 %v2286, %v2307
    %2309 = vdwg.mxu0
    %v2310 = vadd.f32 %v1851, %v2016
    %v2311 = vadd.f32 %v1852, %v2162
    %v2312 = vadd.f32 %v1853, %v2308
    %2313 = vrot.lane.b32.xlu0 %v15, 106
    %v2314 = vpop.permute.xlu0 %2313
    %2315 = vrot.lane.b32.xlu0 %v16, 106
    %v2316 = vpop.permute.xlu0 %2315
    %2317 = vrot.lane.b32.xlu0 %v17, 106
    %v2318 = vpop.permute.xlu0 %2317
    %vm2319 = vcmask 867328
    %v2320 = vsel %vm2319, %v2314, %v2316
    %v2321 = vsel %vm2319, %v2316, %v2318
    %v2323 = vsel %vm40, %v24, 0
    %v2325 = vsel %vm44, %v2320, 0
    %v2327 = vsel %vm44, %v2321, 0
    %v2329 = vsel %vm44, %v2318, 0
    %2331 = vmatpush.msra.mxu0 0.0
    %2332 = vmatpush.msra.mxu0 0.0
    %2333 = vmatpush.msra.mxu0 0.0
    %2334 = vmatpush.msra.mxu0 0.0
    %2335 = vmatpush.msra.mxu0 0.0
    %2336 = vmatpush.msra.mxu0 0.0
    %2337 = vmatpush.msra.mxu0 0.0
    %2338 = vmatpush.msra.mxu0 0.0
    %2339 = vmatpush.msra.mxu0 0.0
    %2340 = vmatpush.msra.mxu0 0.0
    %2341 = vmatpush.msra.mxu0 0.0
    %2342 = vmatpush.msra.mxu0 0.0
    %2343 = vmatpush.msra.mxu0 0.0
    %2344 = vmatpush.msra.mxu0 0.0
    %2345 = vmatpush.msra.mxu0 0.0
    %v2346 = vand.u32 %v2325, 4294901760
    %2347 = vmatpush.msra.mxu0 %v2346
    %v2348 = vand.u32 %v2323, 4294901760
    %v2349 = vsub.f32 %v2323, %v2348
    %v2350 = vand.u32 %v2349, 4294901760
    %v2351 = vsub.f32 %v2349, %v2350
    %v2352 = vand.u32 %v2351, 4294901760
    %2353 = vmatmul.f32.gmra.mxu0 %v2352
    %v2354 = vpop.f32.mrf.mxu0
    %v2355 = vadd.f32 0.0, %v2354
    %2356 = vdwg.mxu0
    %2357 = vmatpush.msra.mxu0 0.0
    %2358 = vmatpush.msra.mxu0 0.0
    %2359 = vmatpush.msra.mxu0 0.0
    %2360 = vmatpush.msra.mxu0 0.0
    %2361 = vmatpush.msra.mxu0 0.0
    %2362 = vmatpush.msra.mxu0 0.0
    %2363 = vmatpush.msra.mxu0 0.0
    %2364 = vmatpush.msra.mxu0 0.0
    %2365 = vmatpush.msra.mxu0 0.0
    %2366 = vmatpush.msra.mxu0 0.0
    %2367 = vmatpush.msra.mxu0 0.0
    %2368 = vmatpush.msra.mxu0 0.0
    %2369 = vmatpush.msra.mxu0 0.0
    %2370 = vmatpush.msra.mxu0 0.0
    %2371 = vmatpush.msra.mxu0 0.0
    %v2372 = vand.u32 %v2325, 4294901760
    %v2373 = vsub.f32 %v2325, %v2372
    %v2374 = vand.u32 %v2373, 4294901760
    %v2375 = vsub.f32 %v2373, %v2374
    %v2376 = vand.u32 %v2375, 4294901760
    %2377 = vmatpush.msra.mxu0 %v2376
    %v2378 = vand.u32 %v2323, 4294901760
    %2379 = vmatmul.f32.gmra.mxu0 %v2378
    %v2380 = vpop.f32.mrf.mxu0
    %v2381 = vadd.f32 %v2355, %v2380
    %2382 = vdwg.mxu0
    %2383 = vmatpush.msra.mxu0 0.0
    %2384 = vmatpush.msra.mxu0 0.0
    %2385 = vmatpush.msra.mxu0 0.0
    %2386 = vmatpush.msra.mxu0 0.0
    %2387 = vmatpush.msra.mxu0 0.0
    %2388 = vmatpush.msra.mxu0 0.0
    %2389 = vmatpush.msra.mxu0 0.0
    %2390 = vmatpush.msra.mxu0 0.0
    %2391 = vmatpush.msra.mxu0 0.0
    %2392 = vmatpush.msra.mxu0 0.0
    %2393 = vmatpush.msra.mxu0 0.0
    %2394 = vmatpush.msra.mxu0 0.0
    %2395 = vmatpush.msra.mxu0 0.0
    %2396 = vmatpush.msra.mxu0 0.0
    %2397 = vmatpush.msra.mxu0 0.0
    %v2398 = vand.u32 %v2325, 4294901760
    %v2399 = vsub.f32 %v2325, %v2398
    %2400 = vmatpush.msra.mxu0 %v2399
    %v2401 = vand.u32 %v2323, 4294901760
    %v2402 = vsub.f32 %v2323, %v2401
    %2403 = vmatmul.f32.gmra.mxu0 %v2402
    %v2404 = vpop.f32.mrf.mxu0
    %v2405 = vadd.f32 %v2381, %v2404
    %2406 = vdwg.mxu0
    %2407 = vmatpush.msra.mxu0 0.0
    %2408 = vmatpush.msra.mxu0 0.0
    %2409 = vmatpush.msra.mxu0 0.0
    %2410 = vmatpush.msra.mxu0 0.0
    %2411 = vmatpush.msra.mxu0 0.0
    %2412 = vmatpush.msra.mxu0 0.0
    %2413 = vmatpush.msra.mxu0 0.0
    %2414 = vmatpush.msra.mxu0 0.0
    %2415 = vmatpush.msra.mxu0 0.0
    %2416 = vmatpush.msra.mxu0 0.0
    %2417 = vmatpush.msra.mxu0 0.0
    %2418 = vmatpush.msra.mxu0 0.0
    %2419 = vmatpush.msra.mxu0 0.0
    %2420 = vmatpush.msra.mxu0 0.0
    %2421 = vmatpush.msra.mxu0 0.0
    %v2422 = vand.u32 %v2325, 4294901760
    %2423 = vmatpush.msra.mxu0 %v2422
    %v2424 = vand.u32 %v2323, 4294901760
    %v2425 = vsub.f32 %v2323, %v2424
    %v2426 = vand.u32 %v2425, 4294901760
    %2427 = vmatmul.f32.gmra.mxu0 %v2426
    %v2428 = vpop.f32.mrf.mxu0
    %v2429 = vadd.f32 %v2405, %v2428
    %2430 = vdwg.mxu0
    %2431 = vmatpush.msra.mxu0 0.0
    %2432 = vmatpush.msra.mxu0 0.0
    %2433 = vmatpush.msra.mxu0 0.0
    %2434 = vmatpush.msra.mxu0 0.0
    %2435 = vmatpush.msra.mxu0 0.0
    %2436 = vmatpush.msra.mxu0 0.0
    %2437 = vmatpush.msra.mxu0 0.0
    %2438 = vmatpush.msra.mxu0 0.0
    %2439 = vmatpush.msra.mxu0 0.0
    %2440 = vmatpush.msra.mxu0 0.0
    %2441 = vmatpush.msra.mxu0 0.0
    %2442 = vmatpush.msra.mxu0 0.0
    %2443 = vmatpush.msra.mxu0 0.0
    %2444 = vmatpush.msra.mxu0 0.0
    %2445 = vmatpush.msra.mxu0 0.0
    %v2446 = vand.u32 %v2325, 4294901760
    %v2447 = vsub.f32 %v2325, %v2446
    %v2448 = vand.u32 %v2447, 4294901760
    %2449 = vmatpush.msra.mxu0 %v2448
    %v2450 = vand.u32 %v2323, 4294901760
    %2451 = vmatmul.f32.gmra.mxu0 %v2450
    %v2452 = vpop.f32.mrf.mxu0
    %v2453 = vadd.f32 %v2429, %v2452
    %2454 = vdwg.mxu0
    %2455 = vmatpush.msra.mxu0 0.0
    %2456 = vmatpush.msra.mxu0 0.0
    %2457 = vmatpush.msra.mxu0 0.0
    %2458 = vmatpush.msra.mxu0 0.0
    %2459 = vmatpush.msra.mxu0 0.0
    %2460 = vmatpush.msra.mxu0 0.0
    %2461 = vmatpush.msra.mxu0 0.0
    %2462 = vmatpush.msra.mxu0 0.0
    %2463 = vmatpush.msra.mxu0 0.0
    %2464 = vmatpush.msra.mxu0 0.0
    %2465 = vmatpush.msra.mxu0 0.0
    %2466 = vmatpush.msra.mxu0 0.0
    %2467 = vmatpush.msra.mxu0 0.0
    %2468 = vmatpush.msra.mxu0 0.0
    %2469 = vmatpush.msra.mxu0 0.0
    %v2470 = vand.u32 %v2325, 4294901760
    %2471 = vmatpush.msra.mxu0 %v2470
    %v2472 = vand.u32 %v2323, 4294901760
    %2473 = vmatmul.f32.gmra.mxu0 %v2472
    %v2474 = vpop.f32.mrf.mxu0
    %v2475 = vadd.f32 %v2453, %v2474
    %2476 = vdwg.mxu0
    %2477 = vmatpush.msra.mxu0 0.0
    %2478 = vmatpush.msra.mxu0 0.0
    %2479 = vmatpush.msra.mxu0 0.0
    %2480 = vmatpush.msra.mxu0 0.0
    %2481 = vmatpush.msra.mxu0 0.0
    %2482 = vmatpush.msra.mxu0 0.0
    %2483 = vmatpush.msra.mxu0 0.0
    %2484 = vmatpush.msra.mxu0 0.0
    %2485 = vmatpush.msra.mxu0 0.0
    %2486 = vmatpush.msra.mxu0 0.0
    %2487 = vmatpush.msra.mxu0 0.0
    %2488 = vmatpush.msra.mxu0 0.0
    %2489 = vmatpush.msra.mxu0 0.0
    %2490 = vmatpush.msra.mxu0 0.0
    %2491 = vmatpush.msra.mxu0 0.0
    %v2492 = vand.u32 %v2327, 4294901760
    %2493 = vmatpush.msra.mxu0 %v2492
    %v2494 = vand.u32 %v2323, 4294901760
    %v2495 = vsub.f32 %v2323, %v2494
    %v2496 = vand.u32 %v2495, 4294901760
    %v2497 = vsub.f32 %v2495, %v2496
    %v2498 = vand.u32 %v2497, 4294901760
    %2499 = vmatmul.f32.gmra.mxu0 %v2498
    %v2500 = vpop.f32.mrf.mxu0
    %v2501 = vadd.f32 0.0, %v2500
    %2502 = vdwg.mxu0
    %2503 = vmatpush.msra.mxu0 0.0
    %2504 = vmatpush.msra.mxu0 0.0
    %2505 = vmatpush.msra.mxu0 0.0
    %2506 = vmatpush.msra.mxu0 0.0
    %2507 = vmatpush.msra.mxu0 0.0
    %2508 = vmatpush.msra.mxu0 0.0
    %2509 = vmatpush.msra.mxu0 0.0
    %2510 = vmatpush.msra.mxu0 0.0
    %2511 = vmatpush.msra.mxu0 0.0
    %2512 = vmatpush.msra.mxu0 0.0
    %2513 = vmatpush.msra.mxu0 0.0
    %2514 = vmatpush.msra.mxu0 0.0
    %2515 = vmatpush.msra.mxu0 0.0
    %2516 = vmatpush.msra.mxu0 0.0
    %2517 = vmatpush.msra.mxu0 0.0
    %v2518 = vand.u32 %v2327, 4294901760
    %v2519 = vsub.f32 %v2327, %v2518
    %v2520 = vand.u32 %v2519, 4294901760
    %v2521 = vsub.f32 %v2519, %v2520
    %v2522 = vand.u32 %v2521, 4294901760
    %2523 = vmatpush.msra.mxu0 %v2522
    %v2524 = vand.u32 %v2323, 4294901760
    %2525 = vmatmul.f32.gmra.mxu0 %v2524
    %v2526 = vpop.f32.mrf.mxu0
    %v2527 = vadd.f32 %v2501, %v2526
    %2528 = vdwg.mxu0
    %2529 = vmatpush.msra.mxu0 0.0
    %2530 = vmatpush.msra.mxu0 0.0
    %2531 = vmatpush.msra.mxu0 0.0
    %2532 = vmatpush.msra.mxu0 0.0
    %2533 = vmatpush.msra.mxu0 0.0
    %2534 = vmatpush.msra.mxu0 0.0
    %2535 = vmatpush.msra.mxu0 0.0
    %2536 = vmatpush.msra.mxu0 0.0
    %2537 = vmatpush.msra.mxu0 0.0
    %2538 = vmatpush.msra.mxu0 0.0
    %2539 = vmatpush.msra.mxu0 0.0
    %2540 = vmatpush.msra.mxu0 0.0
    %2541 = vmatpush.msra.mxu0 0.0
    %2542 = vmatpush.msra.mxu0 0.0
    %2543 = vmatpush.msra.mxu0 0.0
    %v2544 = vand.u32 %v2327, 4294901760
    %v2545 = vsub.f32 %v2327, %v2544
    %2546 = vmatpush.msra.mxu0 %v2545
    %v2547 = vand.u32 %v2323, 4294901760
    %v2548 = vsub.f32 %v2323, %v2547
    %2549 = vmatmul.f32.gmra.mxu0 %v2548
    %v2550 = vpop.f32.mrf.mxu0
    %v2551 = vadd.f32 %v2527, %v2550
    %2552 = vdwg.mxu0
    %2553 = vmatpush.msra.mxu0 0.0
    %2554 = vmatpush.msra.mxu0 0.0
    %2555 = vmatpush.msra.mxu0 0.0
    %2556 = vmatpush.msra.mxu0 0.0
    %2557 = vmatpush.msra.mxu0 0.0
    %2558 = vmatpush.msra.mxu0 0.0
    %2559 = vmatpush.msra.mxu0 0.0
    %2560 = vmatpush.msra.mxu0 0.0
    %2561 = vmatpush.msra.mxu0 0.0
    %2562 = vmatpush.msra.mxu0 0.0
    %2563 = vmatpush.msra.mxu0 0.0
    %2564 = vmatpush.msra.mxu0 0.0
    %2565 = vmatpush.msra.mxu0 0.0
    %2566 = vmatpush.msra.mxu0 0.0
    %2567 = vmatpush.msra.mxu0 0.0
    %v2568 = vand.u32 %v2327, 4294901760
    %2569 = vmatpush.msra.mxu0 %v2568
    %v2570 = vand.u32 %v2323, 4294901760
    %v2571 = vsub.f32 %v2323, %v2570
    %v2572 = vand.u32 %v2571, 4294901760
    %2573 = vmatmul.f32.gmra.mxu0 %v2572
    %v2574 = vpop.f32.mrf.mxu0
    %v2575 = vadd.f32 %v2551, %v2574
    %2576 = vdwg.mxu0
    %2577 = vmatpush.msra.mxu0 0.0
    %2578 = vmatpush.msra.mxu0 0.0
    %2579 = vmatpush.msra.mxu0 0.0
    %2580 = vmatpush.msra.mxu0 0.0
    %2581 = vmatpush.msra.mxu0 0.0
    %2582 = vmatpush.msra.mxu0 0.0
    %2583 = vmatpush.msra.mxu0 0.0
    %2584 = vmatpush.msra.mxu0 0.0
    %2585 = vmatpush.msra.mxu0 0.0
    %2586 = vmatpush.msra.mxu0 0.0
    %2587 = vmatpush.msra.mxu0 0.0
    %2588 = vmatpush.msra.mxu0 0.0
    %2589 = vmatpush.msra.mxu0 0.0
    %2590 = vmatpush.msra.mxu0 0.0
    %2591 = vmatpush.msra.mxu0 0.0
    %v2592 = vand.u32 %v2327, 4294901760
    %v2593 = vsub.f32 %v2327, %v2592
    %v2594 = vand.u32 %v2593, 4294901760
    %2595 = vmatpush.msra.mxu0 %v2594
    %v2596 = vand.u32 %v2323, 4294901760
    %2597 = vmatmul.f32.gmra.mxu0 %v2596
    %v2598 = vpop.f32.mrf.mxu0
    %v2599 = vadd.f32 %v2575, %v2598
    %2600 = vdwg.mxu0
    %2601 = vmatpush.msra.mxu0 0.0
    %2602 = vmatpush.msra.mxu0 0.0
    %2603 = vmatpush.msra.mxu0 0.0
    %2604 = vmatpush.msra.mxu0 0.0
    %2605 = vmatpush.msra.mxu0 0.0
    %2606 = vmatpush.msra.mxu0 0.0
    %2607 = vmatpush.msra.mxu0 0.0
    %2608 = vmatpush.msra.mxu0 0.0
    %2609 = vmatpush.msra.mxu0 0.0
    %2610 = vmatpush.msra.mxu0 0.0
    %2611 = vmatpush.msra.mxu0 0.0
    %2612 = vmatpush.msra.mxu0 0.0
    %2613 = vmatpush.msra.mxu0 0.0
    %2614 = vmatpush.msra.mxu0 0.0
    %2615 = vmatpush.msra.mxu0 0.0
    %v2616 = vand.u32 %v2327, 4294901760
    %2617 = vmatpush.msra.mxu0 %v2616
    %v2618 = vand.u32 %v2323, 4294901760
    %2619 = vmatmul.f32.gmra.mxu0 %v2618
    %v2620 = vpop.f32.mrf.mxu0
    %v2621 = vadd.f32 %v2599, %v2620
    %2622 = vdwg.mxu0
    %2623 = vmatpush.msra.mxu0 0.0
    %2624 = vmatpush.msra.mxu0 0.0
    %2625 = vmatpush.msra.mxu0 0.0
    %2626 = vmatpush.msra.mxu0 0.0
    %2627 = vmatpush.msra.mxu0 0.0
    %2628 = vmatpush.msra.mxu0 0.0
    %2629 = vmatpush.msra.mxu0 0.0
    %2630 = vmatpush.msra.mxu0 0.0
    %2631 = vmatpush.msra.mxu0 0.0
    %2632 = vmatpush.msra.mxu0 0.0
    %2633 = vmatpush.msra.mxu0 0.0
    %2634 = vmatpush.msra.mxu0 0.0
    %2635 = vmatpush.msra.mxu0 0.0
    %2636 = vmatpush.msra.mxu0 0.0
    %2637 = vmatpush.msra.mxu0 0.0
    %v2638 = vand.u32 %v2329, 4294901760
    %2639 = vmatpush.msra.mxu0 %v2638
    %v2640 = vand.u32 %v2323, 4294901760
    %v2641 = vsub.f32 %v2323, %v2640
    %v2642 = vand.u32 %v2641, 4294901760
    %v2643 = vsub.f32 %v2641, %v2642
    %v2644 = vand.u32 %v2643, 4294901760
    %2645 = vmatmul.f32.gmra.mxu0 %v2644
    %v2646 = vpop.f32.mrf.mxu0
    %v2647 = vadd.f32 0.0, %v2646
    %2648 = vdwg.mxu0
    %2649 = vmatpush.msra.mxu0 0.0
    %2650 = vmatpush.msra.mxu0 0.0
    %2651 = vmatpush.msra.mxu0 0.0
    %2652 = vmatpush.msra.mxu0 0.0
    %2653 = vmatpush.msra.mxu0 0.0
    %2654 = vmatpush.msra.mxu0 0.0
    %2655 = vmatpush.msra.mxu0 0.0
    %2656 = vmatpush.msra.mxu0 0.0
    %2657 = vmatpush.msra.mxu0 0.0
    %2658 = vmatpush.msra.mxu0 0.0
    %2659 = vmatpush.msra.mxu0 0.0
    %2660 = vmatpush.msra.mxu0 0.0
    %2661 = vmatpush.msra.mxu0 0.0
    %2662 = vmatpush.msra.mxu0 0.0
    %2663 = vmatpush.msra.mxu0 0.0
    %v2664 = vand.u32 %v2329, 4294901760
    %v2665 = vsub.f32 %v2329, %v2664
    %v2666 = vand.u32 %v2665, 4294901760
    %v2667 = vsub.f32 %v2665, %v2666
    %v2668 = vand.u32 %v2667, 4294901760
    %2669 = vmatpush.msra.mxu0 %v2668
    %v2670 = vand.u32 %v2323, 4294901760
    %2671 = vmatmul.f32.gmra.mxu0 %v2670
    %v2672 = vpop.f32.mrf.mxu0
    %v2673 = vadd.f32 %v2647, %v2672
    %2674 = vdwg.mxu0
    %2675 = vmatpush.msra.mxu0 0.0
    %2676 = vmatpush.msra.mxu0 0.0
    %2677 = vmatpush.msra.mxu0 0.0
    %2678 = vmatpush.msra.mxu0 0.0
    %2679 = vmatpush.msra.mxu0 0.0
    %2680 = vmatpush.msra.mxu0 0.0
    %2681 = vmatpush.msra.mxu0 0.0
    %2682 = vmatpush.msra.mxu0 0.0
    %2683 = vmatpush.msra.mxu0 0.0
    %2684 = vmatpush.msra.mxu0 0.0
    %2685 = vmatpush.msra.mxu0 0.0
    %2686 = vmatpush.msra.mxu0 0.0
    %2687 = vmatpush.msra.mxu0 0.0
    %2688 = vmatpush.msra.mxu0 0.0
    %2689 = vmatpush.msra.mxu0 0.0
    %v2690 = vand.u32 %v2329, 4294901760
    %v2691 = vsub.f32 %v2329, %v2690
    %2692 = vmatpush.msra.mxu0 %v2691
    %v2693 = vand.u32 %v2323, 4294901760
    %v2694 = vsub.f32 %v2323, %v2693
    %2695 = vmatmul.f32.gmra.mxu0 %v2694
    %v2696 = vpop.f32.mrf.mxu0
    %v2697 = vadd.f32 %v2673, %v2696
    %2698 = vdwg.mxu0
    %2699 = vmatpush.msra.mxu0 0.0
    %2700 = vmatpush.msra.mxu0 0.0
    %2701 = vmatpush.msra.mxu0 0.0
    %2702 = vmatpush.msra.mxu0 0.0
    %2703 = vmatpush.msra.mxu0 0.0
    %2704 = vmatpush.msra.mxu0 0.0
    %2705 = vmatpush.msra.mxu0 0.0
    %2706 = vmatpush.msra.mxu0 0.0
    %2707 = vmatpush.msra.mxu0 0.0
    %2708 = vmatpush.msra.mxu0 0.0
    %2709 = vmatpush.msra.mxu0 0.0
    %2710 = vmatpush.msra.mxu0 0.0
    %2711 = vmatpush.msra.mxu0 0.0
    %2712 = vmatpush.msra.mxu0 0.0
    %2713 = vmatpush.msra.mxu0 0.0
    %v2714 = vand.u32 %v2329, 4294901760
    %2715 = vmatpush.msra.mxu0 %v2714
    %v2716 = vand.u32 %v2323, 4294901760
    %v2717 = vsub.f32 %v2323, %v2716
    %v2718 = vand.u32 %v2717, 4294901760
    %2719 = vmatmul.f32.gmra.mxu0 %v2718
    %v2720 = vpop.f32.mrf.mxu0
    %v2721 = vadd.f32 %v2697, %v2720
    %2722 = vdwg.mxu0
    %2723 = vmatpush.msra.mxu0 0.0
    %2724 = vmatpush.msra.mxu0 0.0
    %2725 = vmatpush.msra.mxu0 0.0
    %2726 = vmatpush.msra.mxu0 0.0
    %2727 = vmatpush.msra.mxu0 0.0
    %2728 = vmatpush.msra.mxu0 0.0
    %2729 = vmatpush.msra.mxu0 0.0
    %2730 = vmatpush.msra.mxu0 0.0
    %2731 = vmatpush.msra.mxu0 0.0
    %2732 = vmatpush.msra.mxu0 0.0
    %2733 = vmatpush.msra.mxu0 0.0
    %2734 = vmatpush.msra.mxu0 0.0
    %2735 = vmatpush.msra.mxu0 0.0
    %2736 = vmatpush.msra.mxu0 0.0
    %2737 = vmatpush.msra.mxu0 0.0
    %v2738 = vand.u32 %v2329, 4294901760
    %v2739 = vsub.f32 %v2329, %v2738
    %v2740 = vand.u32 %v2739, 4294901760
    %2741 = vmatpush.msra.mxu0 %v2740
    %v2742 = vand.u32 %v2323, 4294901760
    %2743 = vmatmul.f32.gmra.mxu0 %v2742
    %v2744 = vpop.f32.mrf.mxu0
    %v2745 = vadd.f32 %v2721, %v2744
    %2746 = vdwg.mxu0
    %2747 = vmatpush.msra.mxu0 0.0
    %2748 = vmatpush.msra.mxu0 0.0
    %2749 = vmatpush.msra.mxu0 0.0
    %2750 = vmatpush.msra.mxu0 0.0
    %2751 = vmatpush.msra.mxu0 0.0
    %2752 = vmatpush.msra.mxu0 0.0
    %2753 = vmatpush.msra.mxu0 0.0
    %2754 = vmatpush.msra.mxu0 0.0
    %2755 = vmatpush.msra.mxu0 0.0
    %2756 = vmatpush.msra.mxu0 0.0
    %2757 = vmatpush.msra.mxu0 0.0
    %2758 = vmatpush.msra.mxu0 0.0
    %2759 = vmatpush.msra.mxu0 0.0
    %2760 = vmatpush.msra.mxu0 0.0
    %2761 = vmatpush.msra.mxu0 0.0
    %v2762 = vand.u32 %v2329, 4294901760
    %2763 = vmatpush.msra.mxu0 %v2762
    %v2764 = vand.u32 %v2323, 4294901760
    %2765 = vmatmul.f32.gmra.mxu0 %v2764
    %v2766 = vpop.f32.mrf.mxu0
    %v2767 = vadd.f32 %v2745, %v2766
    %2768 = vdwg.mxu0
    %v2769 = vadd.f32 %v2310, %v2475
    %v2770 = vadd.f32 %v2311, %v2621
    %v2771 = vadd.f32 %v2312, %v2767
    %2773 = vrot.lane.b32.xlu0 %v15, 88
    %v2774 = vpop.permute.xlu0 %2773
    %2775 = vrot.lane.b32.xlu0 %v16, 88
    %v2776 = vpop.permute.xlu0 %2775
    %2777 = vrot.lane.b32.xlu0 %v17, 88
    %v2778 = vpop.permute.xlu0 %2777
    %2779 = vrot.lane.b32.xlu0 %v18, 88
    %v2780 = vpop.permute.xlu0 %2779
    %vm2781 = vcmask 719872
    %v2782 = vsel %vm2781, %v2774, %v2776
    %v2783 = vsel %vm2781, %v2776, %v2778
    %v2784 = vsel %vm2781, %v2778, %v2780
    %v2786 = vsel %vm40, %v25, 0
    %v2788 = vsel %vm44, %v2782, 0
    %v2790 = vsel %vm44, %v2783, 0
    %v2792 = vsel %vm44, %v2784, 0
    %2794 = vmatpush.msra.mxu0 0.0
    %2795 = vmatpush.msra.mxu0 0.0
    %2796 = vmatpush.msra.mxu0 0.0
    %2797 = vmatpush.msra.mxu0 0.0
    %2798 = vmatpush.msra.mxu0 0.0
    %2799 = vmatpush.msra.mxu0 0.0
    %2800 = vmatpush.msra.mxu0 0.0
    %2801 = vmatpush.msra.mxu0 0.0
    %2802 = vmatpush.msra.mxu0 0.0
    %2803 = vmatpush.msra.mxu0 0.0
    %2804 = vmatpush.msra.mxu0 0.0
    %2805 = vmatpush.msra.mxu0 0.0
    %2806 = vmatpush.msra.mxu0 0.0
    %2807 = vmatpush.msra.mxu0 0.0
    %2808 = vmatpush.msra.mxu0 0.0
    %v2809 = vand.u32 %v2788, 4294901760
    %2810 = vmatpush.msra.mxu0 %v2809
    %v2811 = vand.u32 %v2786, 4294901760
    %v2812 = vsub.f32 %v2786, %v2811
    %v2813 = vand.u32 %v2812, 4294901760
    %v2814 = vsub.f32 %v2812, %v2813
    %v2815 = vand.u32 %v2814, 4294901760
    %2816 = vmatmul.f32.gmra.mxu0 %v2815
    %v2817 = vpop.f32.mrf.mxu0
    %v2818 = vadd.f32 0.0, %v2817
    %2819 = vdwg.mxu0
    %2820 = vmatpush.msra.mxu0 0.0
    %2821 = vmatpush.msra.mxu0 0.0
    %2822 = vmatpush.msra.mxu0 0.0
    %2823 = vmatpush.msra.mxu0 0.0
    %2824 = vmatpush.msra.mxu0 0.0
    %2825 = vmatpush.msra.mxu0 0.0
    %2826 = vmatpush.msra.mxu0 0.0
    %2827 = vmatpush.msra.mxu0 0.0
    %2828 = vmatpush.msra.mxu0 0.0
    %2829 = vmatpush.msra.mxu0 0.0
    %2830 = vmatpush.msra.mxu0 0.0
    %2831 = vmatpush.msra.mxu0 0.0
    %2832 = vmatpush.msra.mxu0 0.0
    %2833 = vmatpush.msra.mxu0 0.0
    %2834 = vmatpush.msra.mxu0 0.0
    %v2835 = vand.u32 %v2788, 4294901760
    %v2836 = vsub.f32 %v2788, %v2835
    %v2837 = vand.u32 %v2836, 4294901760
    %v2838 = vsub.f32 %v2836, %v2837
    %v2839 = vand.u32 %v2838, 4294901760
    %2840 = vmatpush.msra.mxu0 %v2839
    %v2841 = vand.u32 %v2786, 4294901760
    %2842 = vmatmul.f32.gmra.mxu0 %v2841
    %v2843 = vpop.f32.mrf.mxu0
    %v2844 = vadd.f32 %v2818, %v2843
    %2845 = vdwg.mxu0
    %2846 = vmatpush.msra.mxu0 0.0
    %2847 = vmatpush.msra.mxu0 0.0
    %2848 = vmatpush.msra.mxu0 0.0
    %2849 = vmatpush.msra.mxu0 0.0
    %2850 = vmatpush.msra.mxu0 0.0
    %2851 = vmatpush.msra.mxu0 0.0
    %2852 = vmatpush.msra.mxu0 0.0
    %2853 = vmatpush.msra.mxu0 0.0
    %2854 = vmatpush.msra.mxu0 0.0
    %2855 = vmatpush.msra.mxu0 0.0
    %2856 = vmatpush.msra.mxu0 0.0
    %2857 = vmatpush.msra.mxu0 0.0
    %2858 = vmatpush.msra.mxu0 0.0
    %2859 = vmatpush.msra.mxu0 0.0
    %2860 = vmatpush.msra.mxu0 0.0
    %v2861 = vand.u32 %v2788, 4294901760
    %v2862 = vsub.f32 %v2788, %v2861
    %2863 = vmatpush.msra.mxu0 %v2862
    %v2864 = vand.u32 %v2786, 4294901760
    %v2865 = vsub.f32 %v2786, %v2864
    %2866 = vmatmul.f32.gmra.mxu0 %v2865
    %v2867 = vpop.f32.mrf.mxu0
    %v2868 = vadd.f32 %v2844, %v2867
    %2869 = vdwg.mxu0
    %2870 = vmatpush.msra.mxu0 0.0
    %2871 = vmatpush.msra.mxu0 0.0
    %2872 = vmatpush.msra.mxu0 0.0
    %2873 = vmatpush.msra.mxu0 0.0
    %2874 = vmatpush.msra.mxu0 0.0
    %2875 = vmatpush.msra.mxu0 0.0
    %2876 = vmatpush.msra.mxu0 0.0
    %2877 = vmatpush.msra.mxu0 0.0
    %2878 = vmatpush.msra.mxu0 0.0
    %2879 = vmatpush.msra.mxu0 0.0
    %2880 = vmatpush.msra.mxu0 0.0
    %2881 = vmatpush.msra.mxu0 0.0
    %2882 = vmatpush.msra.mxu0 0.0
    %2883 = vmatpush.msra.mxu0 0.0
    %2884 = vmatpush.msra.mxu0 0.0
    %v2885 = vand.u32 %v2788, 4294901760
    %2886 = vmatpush.msra.mxu0 %v2885
    %v2887 = vand.u32 %v2786, 4294901760
    %v2888 = vsub.f32 %v2786, %v2887
    %v2889 = vand.u32 %v2888, 4294901760
    %2890 = vmatmul.f32.gmra.mxu0 %v2889
    %v2891 = vpop.f32.mrf.mxu0
    %v2892 = vadd.f32 %v2868, %v2891
    %2893 = vdwg.mxu0
    %2894 = vmatpush.msra.mxu0 0.0
    %2895 = vmatpush.msra.mxu0 0.0
    %2896 = vmatpush.msra.mxu0 0.0
    %2897 = vmatpush.msra.mxu0 0.0
    %2898 = vmatpush.msra.mxu0 0.0
    %2899 = vmatpush.msra.mxu0 0.0
    %2900 = vmatpush.msra.mxu0 0.0
    %2901 = vmatpush.msra.mxu0 0.0
    %2902 = vmatpush.msra.mxu0 0.0
    %2903 = vmatpush.msra.mxu0 0.0
    %2904 = vmatpush.msra.mxu0 0.0
    %2905 = vmatpush.msra.mxu0 0.0
    %2906 = vmatpush.msra.mxu0 0.0
    %2907 = vmatpush.msra.mxu0 0.0
    %2908 = vmatpush.msra.mxu0 0.0
    %v2909 = vand.u32 %v2788, 4294901760
    %v2910 = vsub.f32 %v2788, %v2909
    %v2911 = vand.u32 %v2910, 4294901760
    %2912 = vmatpush.msra.mxu0 %v2911
    %v2913 = vand.u32 %v2786, 4294901760
    %2914 = vmatmul.f32.gmra.mxu0 %v2913
    %v2915 = vpop.f32.mrf.mxu0
    %v2916 = vadd.f32 %v2892, %v2915
    %2917 = vdwg.mxu0
    %2918 = vmatpush.msra.mxu0 0.0
    %2919 = vmatpush.msra.mxu0 0.0
    %2920 = vmatpush.msra.mxu0 0.0
    %2921 = vmatpush.msra.mxu0 0.0
    %2922 = vmatpush.msra.mxu0 0.0
    %2923 = vmatpush.msra.mxu0 0.0
    %2924 = vmatpush.msra.mxu0 0.0
    %2925 = vmatpush.msra.mxu0 0.0
    %2926 = vmatpush.msra.mxu0 0.0
    %2927 = vmatpush.msra.mxu0 0.0
    %2928 = vmatpush.msra.mxu0 0.0
    %2929 = vmatpush.msra.mxu0 0.0
    %2930 = vmatpush.msra.mxu0 0.0
    %2931 = vmatpush.msra.mxu0 0.0
    %2932 = vmatpush.msra.mxu0 0.0
    %v2933 = vand.u32 %v2788, 4294901760
    %2934 = vmatpush.msra.mxu0 %v2933
    %v2935 = vand.u32 %v2786, 4294901760
    %2936 = vmatmul.f32.gmra.mxu0 %v2935
    %v2937 = vpop.f32.mrf.mxu0
    %v2938 = vadd.f32 %v2916, %v2937
    %2939 = vdwg.mxu0
    %2940 = vmatpush.msra.mxu0 0.0
    %2941 = vmatpush.msra.mxu0 0.0
    %2942 = vmatpush.msra.mxu0 0.0
    %2943 = vmatpush.msra.mxu0 0.0
    %2944 = vmatpush.msra.mxu0 0.0
    %2945 = vmatpush.msra.mxu0 0.0
    %2946 = vmatpush.msra.mxu0 0.0
    %2947 = vmatpush.msra.mxu0 0.0
    %2948 = vmatpush.msra.mxu0 0.0
    %2949 = vmatpush.msra.mxu0 0.0
    %2950 = vmatpush.msra.mxu0 0.0
    %2951 = vmatpush.msra.mxu0 0.0
    %2952 = vmatpush.msra.mxu0 0.0
    %2953 = vmatpush.msra.mxu0 0.0
    %2954 = vmatpush.msra.mxu0 0.0
    %v2955 = vand.u32 %v2790, 4294901760
    %2956 = vmatpush.msra.mxu0 %v2955
    %v2957 = vand.u32 %v2786, 4294901760
    %v2958 = vsub.f32 %v2786, %v2957
    %v2959 = vand.u32 %v2958, 4294901760
    %v2960 = vsub.f32 %v2958, %v2959
    %v2961 = vand.u32 %v2960, 4294901760
    %2962 = vmatmul.f32.gmra.mxu0 %v2961
    %v2963 = vpop.f32.mrf.mxu0
    %v2964 = vadd.f32 0.0, %v2963
    %2965 = vdwg.mxu0
    %2966 = vmatpush.msra.mxu0 0.0
    %2967 = vmatpush.msra.mxu0 0.0
    %2968 = vmatpush.msra.mxu0 0.0
    %2969 = vmatpush.msra.mxu0 0.0
    %2970 = vmatpush.msra.mxu0 0.0
    %2971 = vmatpush.msra.mxu0 0.0
    %2972 = vmatpush.msra.mxu0 0.0
    %2973 = vmatpush.msra.mxu0 0.0
    %2974 = vmatpush.msra.mxu0 0.0
    %2975 = vmatpush.msra.mxu0 0.0
    %2976 = vmatpush.msra.mxu0 0.0
    %2977 = vmatpush.msra.mxu0 0.0
    %2978 = vmatpush.msra.mxu0 0.0
    %2979 = vmatpush.msra.mxu0 0.0
    %2980 = vmatpush.msra.mxu0 0.0
    %v2981 = vand.u32 %v2790, 4294901760
    %v2982 = vsub.f32 %v2790, %v2981
    %v2983 = vand.u32 %v2982, 4294901760
    %v2984 = vsub.f32 %v2982, %v2983
    %v2985 = vand.u32 %v2984, 4294901760
    %2986 = vmatpush.msra.mxu0 %v2985
    %v2987 = vand.u32 %v2786, 4294901760
    %2988 = vmatmul.f32.gmra.mxu0 %v2987
    %v2989 = vpop.f32.mrf.mxu0
    %v2990 = vadd.f32 %v2964, %v2989
    %2991 = vdwg.mxu0
    %2992 = vmatpush.msra.mxu0 0.0
    %2993 = vmatpush.msra.mxu0 0.0
    %2994 = vmatpush.msra.mxu0 0.0
    %2995 = vmatpush.msra.mxu0 0.0
    %2996 = vmatpush.msra.mxu0 0.0
    %2997 = vmatpush.msra.mxu0 0.0
    %2998 = vmatpush.msra.mxu0 0.0
    %2999 = vmatpush.msra.mxu0 0.0
    %3000 = vmatpush.msra.mxu0 0.0
    %3001 = vmatpush.msra.mxu0 0.0
    %3002 = vmatpush.msra.mxu0 0.0
    %3003 = vmatpush.msra.mxu0 0.0
    %3004 = vmatpush.msra.mxu0 0.0
    %3005 = vmatpush.msra.mxu0 0.0
    %3006 = vmatpush.msra.mxu0 0.0
    %v3007 = vand.u32 %v2790, 4294901760
    %v3008 = vsub.f32 %v2790, %v3007
    %3009 = vmatpush.msra.mxu0 %v3008
    %v3010 = vand.u32 %v2786, 4294901760
    %v3011 = vsub.f32 %v2786, %v3010
    %3012 = vmatmul.f32.gmra.mxu0 %v3011
    %v3013 = vpop.f32.mrf.mxu0
    %v3014 = vadd.f32 %v2990, %v3013
    %3015 = vdwg.mxu0
    %3016 = vmatpush.msra.mxu0 0.0
    %3017 = vmatpush.msra.mxu0 0.0
    %3018 = vmatpush.msra.mxu0 0.0
    %3019 = vmatpush.msra.mxu0 0.0
    %3020 = vmatpush.msra.mxu0 0.0
    %3021 = vmatpush.msra.mxu0 0.0
    %3022 = vmatpush.msra.mxu0 0.0
    %3023 = vmatpush.msra.mxu0 0.0
    %3024 = vmatpush.msra.mxu0 0.0
    %3025 = vmatpush.msra.mxu0 0.0
    %3026 = vmatpush.msra.mxu0 0.0
    %3027 = vmatpush.msra.mxu0 0.0
    %3028 = vmatpush.msra.mxu0 0.0
    %3029 = vmatpush.msra.mxu0 0.0
    %3030 = vmatpush.msra.mxu0 0.0
    %v3031 = vand.u32 %v2790, 4294901760
    %3032 = vmatpush.msra.mxu0 %v3031
    %v3033 = vand.u32 %v2786, 4294901760
    %v3034 = vsub.f32 %v2786, %v3033
    %v3035 = vand.u32 %v3034, 4294901760
    %3036 = vmatmul.f32.gmra.mxu0 %v3035
    %v3037 = vpop.f32.mrf.mxu0
    %v3038 = vadd.f32 %v3014, %v3037
    %3039 = vdwg.mxu0
    %3040 = vmatpush.msra.mxu0 0.0
    %3041 = vmatpush.msra.mxu0 0.0
    %3042 = vmatpush.msra.mxu0 0.0
    %3043 = vmatpush.msra.mxu0 0.0
    %3044 = vmatpush.msra.mxu0 0.0
    %3045 = vmatpush.msra.mxu0 0.0
    %3046 = vmatpush.msra.mxu0 0.0
    %3047 = vmatpush.msra.mxu0 0.0
    %3048 = vmatpush.msra.mxu0 0.0
    %3049 = vmatpush.msra.mxu0 0.0
    %3050 = vmatpush.msra.mxu0 0.0
    %3051 = vmatpush.msra.mxu0 0.0
    %3052 = vmatpush.msra.mxu0 0.0
    %3053 = vmatpush.msra.mxu0 0.0
    %3054 = vmatpush.msra.mxu0 0.0
    %v3055 = vand.u32 %v2790, 4294901760
    %v3056 = vsub.f32 %v2790, %v3055
    %v3057 = vand.u32 %v3056, 4294901760
    %3058 = vmatpush.msra.mxu0 %v3057
    %v3059 = vand.u32 %v2786, 4294901760
    %3060 = vmatmul.f32.gmra.mxu0 %v3059
    %v3061 = vpop.f32.mrf.mxu0
    %v3062 = vadd.f32 %v3038, %v3061
    %3063 = vdwg.mxu0
    %3064 = vmatpush.msra.mxu0 0.0
    %3065 = vmatpush.msra.mxu0 0.0
    %3066 = vmatpush.msra.mxu0 0.0
    %3067 = vmatpush.msra.mxu0 0.0
    %3068 = vmatpush.msra.mxu0 0.0
    %3069 = vmatpush.msra.mxu0 0.0
    %3070 = vmatpush.msra.mxu0 0.0
    %3071 = vmatpush.msra.mxu0 0.0
    %3072 = vmatpush.msra.mxu0 0.0
    %3073 = vmatpush.msra.mxu0 0.0
    %3074 = vmatpush.msra.mxu0 0.0
    %3075 = vmatpush.msra.mxu0 0.0
    %3076 = vmatpush.msra.mxu0 0.0
    %3077 = vmatpush.msra.mxu0 0.0
    %3078 = vmatpush.msra.mxu0 0.0
    %v3079 = vand.u32 %v2790, 4294901760
    %3080 = vmatpush.msra.mxu0 %v3079
    %v3081 = vand.u32 %v2786, 4294901760
    %3082 = vmatmul.f32.gmra.mxu0 %v3081
    %v3083 = vpop.f32.mrf.mxu0
    %v3084 = vadd.f32 %v3062, %v3083
    %3085 = vdwg.mxu0
    %3086 = vmatpush.msra.mxu0 0.0
    %3087 = vmatpush.msra.mxu0 0.0
    %3088 = vmatpush.msra.mxu0 0.0
    %3089 = vmatpush.msra.mxu0 0.0
    %3090 = vmatpush.msra.mxu0 0.0
    %3091 = vmatpush.msra.mxu0 0.0
    %3092 = vmatpush.msra.mxu0 0.0
    %3093 = vmatpush.msra.mxu0 0.0
    %3094 = vmatpush.msra.mxu0 0.0
    %3095 = vmatpush.msra.mxu0 0.0
    %3096 = vmatpush.msra.mxu0 0.0
    %3097 = vmatpush.msra.mxu0 0.0
    %3098 = vmatpush.msra.mxu0 0.0
    %3099 = vmatpush.msra.mxu0 0.0
    %3100 = vmatpush.msra.mxu0 0.0
    %v3101 = vand.u32 %v2792, 4294901760
    %3102 = vmatpush.msra.mxu0 %v3101
    %v3103 = vand.u32 %v2786, 4294901760
    %v3104 = vsub.f32 %v2786, %v3103
    %v3105 = vand.u32 %v3104, 4294901760
    %v3106 = vsub.f32 %v3104, %v3105
    %v3107 = vand.u32 %v3106, 4294901760
    %3108 = vmatmul.f32.gmra.mxu0 %v3107
    %v3109 = vpop.f32.mrf.mxu0
    %v3110 = vadd.f32 0.0, %v3109
    %3111 = vdwg.mxu0
    %3112 = vmatpush.msra.mxu0 0.0
    %3113 = vmatpush.msra.mxu0 0.0
    %3114 = vmatpush.msra.mxu0 0.0
    %3115 = vmatpush.msra.mxu0 0.0
    %3116 = vmatpush.msra.mxu0 0.0
    %3117 = vmatpush.msra.mxu0 0.0
    %3118 = vmatpush.msra.mxu0 0.0
    %3119 = vmatpush.msra.mxu0 0.0
    %3120 = vmatpush.msra.mxu0 0.0
    %3121 = vmatpush.msra.mxu0 0.0
    %3122 = vmatpush.msra.mxu0 0.0
    %3123 = vmatpush.msra.mxu0 0.0
    %3124 = vmatpush.msra.mxu0 0.0
    %3125 = vmatpush.msra.mxu0 0.0
    %3126 = vmatpush.msra.mxu0 0.0
    %v3127 = vand.u32 %v2792, 4294901760
    %v3128 = vsub.f32 %v2792, %v3127
    %v3129 = vand.u32 %v3128, 4294901760
    %v3130 = vsub.f32 %v3128, %v3129
    %v3131 = vand.u32 %v3130, 4294901760
    %3132 = vmatpush.msra.mxu0 %v3131
    %v3133 = vand.u32 %v2786, 4294901760
    %3134 = vmatmul.f32.gmra.mxu0 %v3133
    %v3135 = vpop.f32.mrf.mxu0
    %v3136 = vadd.f32 %v3110, %v3135
    %3137 = vdwg.mxu0
    %3138 = vmatpush.msra.mxu0 0.0
    %3139 = vmatpush.msra.mxu0 0.0
    %3140 = vmatpush.msra.mxu0 0.0
    %3141 = vmatpush.msra.mxu0 0.0
    %3142 = vmatpush.msra.mxu0 0.0
    %3143 = vmatpush.msra.mxu0 0.0
    %3144 = vmatpush.msra.mxu0 0.0
    %3145 = vmatpush.msra.mxu0 0.0
    %3146 = vmatpush.msra.mxu0 0.0
    %3147 = vmatpush.msra.mxu0 0.0
    %3148 = vmatpush.msra.mxu0 0.0
    %3149 = vmatpush.msra.mxu0 0.0
    %3150 = vmatpush.msra.mxu0 0.0
    %3151 = vmatpush.msra.mxu0 0.0
    %3152 = vmatpush.msra.mxu0 0.0
    %v3153 = vand.u32 %v2792, 4294901760
    %v3154 = vsub.f32 %v2792, %v3153
    %3155 = vmatpush.msra.mxu0 %v3154
    %v3156 = vand.u32 %v2786, 4294901760
    %v3157 = vsub.f32 %v2786, %v3156
    %3158 = vmatmul.f32.gmra.mxu0 %v3157
    %v3159 = vpop.f32.mrf.mxu0
    %v3160 = vadd.f32 %v3136, %v3159
    %3161 = vdwg.mxu0
    %3162 = vmatpush.msra.mxu0 0.0
    %3163 = vmatpush.msra.mxu0 0.0
    %3164 = vmatpush.msra.mxu0 0.0
    %3165 = vmatpush.msra.mxu0 0.0
    %3166 = vmatpush.msra.mxu0 0.0
    %3167 = vmatpush.msra.mxu0 0.0
    %3168 = vmatpush.msra.mxu0 0.0
    %3169 = vmatpush.msra.mxu0 0.0
    %3170 = vmatpush.msra.mxu0 0.0
    %3171 = vmatpush.msra.mxu0 0.0
    %3172 = vmatpush.msra.mxu0 0.0
    %3173 = vmatpush.msra.mxu0 0.0
    %3174 = vmatpush.msra.mxu0 0.0
    %3175 = vmatpush.msra.mxu0 0.0
    %3176 = vmatpush.msra.mxu0 0.0
    %v3177 = vand.u32 %v2792, 4294901760
    %3178 = vmatpush.msra.mxu0 %v3177
    %v3179 = vand.u32 %v2786, 4294901760
    %v3180 = vsub.f32 %v2786, %v3179
    %v3181 = vand.u32 %v3180, 4294901760
    %3182 = vmatmul.f32.gmra.mxu0 %v3181
    %v3183 = vpop.f32.mrf.mxu0
    %v3184 = vadd.f32 %v3160, %v3183
    %3185 = vdwg.mxu0
    %3186 = vmatpush.msra.mxu0 0.0
    %3187 = vmatpush.msra.mxu0 0.0
    %3188 = vmatpush.msra.mxu0 0.0
    %3189 = vmatpush.msra.mxu0 0.0
    %3190 = vmatpush.msra.mxu0 0.0
    %3191 = vmatpush.msra.mxu0 0.0
    %3192 = vmatpush.msra.mxu0 0.0
    %3193 = vmatpush.msra.mxu0 0.0
    %3194 = vmatpush.msra.mxu0 0.0
    %3195 = vmatpush.msra.mxu0 0.0
    %3196 = vmatpush.msra.mxu0 0.0
    %3197 = vmatpush.msra.mxu0 0.0
    %3198 = vmatpush.msra.mxu0 0.0
    %3199 = vmatpush.msra.mxu0 0.0
    %3200 = vmatpush.msra.mxu0 0.0
    %v3201 = vand.u32 %v2792, 4294901760
    %v3202 = vsub.f32 %v2792, %v3201
    %v3203 = vand.u32 %v3202, 4294901760
    %3204 = vmatpush.msra.mxu0 %v3203
    %v3205 = vand.u32 %v2786, 4294901760
    %3206 = vmatmul.f32.gmra.mxu0 %v3205
    %v3207 = vpop.f32.mrf.mxu0
    %v3208 = vadd.f32 %v3184, %v3207
    %3209 = vdwg.mxu0
    %3210 = vmatpush.msra.mxu0 0.0
    %3211 = vmatpush.msra.mxu0 0.0
    %3212 = vmatpush.msra.mxu0 0.0
    %3213 = vmatpush.msra.mxu0 0.0
    %3214 = vmatpush.msra.mxu0 0.0
    %3215 = vmatpush.msra.mxu0 0.0
    %3216 = vmatpush.msra.mxu0 0.0
    %3217 = vmatpush.msra.mxu0 0.0
    %3218 = vmatpush.msra.mxu0 0.0
    %3219 = vmatpush.msra.mxu0 0.0
    %3220 = vmatpush.msra.mxu0 0.0
    %3221 = vmatpush.msra.mxu0 0.0
    %3222 = vmatpush.msra.mxu0 0.0
    %3223 = vmatpush.msra.mxu0 0.0
    %3224 = vmatpush.msra.mxu0 0.0
    %v3225 = vand.u32 %v2792, 4294901760
    %3226 = vmatpush.msra.mxu0 %v3225
    %v3227 = vand.u32 %v2786, 4294901760
    %3228 = vmatmul.f32.gmra.mxu0 %v3227
    %v3229 = vpop.f32.mrf.mxu0
    %v3230 = vadd.f32 %v3208, %v3229
    %3231 = vdwg.mxu0
    %v3232 = vadd.f32 %v2769, %v2938
    %v3233 = vadd.f32 %v2770, %v3084
    %v3234 = vadd.f32 %v2771, %v3230
    %3235 = vrot.lane.b32.xlu0 %v15, 87
    %v3236 = vpop.permute.xlu0 %3235
    %3237 = vrot.lane.b32.xlu0 %v16, 87
    %v3238 = vpop.permute.xlu0 %3237
    %3239 = vrot.lane.b32.xlu0 %v17, 87
    %v3240 = vpop.permute.xlu0 %3239
    %3241 = vrot.lane.b32.xlu0 %v18, 87
    %v3242 = vpop.permute.xlu0 %3241
    %vm3243 = vcmask 711680
    %v3244 = vsel %vm3243, %v3236, %v3238
    %v3245 = vsel %vm3243, %v3238, %v3240
    %v3246 = vsel %vm3243, %v3240, %v3242
    %v3248 = vsel %vm40, %v26, 0
    %v3250 = vsel %vm44, %v3244, 0
    %v3252 = vsel %vm44, %v3245, 0
    %v3254 = vsel %vm44, %v3246, 0
    %3256 = vmatpush.msra.mxu0 0.0
    %3257 = vmatpush.msra.mxu0 0.0
    %3258 = vmatpush.msra.mxu0 0.0
    %3259 = vmatpush.msra.mxu0 0.0
    %3260 = vmatpush.msra.mxu0 0.0
    %3261 = vmatpush.msra.mxu0 0.0
    %3262 = vmatpush.msra.mxu0 0.0
    %3263 = vmatpush.msra.mxu0 0.0
    %3264 = vmatpush.msra.mxu0 0.0
    %3265 = vmatpush.msra.mxu0 0.0
    %3266 = vmatpush.msra.mxu0 0.0
    %3267 = vmatpush.msra.mxu0 0.0
    %3268 = vmatpush.msra.mxu0 0.0
    %3269 = vmatpush.msra.mxu0 0.0
    %3270 = vmatpush.msra.mxu0 0.0
    %v3271 = vand.u32 %v3250, 4294901760
    %3272 = vmatpush.msra.mxu0 %v3271
    %v3273 = vand.u32 %v3248, 4294901760
    %v3274 = vsub.f32 %v3248, %v3273
    %v3275 = vand.u32 %v3274, 4294901760
    %v3276 = vsub.f32 %v3274, %v3275
    %v3277 = vand.u32 %v3276, 4294901760
    %3278 = vmatmul.f32.gmra.mxu0 %v3277
    %v3279 = vpop.f32.mrf.mxu0
    %v3280 = vadd.f32 0.0, %v3279
    %3281 = vdwg.mxu0
    %3282 = vmatpush.msra.mxu0 0.0
    %3283 = vmatpush.msra.mxu0 0.0
    %3284 = vmatpush.msra.mxu0 0.0
    %3285 = vmatpush.msra.mxu0 0.0
    %3286 = vmatpush.msra.mxu0 0.0
    %3287 = vmatpush.msra.mxu0 0.0
    %3288 = vmatpush.msra.mxu0 0.0
    %3289 = vmatpush.msra.mxu0 0.0
    %3290 = vmatpush.msra.mxu0 0.0
    %3291 = vmatpush.msra.mxu0 0.0
    %3292 = vmatpush.msra.mxu0 0.0
    %3293 = vmatpush.msra.mxu0 0.0
    %3294 = vmatpush.msra.mxu0 0.0
    %3295 = vmatpush.msra.mxu0 0.0
    %3296 = vmatpush.msra.mxu0 0.0
    %v3297 = vand.u32 %v3250, 4294901760
    %v3298 = vsub.f32 %v3250, %v3297
    %v3299 = vand.u32 %v3298, 4294901760
    %v3300 = vsub.f32 %v3298, %v3299
    %v3301 = vand.u32 %v3300, 4294901760
    %3302 = vmatpush.msra.mxu0 %v3301
    %v3303 = vand.u32 %v3248, 4294901760
    %3304 = vmatmul.f32.gmra.mxu0 %v3303
    %v3305 = vpop.f32.mrf.mxu0
    %v3306 = vadd.f32 %v3280, %v3305
    %3307 = vdwg.mxu0
    %3308 = vmatpush.msra.mxu0 0.0
    %3309 = vmatpush.msra.mxu0 0.0
    %3310 = vmatpush.msra.mxu0 0.0
    %3311 = vmatpush.msra.mxu0 0.0
    %3312 = vmatpush.msra.mxu0 0.0
    %3313 = vmatpush.msra.mxu0 0.0
    %3314 = vmatpush.msra.mxu0 0.0
    %3315 = vmatpush.msra.mxu0 0.0
    %3316 = vmatpush.msra.mxu0 0.0
    %3317 = vmatpush.msra.mxu0 0.0
    %3318 = vmatpush.msra.mxu0 0.0
    %3319 = vmatpush.msra.mxu0 0.0
    %3320 = vmatpush.msra.mxu0 0.0
    %3321 = vmatpush.msra.mxu0 0.0
    %3322 = vmatpush.msra.mxu0 0.0
    %v3323 = vand.u32 %v3250, 4294901760
    %v3324 = vsub.f32 %v3250, %v3323
    %3325 = vmatpush.msra.mxu0 %v3324
    %v3326 = vand.u32 %v3248, 4294901760
    %v3327 = vsub.f32 %v3248, %v3326
    %3328 = vmatmul.f32.gmra.mxu0 %v3327
    %v3329 = vpop.f32.mrf.mxu0
    %v3330 = vadd.f32 %v3306, %v3329
    %3331 = vdwg.mxu0
    %3332 = vmatpush.msra.mxu0 0.0
    %3333 = vmatpush.msra.mxu0 0.0
    %3334 = vmatpush.msra.mxu0 0.0
    %3335 = vmatpush.msra.mxu0 0.0
    %3336 = vmatpush.msra.mxu0 0.0
    %3337 = vmatpush.msra.mxu0 0.0
    %3338 = vmatpush.msra.mxu0 0.0
    %3339 = vmatpush.msra.mxu0 0.0
    %3340 = vmatpush.msra.mxu0 0.0
    %3341 = vmatpush.msra.mxu0 0.0
    %3342 = vmatpush.msra.mxu0 0.0
    %3343 = vmatpush.msra.mxu0 0.0
    %3344 = vmatpush.msra.mxu0 0.0
    %3345 = vmatpush.msra.mxu0 0.0
    %3346 = vmatpush.msra.mxu0 0.0
    %v3347 = vand.u32 %v3250, 4294901760
    %3348 = vmatpush.msra.mxu0 %v3347
    %v3349 = vand.u32 %v3248, 4294901760
    %v3350 = vsub.f32 %v3248, %v3349
    %v3351 = vand.u32 %v3350, 4294901760
    %3352 = vmatmul.f32.gmra.mxu0 %v3351
    %v3353 = vpop.f32.mrf.mxu0
    %v3354 = vadd.f32 %v3330, %v3353
    %3355 = vdwg.mxu0
    %3356 = vmatpush.msra.mxu0 0.0
    %3357 = vmatpush.msra.mxu0 0.0
    %3358 = vmatpush.msra.mxu0 0.0
    %3359 = vmatpush.msra.mxu0 0.0
    %3360 = vmatpush.msra.mxu0 0.0
    %3361 = vmatpush.msra.mxu0 0.0
    %3362 = vmatpush.msra.mxu0 0.0
    %3363 = vmatpush.msra.mxu0 0.0
    %3364 = vmatpush.msra.mxu0 0.0
    %3365 = vmatpush.msra.mxu0 0.0
    %3366 = vmatpush.msra.mxu0 0.0
    %3367 = vmatpush.msra.mxu0 0.0
    %3368 = vmatpush.msra.mxu0 0.0
    %3369 = vmatpush.msra.mxu0 0.0
    %3370 = vmatpush.msra.mxu0 0.0
    %v3371 = vand.u32 %v3250, 4294901760
    %v3372 = vsub.f32 %v3250, %v3371
    %v3373 = vand.u32 %v3372, 4294901760
    %3374 = vmatpush.msra.mxu0 %v3373
    %v3375 = vand.u32 %v3248, 4294901760
    %3376 = vmatmul.f32.gmra.mxu0 %v3375
    %v3377 = vpop.f32.mrf.mxu0
    %v3378 = vadd.f32 %v3354, %v3377
    %3379 = vdwg.mxu0
    %3380 = vmatpush.msra.mxu0 0.0
    %3381 = vmatpush.msra.mxu0 0.0
    %3382 = vmatpush.msra.mxu0 0.0
    %3383 = vmatpush.msra.mxu0 0.0
    %3384 = vmatpush.msra.mxu0 0.0
    %3385 = vmatpush.msra.mxu0 0.0
    %3386 = vmatpush.msra.mxu0 0.0
    %3387 = vmatpush.msra.mxu0 0.0
    %3388 = vmatpush.msra.mxu0 0.0
    %3389 = vmatpush.msra.mxu0 0.0
    %3390 = vmatpush.msra.mxu0 0.0
    %3391 = vmatpush.msra.mxu0 0.0
    %3392 = vmatpush.msra.mxu0 0.0
    %3393 = vmatpush.msra.mxu0 0.0
    %3394 = vmatpush.msra.mxu0 0.0
    %v3395 = vand.u32 %v3250, 4294901760
    %3396 = vmatpush.msra.mxu0 %v3395
    %v3397 = vand.u32 %v3248, 4294901760
    %3398 = vmatmul.f32.gmra.mxu0 %v3397
    %v3399 = vpop.f32.mrf.mxu0
    %v3400 = vadd.f32 %v3378, %v3399
    %3401 = vdwg.mxu0
    %3402 = vmatpush.msra.mxu0 0.0
    %3403 = vmatpush.msra.mxu0 0.0
    %3404 = vmatpush.msra.mxu0 0.0
    %3405 = vmatpush.msra.mxu0 0.0
    %3406 = vmatpush.msra.mxu0 0.0
    %3407 = vmatpush.msra.mxu0 0.0
    %3408 = vmatpush.msra.mxu0 0.0
    %3409 = vmatpush.msra.mxu0 0.0
    %3410 = vmatpush.msra.mxu0 0.0
    %3411 = vmatpush.msra.mxu0 0.0
    %3412 = vmatpush.msra.mxu0 0.0
    %3413 = vmatpush.msra.mxu0 0.0
    %3414 = vmatpush.msra.mxu0 0.0
    %3415 = vmatpush.msra.mxu0 0.0
    %3416 = vmatpush.msra.mxu0 0.0
    %v3417 = vand.u32 %v3252, 4294901760
    %3418 = vmatpush.msra.mxu0 %v3417
    %v3419 = vand.u32 %v3248, 4294901760
    %v3420 = vsub.f32 %v3248, %v3419
    %v3421 = vand.u32 %v3420, 4294901760
    %v3422 = vsub.f32 %v3420, %v3421
    %v3423 = vand.u32 %v3422, 4294901760
    %3424 = vmatmul.f32.gmra.mxu0 %v3423
    %v3425 = vpop.f32.mrf.mxu0
    %v3426 = vadd.f32 0.0, %v3425
    %3427 = vdwg.mxu0
    %3428 = vmatpush.msra.mxu0 0.0
    %3429 = vmatpush.msra.mxu0 0.0
    %3430 = vmatpush.msra.mxu0 0.0
    %3431 = vmatpush.msra.mxu0 0.0
    %3432 = vmatpush.msra.mxu0 0.0
    %3433 = vmatpush.msra.mxu0 0.0
    %3434 = vmatpush.msra.mxu0 0.0
    %3435 = vmatpush.msra.mxu0 0.0
    %3436 = vmatpush.msra.mxu0 0.0
    %3437 = vmatpush.msra.mxu0 0.0
    %3438 = vmatpush.msra.mxu0 0.0
    %3439 = vmatpush.msra.mxu0 0.0
    %3440 = vmatpush.msra.mxu0 0.0
    %3441 = vmatpush.msra.mxu0 0.0
    %3442 = vmatpush.msra.mxu0 0.0
    %v3443 = vand.u32 %v3252, 4294901760
    %v3444 = vsub.f32 %v3252, %v3443
    %v3445 = vand.u32 %v3444, 4294901760
    %v3446 = vsub.f32 %v3444, %v3445
    %v3447 = vand.u32 %v3446, 4294901760
    %3448 = vmatpush.msra.mxu0 %v3447
    %v3449 = vand.u32 %v3248, 4294901760
    %3450 = vmatmul.f32.gmra.mxu0 %v3449
    %v3451 = vpop.f32.mrf.mxu0
    %v3452 = vadd.f32 %v3426, %v3451
    %3453 = vdwg.mxu0
    %3454 = vmatpush.msra.mxu0 0.0
    %3455 = vmatpush.msra.mxu0 0.0
    %3456 = vmatpush.msra.mxu0 0.0
    %3457 = vmatpush.msra.mxu0 0.0
    %3458 = vmatpush.msra.mxu0 0.0
    %3459 = vmatpush.msra.mxu0 0.0
    %3460 = vmatpush.msra.mxu0 0.0
    %3461 = vmatpush.msra.mxu0 0.0
    %3462 = vmatpush.msra.mxu0 0.0
    %3463 = vmatpush.msra.mxu0 0.0
    %3464 = vmatpush.msra.mxu0 0.0
    %3465 = vmatpush.msra.mxu0 0.0
    %3466 = vmatpush.msra.mxu0 0.0
    %3467 = vmatpush.msra.mxu0 0.0
    %3468 = vmatpush.msra.mxu0 0.0
    %v3469 = vand.u32 %v3252, 4294901760
    %v3470 = vsub.f32 %v3252, %v3469
    %3471 = vmatpush.msra.mxu0 %v3470
    %v3472 = vand.u32 %v3248, 4294901760
    %v3473 = vsub.f32 %v3248, %v3472
    %3474 = vmatmul.f32.gmra.mxu0 %v3473
    %v3475 = vpop.f32.mrf.mxu0
    %v3476 = vadd.f32 %v3452, %v3475
    %3477 = vdwg.mxu0
    %3478 = vmatpush.msra.mxu0 0.0
    %3479 = vmatpush.msra.mxu0 0.0
    %3480 = vmatpush.msra.mxu0 0.0
    %3481 = vmatpush.msra.mxu0 0.0
    %3482 = vmatpush.msra.mxu0 0.0
    %3483 = vmatpush.msra.mxu0 0.0
    %3484 = vmatpush.msra.mxu0 0.0
    %3485 = vmatpush.msra.mxu0 0.0
    %3486 = vmatpush.msra.mxu0 0.0
    %3487 = vmatpush.msra.mxu0 0.0
    %3488 = vmatpush.msra.mxu0 0.0
    %3489 = vmatpush.msra.mxu0 0.0
    %3490 = vmatpush.msra.mxu0 0.0
    %3491 = vmatpush.msra.mxu0 0.0
    %3492 = vmatpush.msra.mxu0 0.0
    %v3493 = vand.u32 %v3252, 4294901760
    %3494 = vmatpush.msra.mxu0 %v3493
    %v3495 = vand.u32 %v3248, 4294901760
    %v3496 = vsub.f32 %v3248, %v3495
    %v3497 = vand.u32 %v3496, 4294901760
    %3498 = vmatmul.f32.gmra.mxu0 %v3497
    %v3499 = vpop.f32.mrf.mxu0
    %v3500 = vadd.f32 %v3476, %v3499
    %3501 = vdwg.mxu0
    %3502 = vmatpush.msra.mxu0 0.0
    %3503 = vmatpush.msra.mxu0 0.0
    %3504 = vmatpush.msra.mxu0 0.0
    %3505 = vmatpush.msra.mxu0 0.0
    %3506 = vmatpush.msra.mxu0 0.0
    %3507 = vmatpush.msra.mxu0 0.0
    %3508 = vmatpush.msra.mxu0 0.0
    %3509 = vmatpush.msra.mxu0 0.0
    %3510 = vmatpush.msra.mxu0 0.0
    %3511 = vmatpush.msra.mxu0 0.0
    %3512 = vmatpush.msra.mxu0 0.0
    %3513 = vmatpush.msra.mxu0 0.0
    %3514 = vmatpush.msra.mxu0 0.0
    %3515 = vmatpush.msra.mxu0 0.0
    %3516 = vmatpush.msra.mxu0 0.0
    %v3517 = vand.u32 %v3252, 4294901760
    %v3518 = vsub.f32 %v3252, %v3517
    %v3519 = vand.u32 %v3518, 4294901760
    %3520 = vmatpush.msra.mxu0 %v3519
    %v3521 = vand.u32 %v3248, 4294901760
    %3522 = vmatmul.f32.gmra.mxu0 %v3521
    %v3523 = vpop.f32.mrf.mxu0
    %v3524 = vadd.f32 %v3500, %v3523
    %3525 = vdwg.mxu0
    %3526 = vmatpush.msra.mxu0 0.0
    %3527 = vmatpush.msra.mxu0 0.0
    %3528 = vmatpush.msra.mxu0 0.0
    %3529 = vmatpush.msra.mxu0 0.0
    %3530 = vmatpush.msra.mxu0 0.0
    %3531 = vmatpush.msra.mxu0 0.0
    %3532 = vmatpush.msra.mxu0 0.0
    %3533 = vmatpush.msra.mxu0 0.0
    %3534 = vmatpush.msra.mxu0 0.0
    %3535 = vmatpush.msra.mxu0 0.0
    %3536 = vmatpush.msra.mxu0 0.0
    %3537 = vmatpush.msra.mxu0 0.0
    %3538 = vmatpush.msra.mxu0 0.0
    %3539 = vmatpush.msra.mxu0 0.0
    %3540 = vmatpush.msra.mxu0 0.0
    %v3541 = vand.u32 %v3252, 4294901760
    %3542 = vmatpush.msra.mxu0 %v3541
    %v3543 = vand.u32 %v3248, 4294901760
    %3544 = vmatmul.f32.gmra.mxu0 %v3543
    %v3545 = vpop.f32.mrf.mxu0
    %v3546 = vadd.f32 %v3524, %v3545
    %3547 = vdwg.mxu0
    %3548 = vmatpush.msra.mxu0 0.0
    %3549 = vmatpush.msra.mxu0 0.0
    %3550 = vmatpush.msra.mxu0 0.0
    %3551 = vmatpush.msra.mxu0 0.0
    %3552 = vmatpush.msra.mxu0 0.0
    %3553 = vmatpush.msra.mxu0 0.0
    %3554 = vmatpush.msra.mxu0 0.0
    %3555 = vmatpush.msra.mxu0 0.0
    %3556 = vmatpush.msra.mxu0 0.0
    %3557 = vmatpush.msra.mxu0 0.0
    %3558 = vmatpush.msra.mxu0 0.0
    %3559 = vmatpush.msra.mxu0 0.0
    %3560 = vmatpush.msra.mxu0 0.0
    %3561 = vmatpush.msra.mxu0 0.0
    %3562 = vmatpush.msra.mxu0 0.0
    %v3563 = vand.u32 %v3254, 4294901760
    %3564 = vmatpush.msra.mxu0 %v3563
    %v3565 = vand.u32 %v3248, 4294901760
    %v3566 = vsub.f32 %v3248, %v3565
    %v3567 = vand.u32 %v3566, 4294901760
    %v3568 = vsub.f32 %v3566, %v3567
    %v3569 = vand.u32 %v3568, 4294901760
    %3570 = vmatmul.f32.gmra.mxu0 %v3569
    %v3571 = vpop.f32.mrf.mxu0
    %v3572 = vadd.f32 0.0, %v3571
    %3573 = vdwg.mxu0
    %3574 = vmatpush.msra.mxu0 0.0
    %3575 = vmatpush.msra.mxu0 0.0
    %3576 = vmatpush.msra.mxu0 0.0
    %3577 = vmatpush.msra.mxu0 0.0
    %3578 = vmatpush.msra.mxu0 0.0
    %3579 = vmatpush.msra.mxu0 0.0
    %3580 = vmatpush.msra.mxu0 0.0
    %3581 = vmatpush.msra.mxu0 0.0
    %3582 = vmatpush.msra.mxu0 0.0
    %3583 = vmatpush.msra.mxu0 0.0
    %3584 = vmatpush.msra.mxu0 0.0
    %3585 = vmatpush.msra.mxu0 0.0
    %3586 = vmatpush.msra.mxu0 0.0
    %3587 = vmatpush.msra.mxu0 0.0
    %3588 = vmatpush.msra.mxu0 0.0
    %v3589 = vand.u32 %v3254, 4294901760
    %v3590 = vsub.f32 %v3254, %v3589
    %v3591 = vand.u32 %v3590, 4294901760
    %v3592 = vsub.f32 %v3590, %v3591
    %v3593 = vand.u32 %v3592, 4294901760
    %3594 = vmatpush.msra.mxu0 %v3593
    %v3595 = vand.u32 %v3248, 4294901760
    %3596 = vmatmul.f32.gmra.mxu0 %v3595
    %v3597 = vpop.f32.mrf.mxu0
    %v3598 = vadd.f32 %v3572, %v3597
    %3599 = vdwg.mxu0
    %3600 = vmatpush.msra.mxu0 0.0
    %3601 = vmatpush.msra.mxu0 0.0
    %3602 = vmatpush.msra.mxu0 0.0
    %3603 = vmatpush.msra.mxu0 0.0
    %3604 = vmatpush.msra.mxu0 0.0
    %3605 = vmatpush.msra.mxu0 0.0
    %3606 = vmatpush.msra.mxu0 0.0
    %3607 = vmatpush.msra.mxu0 0.0
    %3608 = vmatpush.msra.mxu0 0.0
    %3609 = vmatpush.msra.mxu0 0.0
    %3610 = vmatpush.msra.mxu0 0.0
    %3611 = vmatpush.msra.mxu0 0.0
    %3612 = vmatpush.msra.mxu0 0.0
    %3613 = vmatpush.msra.mxu0 0.0
    %3614 = vmatpush.msra.mxu0 0.0
    %v3615 = vand.u32 %v3254, 4294901760
    %v3616 = vsub.f32 %v3254, %v3615
    %3617 = vmatpush.msra.mxu0 %v3616
    %v3618 = vand.u32 %v3248, 4294901760
    %v3619 = vsub.f32 %v3248, %v3618
    %3620 = vmatmul.f32.gmra.mxu0 %v3619
    %v3621 = vpop.f32.mrf.mxu0
    %v3622 = vadd.f32 %v3598, %v3621
    %3623 = vdwg.mxu0
    %3624 = vmatpush.msra.mxu0 0.0
    %3625 = vmatpush.msra.mxu0 0.0
    %3626 = vmatpush.msra.mxu0 0.0
    %3627 = vmatpush.msra.mxu0 0.0
    %3628 = vmatpush.msra.mxu0 0.0
    %3629 = vmatpush.msra.mxu0 0.0
    %3630 = vmatpush.msra.mxu0 0.0
    %3631 = vmatpush.msra.mxu0 0.0
    %3632 = vmatpush.msra.mxu0 0.0
    %3633 = vmatpush.msra.mxu0 0.0
    %3634 = vmatpush.msra.mxu0 0.0
    %3635 = vmatpush.msra.mxu0 0.0
    %3636 = vmatpush.msra.mxu0 0.0
    %3637 = vmatpush.msra.mxu0 0.0
    %3638 = vmatpush.msra.mxu0 0.0
    %v3639 = vand.u32 %v3254, 4294901760
    %3640 = vmatpush.msra.mxu0 %v3639
    %v3641 = vand.u32 %v3248, 4294901760
    %v3642 = vsub.f32 %v3248, %v3641
    %v3643 = vand.u32 %v3642, 4294901760
    %3644 = vmatmul.f32.gmra.mxu0 %v3643
    %v3645 = vpop.f32.mrf.mxu0
    %v3646 = vadd.f32 %v3622, %v3645
    %3647 = vdwg.mxu0
    %3648 = vmatpush.msra.mxu0 0.0
    %3649 = vmatpush.msra.mxu0 0.0
    %3650 = vmatpush.msra.mxu0 0.0
    %3651 = vmatpush.msra.mxu0 0.0
    %3652 = vmatpush.msra.mxu0 0.0
    %3653 = vmatpush.msra.mxu0 0.0
    %3654 = vmatpush.msra.mxu0 0.0
    %3655 = vmatpush.msra.mxu0 0.0
    %3656 = vmatpush.msra.mxu0 0.0
    %3657 = vmatpush.msra.mxu0 0.0
    %3658 = vmatpush.msra.mxu0 0.0
    %3659 = vmatpush.msra.mxu0 0.0
    %3660 = vmatpush.msra.mxu0 0.0
    %3661 = vmatpush.msra.mxu0 0.0
    %3662 = vmatpush.msra.mxu0 0.0
    %v3663 = vand.u32 %v3254, 4294901760
    %v3664 = vsub.f32 %v3254, %v3663
    %v3665 = vand.u32 %v3664, 4294901760
    %3666 = vmatpush.msra.mxu0 %v3665
    %v3667 = vand.u32 %v3248, 4294901760
    %3668 = vmatmul.f32.gmra.mxu0 %v3667
    %v3669 = vpop.f32.mrf.mxu0
    %v3670 = vadd.f32 %v3646, %v3669
    %3671 = vdwg.mxu0
    %3672 = vmatpush.msra.mxu0 0.0
    %3673 = vmatpush.msra.mxu0 0.0
    %3674 = vmatpush.msra.mxu0 0.0
    %3675 = vmatpush.msra.mxu0 0.0
    %3676 = vmatpush.msra.mxu0 0.0
    %3677 = vmatpush.msra.mxu0 0.0
    %3678 = vmatpush.msra.mxu0 0.0
    %3679 = vmatpush.msra.mxu0 0.0
    %3680 = vmatpush.msra.mxu0 0.0
    %3681 = vmatpush.msra.mxu0 0.0
    %3682 = vmatpush.msra.mxu0 0.0
    %3683 = vmatpush.msra.mxu0 0.0
    %3684 = vmatpush.msra.mxu0 0.0
    %3685 = vmatpush.msra.mxu0 0.0
    %3686 = vmatpush.msra.mxu0 0.0
    %v3687 = vand.u32 %v3254, 4294901760
    %3688 = vmatpush.msra.mxu0 %v3687
    %v3689 = vand.u32 %v3248, 4294901760
    %3690 = vmatmul.f32.gmra.mxu0 %v3689
    %v3691 = vpop.f32.mrf.mxu0
    %v3692 = vadd.f32 %v3670, %v3691
    %3693 = vdwg.mxu0
    %v3694 = vadd.f32 %v3232, %v3400
    %v3695 = vadd.f32 %v3233, %v3546
    %v3696 = vadd.f32 %v3234, %v3692
    %3697 = vrot.lane.b32.xlu0 %v15, 86
    %v3698 = vpop.permute.xlu0 %3697
    %3699 = vrot.lane.b32.xlu0 %v16, 86
    %v3700 = vpop.permute.xlu0 %3699
    %3701 = vrot.lane.b32.xlu0 %v17, 86
    %v3702 = vpop.permute.xlu0 %3701
    %3703 = vrot.lane.b32.xlu0 %v18, 86
    %v3704 = vpop.permute.xlu0 %3703
    %vm3705 = vcmask 703488
    %v3706 = vsel %vm3705, %v3698, %v3700
    %v3707 = vsel %vm3705, %v3700, %v3702
    %v3708 = vsel %vm3705, %v3702, %v3704
    %v3710 = vsel %vm40, %v27, 0
    %v3712 = vsel %vm44, %v3706, 0
    %v3714 = vsel %vm44, %v3707, 0
    %v3716 = vsel %vm44, %v3708, 0
    %3718 = vmatpush.msra.mxu0 0.0
    %3719 = vmatpush.msra.mxu0 0.0
    %3720 = vmatpush.msra.mxu0 0.0
    %3721 = vmatpush.msra.mxu0 0.0
    %3722 = vmatpush.msra.mxu0 0.0
    %3723 = vmatpush.msra.mxu0 0.0
    %3724 = vmatpush.msra.mxu0 0.0
    %3725 = vmatpush.msra.mxu0 0.0
    %3726 = vmatpush.msra.mxu0 0.0
    %3727 = vmatpush.msra.mxu0 0.0
    %3728 = vmatpush.msra.mxu0 0.0
    %3729 = vmatpush.msra.mxu0 0.0
    %3730 = vmatpush.msra.mxu0 0.0
    %3731 = vmatpush.msra.mxu0 0.0
    %3732 = vmatpush.msra.mxu0 0.0
    %v3733 = vand.u32 %v3712, 4294901760
    %3734 = vmatpush.msra.mxu0 %v3733
    %v3735 = vand.u32 %v3710, 4294901760
    %v3736 = vsub.f32 %v3710, %v3735
    %v3737 = vand.u32 %v3736, 4294901760
    %v3738 = vsub.f32 %v3736, %v3737
    %v3739 = vand.u32 %v3738, 4294901760
    %3740 = vmatmul.f32.gmra.mxu0 %v3739
    %v3741 = vpop.f32.mrf.mxu0
    %v3742 = vadd.f32 0.0, %v3741
    %3743 = vdwg.mxu0
    %3744 = vmatpush.msra.mxu0 0.0
    %3745 = vmatpush.msra.mxu0 0.0
    %3746 = vmatpush.msra.mxu0 0.0
    %3747 = vmatpush.msra.mxu0 0.0
    %3748 = vmatpush.msra.mxu0 0.0
    %3749 = vmatpush.msra.mxu0 0.0
    %3750 = vmatpush.msra.mxu0 0.0
    %3751 = vmatpush.msra.mxu0 0.0
    %3752 = vmatpush.msra.mxu0 0.0
    %3753 = vmatpush.msra.mxu0 0.0
    %3754 = vmatpush.msra.mxu0 0.0
    %3755 = vmatpush.msra.mxu0 0.0
    %3756 = vmatpush.msra.mxu0 0.0
    %3757 = vmatpush.msra.mxu0 0.0
    %3758 = vmatpush.msra.mxu0 0.0
    %v3759 = vand.u32 %v3712, 4294901760
    %v3760 = vsub.f32 %v3712, %v3759
    %v3761 = vand.u32 %v3760, 4294901760
    %v3762 = vsub.f32 %v3760, %v3761
    %v3763 = vand.u32 %v3762, 4294901760
    %3764 = vmatpush.msra.mxu0 %v3763
    %v3765 = vand.u32 %v3710, 4294901760
    %3766 = vmatmul.f32.gmra.mxu0 %v3765
    %v3767 = vpop.f32.mrf.mxu0
    %v3768 = vadd.f32 %v3742, %v3767
    %3769 = vdwg.mxu0
    %3770 = vmatpush.msra.mxu0 0.0
    %3771 = vmatpush.msra.mxu0 0.0
    %3772 = vmatpush.msra.mxu0 0.0
    %3773 = vmatpush.msra.mxu0 0.0
    %3774 = vmatpush.msra.mxu0 0.0
    %3775 = vmatpush.msra.mxu0 0.0
    %3776 = vmatpush.msra.mxu0 0.0
    %3777 = vmatpush.msra.mxu0 0.0
    %3778 = vmatpush.msra.mxu0 0.0
    %3779 = vmatpush.msra.mxu0 0.0
    %3780 = vmatpush.msra.mxu0 0.0
    %3781 = vmatpush.msra.mxu0 0.0
    %3782 = vmatpush.msra.mxu0 0.0
    %3783 = vmatpush.msra.mxu0 0.0
    %3784 = vmatpush.msra.mxu0 0.0
    %v3785 = vand.u32 %v3712, 4294901760
    %v3786 = vsub.f32 %v3712, %v3785
    %3787 = vmatpush.msra.mxu0 %v3786
    %v3788 = vand.u32 %v3710, 4294901760
    %v3789 = vsub.f32 %v3710, %v3788
    %3790 = vmatmul.f32.gmra.mxu0 %v3789
    %v3791 = vpop.f32.mrf.mxu0
    %v3792 = vadd.f32 %v3768, %v3791
    %3793 = vdwg.mxu0
    %3794 = vmatpush.msra.mxu0 0.0
    %3795 = vmatpush.msra.mxu0 0.0
    %3796 = vmatpush.msra.mxu0 0.0
    %3797 = vmatpush.msra.mxu0 0.0
    %3798 = vmatpush.msra.mxu0 0.0
    %3799 = vmatpush.msra.mxu0 0.0
    %3800 = vmatpush.msra.mxu0 0.0
    %3801 = vmatpush.msra.mxu0 0.0
    %3802 = vmatpush.msra.mxu0 0.0
    %3803 = vmatpush.msra.mxu0 0.0
    %3804 = vmatpush.msra.mxu0 0.0
    %3805 = vmatpush.msra.mxu0 0.0
    %3806 = vmatpush.msra.mxu0 0.0
    %3807 = vmatpush.msra.mxu0 0.0
    %3808 = vmatpush.msra.mxu0 0.0
    %v3809 = vand.u32 %v3712, 4294901760
    %3810 = vmatpush.msra.mxu0 %v3809
    %v3811 = vand.u32 %v3710, 4294901760
    %v3812 = vsub.f32 %v3710, %v3811
    %v3813 = vand.u32 %v3812, 4294901760
    %3814 = vmatmul.f32.gmra.mxu0 %v3813
    %v3815 = vpop.f32.mrf.mxu0
    %v3816 = vadd.f32 %v3792, %v3815
    %3817 = vdwg.mxu0
    %3818 = vmatpush.msra.mxu0 0.0
    %3819 = vmatpush.msra.mxu0 0.0
    %3820 = vmatpush.msra.mxu0 0.0
    %3821 = vmatpush.msra.mxu0 0.0
    %3822 = vmatpush.msra.mxu0 0.0
    %3823 = vmatpush.msra.mxu0 0.0
    %3824 = vmatpush.msra.mxu0 0.0
    %3825 = vmatpush.msra.mxu0 0.0
    %3826 = vmatpush.msra.mxu0 0.0
    %3827 = vmatpush.msra.mxu0 0.0
    %3828 = vmatpush.msra.mxu0 0.0
    %3829 = vmatpush.msra.mxu0 0.0
    %3830 = vmatpush.msra.mxu0 0.0
    %3831 = vmatpush.msra.mxu0 0.0
    %3832 = vmatpush.msra.mxu0 0.0
    %v3833 = vand.u32 %v3712, 4294901760
    %v3834 = vsub.f32 %v3712, %v3833
    %v3835 = vand.u32 %v3834, 4294901760
    %3836 = vmatpush.msra.mxu0 %v3835
    %v3837 = vand.u32 %v3710, 4294901760
    %3838 = vmatmul.f32.gmra.mxu0 %v3837
    %v3839 = vpop.f32.mrf.mxu0
    %v3840 = vadd.f32 %v3816, %v3839
    %3841 = vdwg.mxu0
    %3842 = vmatpush.msra.mxu0 0.0
    %3843 = vmatpush.msra.mxu0 0.0
    %3844 = vmatpush.msra.mxu0 0.0
    %3845 = vmatpush.msra.mxu0 0.0
    %3846 = vmatpush.msra.mxu0 0.0
    %3847 = vmatpush.msra.mxu0 0.0
    %3848 = vmatpush.msra.mxu0 0.0
    %3849 = vmatpush.msra.mxu0 0.0
    %3850 = vmatpush.msra.mxu0 0.0
    %3851 = vmatpush.msra.mxu0 0.0
    %3852 = vmatpush.msra.mxu0 0.0
    %3853 = vmatpush.msra.mxu0 0.0
    %3854 = vmatpush.msra.mxu0 0.0
    %3855 = vmatpush.msra.mxu0 0.0
    %3856 = vmatpush.msra.mxu0 0.0
    %v3857 = vand.u32 %v3712, 4294901760
    %3858 = vmatpush.msra.mxu0 %v3857
    %v3859 = vand.u32 %v3710, 4294901760
    %3860 = vmatmul.f32.gmra.mxu0 %v3859
    %v3861 = vpop.f32.mrf.mxu0
    %v3862 = vadd.f32 %v3840, %v3861
    %3863 = vdwg.mxu0
    %3864 = vmatpush.msra.mxu0 0.0
    %3865 = vmatpush.msra.mxu0 0.0
    %3866 = vmatpush.msra.mxu0 0.0
    %3867 = vmatpush.msra.mxu0 0.0
    %3868 = vmatpush.msra.mxu0 0.0
    %3869 = vmatpush.msra.mxu0 0.0
    %3870 = vmatpush.msra.mxu0 0.0
    %3871 = vmatpush.msra.mxu0 0.0
    %3872 = vmatpush.msra.mxu0 0.0
    %3873 = vmatpush.msra.mxu0 0.0
    %3874 = vmatpush.msra.mxu0 0.0
    %3875 = vmatpush.msra.mxu0 0.0
    %3876 = vmatpush.msra.mxu0 0.0
    %3877 = vmatpush.msra.mxu0 0.0
    %3878 = vmatpush.msra.mxu0 0.0
    %v3879 = vand.u32 %v3714, 4294901760
    %3880 = vmatpush.msra.mxu0 %v3879
    %v3881 = vand.u32 %v3710, 4294901760
    %v3882 = vsub.f32 %v3710, %v3881
    %v3883 = vand.u32 %v3882, 4294901760
    %v3884 = vsub.f32 %v3882, %v3883
    %v3885 = vand.u32 %v3884, 4294901760
    %3886 = vmatmul.f32.gmra.mxu0 %v3885
    %v3887 = vpop.f32.mrf.mxu0
    %v3888 = vadd.f32 0.0, %v3887
    %3889 = vdwg.mxu0
    %3890 = vmatpush.msra.mxu0 0.0
    %3891 = vmatpush.msra.mxu0 0.0
    %3892 = vmatpush.msra.mxu0 0.0
    %3893 = vmatpush.msra.mxu0 0.0
    %3894 = vmatpush.msra.mxu0 0.0
    %3895 = vmatpush.msra.mxu0 0.0
    %3896 = vmatpush.msra.mxu0 0.0
    %3897 = vmatpush.msra.mxu0 0.0
    %3898 = vmatpush.msra.mxu0 0.0
    %3899 = vmatpush.msra.mxu0 0.0
    %3900 = vmatpush.msra.mxu0 0.0
    %3901 = vmatpush.msra.mxu0 0.0
    %3902 = vmatpush.msra.mxu0 0.0
    %3903 = vmatpush.msra.mxu0 0.0
    %3904 = vmatpush.msra.mxu0 0.0
    %v3905 = vand.u32 %v3714, 4294901760
    %v3906 = vsub.f32 %v3714, %v3905
    %v3907 = vand.u32 %v3906, 4294901760
    %v3908 = vsub.f32 %v3906, %v3907
    %v3909 = vand.u32 %v3908, 4294901760
    %3910 = vmatpush.msra.mxu0 %v3909
    %v3911 = vand.u32 %v3710, 4294901760
    %3912 = vmatmul.f32.gmra.mxu0 %v3911
    %v3913 = vpop.f32.mrf.mxu0
    %v3914 = vadd.f32 %v3888, %v3913
    %3915 = vdwg.mxu0
    %3916 = vmatpush.msra.mxu0 0.0
    %3917 = vmatpush.msra.mxu0 0.0
    %3918 = vmatpush.msra.mxu0 0.0
    %3919 = vmatpush.msra.mxu0 0.0
    %3920 = vmatpush.msra.mxu0 0.0
    %3921 = vmatpush.msra.mxu0 0.0
    %3922 = vmatpush.msra.mxu0 0.0
    %3923 = vmatpush.msra.mxu0 0.0
    %3924 = vmatpush.msra.mxu0 0.0
    %3925 = vmatpush.msra.mxu0 0.0
    %3926 = vmatpush.msra.mxu0 0.0
    %3927 = vmatpush.msra.mxu0 0.0
    %3928 = vmatpush.msra.mxu0 0.0
    %3929 = vmatpush.msra.mxu0 0.0
    %3930 = vmatpush.msra.mxu0 0.0
    %v3931 = vand.u32 %v3714, 4294901760
    %v3932 = vsub.f32 %v3714, %v3931
    %3933 = vmatpush.msra.mxu0 %v3932
    %v3934 = vand.u32 %v3710, 4294901760
    %v3935 = vsub.f32 %v3710, %v3934
    %3936 = vmatmul.f32.gmra.mxu0 %v3935
    %v3937 = vpop.f32.mrf.mxu0
    %v3938 = vadd.f32 %v3914, %v3937
    %3939 = vdwg.mxu0
    %3940 = vmatpush.msra.mxu0 0.0
    %3941 = vmatpush.msra.mxu0 0.0
    %3942 = vmatpush.msra.mxu0 0.0
    %3943 = vmatpush.msra.mxu0 0.0
    %3944 = vmatpush.msra.mxu0 0.0
    %3945 = vmatpush.msra.mxu0 0.0
    %3946 = vmatpush.msra.mxu0 0.0
    %3947 = vmatpush.msra.mxu0 0.0
    %3948 = vmatpush.msra.mxu0 0.0
    %3949 = vmatpush.msra.mxu0 0.0
    %3950 = vmatpush.msra.mxu0 0.0
    %3951 = vmatpush.msra.mxu0 0.0
    %3952 = vmatpush.msra.mxu0 0.0
    %3953 = vmatpush.msra.mxu0 0.0
    %3954 = vmatpush.msra.mxu0 0.0
    %v3955 = vand.u32 %v3714, 4294901760
    %3956 = vmatpush.msra.mxu0 %v3955
    %v3957 = vand.u32 %v3710, 4294901760
    %v3958 = vsub.f32 %v3710, %v3957
    %v3959 = vand.u32 %v3958, 4294901760
    %3960 = vmatmul.f32.gmra.mxu0 %v3959
    %v3961 = vpop.f32.mrf.mxu0
    %v3962 = vadd.f32 %v3938, %v3961
    %3963 = vdwg.mxu0
    %3964 = vmatpush.msra.mxu0 0.0
    %3965 = vmatpush.msra.mxu0 0.0
    %3966 = vmatpush.msra.mxu0 0.0
    %3967 = vmatpush.msra.mxu0 0.0
    %3968 = vmatpush.msra.mxu0 0.0
    %3969 = vmatpush.msra.mxu0 0.0
    %3970 = vmatpush.msra.mxu0 0.0
    %3971 = vmatpush.msra.mxu0 0.0
    %3972 = vmatpush.msra.mxu0 0.0
    %3973 = vmatpush.msra.mxu0 0.0
    %3974 = vmatpush.msra.mxu0 0.0
    %3975 = vmatpush.msra.mxu0 0.0
    %3976 = vmatpush.msra.mxu0 0.0
    %3977 = vmatpush.msra.mxu0 0.0
    %3978 = vmatpush.msra.mxu0 0.0
    %v3979 = vand.u32 %v3714, 4294901760
    %v3980 = vsub.f32 %v3714, %v3979
    %v3981 = vand.u32 %v3980, 4294901760
    %3982 = vmatpush.msra.mxu0 %v3981
    %v3983 = vand.u32 %v3710, 4294901760
    %3984 = vmatmul.f32.gmra.mxu0 %v3983
    %v3985 = vpop.f32.mrf.mxu0
    %v3986 = vadd.f32 %v3962, %v3985
    %3987 = vdwg.mxu0
    %3988 = vmatpush.msra.mxu0 0.0
    %3989 = vmatpush.msra.mxu0 0.0
    %3990 = vmatpush.msra.mxu0 0.0
    %3991 = vmatpush.msra.mxu0 0.0
    %3992 = vmatpush.msra.mxu0 0.0
    %3993 = vmatpush.msra.mxu0 0.0
    %3994 = vmatpush.msra.mxu0 0.0
    %3995 = vmatpush.msra.mxu0 0.0
    %3996 = vmatpush.msra.mxu0 0.0
    %3997 = vmatpush.msra.mxu0 0.0
    %3998 = vmatpush.msra.mxu0 0.0
    %3999 = vmatpush.msra.mxu0 0.0
    %4000 = vmatpush.msra.mxu0 0.0
    %4001 = vmatpush.msra.mxu0 0.0
    %4002 = vmatpush.msra.mxu0 0.0
    %v4003 = vand.u32 %v3714, 4294901760
    %4004 = vmatpush.msra.mxu0 %v4003
    %v4005 = vand.u32 %v3710, 4294901760
    %4006 = vmatmul.f32.gmra.mxu0 %v4005
    %v4007 = vpop.f32.mrf.mxu0
    %v4008 = vadd.f32 %v3986, %v4007
    %4009 = vdwg.mxu0
    %4010 = vmatpush.msra.mxu0 0.0
    %4011 = vmatpush.msra.mxu0 0.0
    %4012 = vmatpush.msra.mxu0 0.0
    %4013 = vmatpush.msra.mxu0 0.0
    %4014 = vmatpush.msra.mxu0 0.0
    %4015 = vmatpush.msra.mxu0 0.0
    %4016 = vmatpush.msra.mxu0 0.0
    %4017 = vmatpush.msra.mxu0 0.0
    %4018 = vmatpush.msra.mxu0 0.0
    %4019 = vmatpush.msra.mxu0 0.0
    %4020 = vmatpush.msra.mxu0 0.0
    %4021 = vmatpush.msra.mxu0 0.0
    %4022 = vmatpush.msra.mxu0 0.0
    %4023 = vmatpush.msra.mxu0 0.0
    %4024 = vmatpush.msra.mxu0 0.0
    %v4025 = vand.u32 %v3716, 4294901760
    %4026 = vmatpush.msra.mxu0 %v4025
    %v4027 = vand.u32 %v3710, 4294901760
    %v4028 = vsub.f32 %v3710, %v4027
    %v4029 = vand.u32 %v4028, 4294901760
    %v4030 = vsub.f32 %v4028, %v4029
    %v4031 = vand.u32 %v4030, 4294901760
    %4032 = vmatmul.f32.gmra.mxu0 %v4031
    %v4033 = vpop.f32.mrf.mxu0
    %v4034 = vadd.f32 0.0, %v4033
    %4035 = vdwg.mxu0
    %4036 = vmatpush.msra.mxu0 0.0
    %4037 = vmatpush.msra.mxu0 0.0
    %4038 = vmatpush.msra.mxu0 0.0
    %4039 = vmatpush.msra.mxu0 0.0
    %4040 = vmatpush.msra.mxu0 0.0
    %4041 = vmatpush.msra.mxu0 0.0
    %4042 = vmatpush.msra.mxu0 0.0
    %4043 = vmatpush.msra.mxu0 0.0
    %4044 = vmatpush.msra.mxu0 0.0
    %4045 = vmatpush.msra.mxu0 0.0
    %4046 = vmatpush.msra.mxu0 0.0
    %4047 = vmatpush.msra.mxu0 0.0
    %4048 = vmatpush.msra.mxu0 0.0
    %4049 = vmatpush.msra.mxu0 0.0
    %4050 = vmatpush.msra.mxu0 0.0
    %v4051 = vand.u32 %v3716, 4294901760
    %v4052 = vsub.f32 %v3716, %v4051
    %v4053 = vand.u32 %v4052, 4294901760
    %v4054 = vsub.f32 %v4052, %v4053
    %v4055 = vand.u32 %v4054, 4294901760
    %4056 = vmatpush.msra.mxu0 %v4055
    %v4057 = vand.u32 %v3710, 4294901760
    %4058 = vmatmul.f32.gmra.mxu0 %v4057
    %v4059 = vpop.f32.mrf.mxu0
    %v4060 = vadd.f32 %v4034, %v4059
    %4061 = vdwg.mxu0
    %4062 = vmatpush.msra.mxu0 0.0
    %4063 = vmatpush.msra.mxu0 0.0
    %4064 = vmatpush.msra.mxu0 0.0
    %4065 = vmatpush.msra.mxu0 0.0
    %4066 = vmatpush.msra.mxu0 0.0
    %4067 = vmatpush.msra.mxu0 0.0
    %4068 = vmatpush.msra.mxu0 0.0
    %4069 = vmatpush.msra.mxu0 0.0
    %4070 = vmatpush.msra.mxu0 0.0
    %4071 = vmatpush.msra.mxu0 0.0
    %4072 = vmatpush.msra.mxu0 0.0
    %4073 = vmatpush.msra.mxu0 0.0
    %4074 = vmatpush.msra.mxu0 0.0
    %4075 = vmatpush.msra.mxu0 0.0
    %4076 = vmatpush.msra.mxu0 0.0
    %v4077 = vand.u32 %v3716, 4294901760
    %v4078 = vsub.f32 %v3716, %v4077
    %4079 = vmatpush.msra.mxu0 %v4078
    %v4080 = vand.u32 %v3710, 4294901760
    %v4081 = vsub.f32 %v3710, %v4080
    %4082 = vmatmul.f32.gmra.mxu0 %v4081
    %v4083 = vpop.f32.mrf.mxu0
    %v4084 = vadd.f32 %v4060, %v4083
    %4085 = vdwg.mxu0
    %4086 = vmatpush.msra.mxu0 0.0
    %4087 = vmatpush.msra.mxu0 0.0
    %4088 = vmatpush.msra.mxu0 0.0
    %4089 = vmatpush.msra.mxu0 0.0
    %4090 = vmatpush.msra.mxu0 0.0
    %4091 = vmatpush.msra.mxu0 0.0
    %4092 = vmatpush.msra.mxu0 0.0
    %4093 = vmatpush.msra.mxu0 0.0
    %4094 = vmatpush.msra.mxu0 0.0
    %4095 = vmatpush.msra.mxu0 0.0
    %4096 = vmatpush.msra.mxu0 0.0
    %4097 = vmatpush.msra.mxu0 0.0
    %4098 = vmatpush.msra.mxu0 0.0
    %4099 = vmatpush.msra.mxu0 0.0
    %4100 = vmatpush.msra.mxu0 0.0
    %v4101 = vand.u32 %v3716, 4294901760
    %4102 = vmatpush.msra.mxu0 %v4101
    %v4103 = vand.u32 %v3710, 4294901760
    %v4104 = vsub.f32 %v3710, %v4103
    %v4105 = vand.u32 %v4104, 4294901760
    %4106 = vmatmul.f32.gmra.mxu0 %v4105
    %v4107 = vpop.f32.mrf.mxu0
    %v4108 = vadd.f32 %v4084, %v4107
    %4109 = vdwg.mxu0
    %4110 = vmatpush.msra.mxu0 0.0
    %4111 = vmatpush.msra.mxu0 0.0
    %4112 = vmatpush.msra.mxu0 0.0
    %4113 = vmatpush.msra.mxu0 0.0
    %4114 = vmatpush.msra.mxu0 0.0
    %4115 = vmatpush.msra.mxu0 0.0
    %4116 = vmatpush.msra.mxu0 0.0
    %4117 = vmatpush.msra.mxu0 0.0
    %4118 = vmatpush.msra.mxu0 0.0
    %4119 = vmatpush.msra.mxu0 0.0
    %4120 = vmatpush.msra.mxu0 0.0
    %4121 = vmatpush.msra.mxu0 0.0
    %4122 = vmatpush.msra.mxu0 0.0
    %4123 = vmatpush.msra.mxu0 0.0
    %4124 = vmatpush.msra.mxu0 0.0
    %v4125 = vand.u32 %v3716, 4294901760
    %v4126 = vsub.f32 %v3716, %v4125
    %v4127 = vand.u32 %v4126, 4294901760
    %4128 = vmatpush.msra.mxu0 %v4127
    %v4129 = vand.u32 %v3710, 4294901760
    %4130 = vmatmul.f32.gmra.mxu0 %v4129
    %v4131 = vpop.f32.mrf.mxu0
    %v4132 = vadd.f32 %v4108, %v4131
    %4133 = vdwg.mxu0
    %4134 = vmatpush.msra.mxu0 0.0
    %4135 = vmatpush.msra.mxu0 0.0
    %4136 = vmatpush.msra.mxu0 0.0
    %4137 = vmatpush.msra.mxu0 0.0
    %4138 = vmatpush.msra.mxu0 0.0
    %4139 = vmatpush.msra.mxu0 0.0
    %4140 = vmatpush.msra.mxu0 0.0
    %4141 = vmatpush.msra.mxu0 0.0
    %4142 = vmatpush.msra.mxu0 0.0
    %4143 = vmatpush.msra.mxu0 0.0
    %4144 = vmatpush.msra.mxu0 0.0
    %4145 = vmatpush.msra.mxu0 0.0
    %4146 = vmatpush.msra.mxu0 0.0
    %4147 = vmatpush.msra.mxu0 0.0
    %4148 = vmatpush.msra.mxu0 0.0
    %v4149 = vand.u32 %v3716, 4294901760
    %4150 = vmatpush.msra.mxu0 %v4149
    %v4151 = vand.u32 %v3710, 4294901760
    %4152 = vmatmul.f32.gmra.mxu0 %v4151
    %v4153 = vpop.f32.mrf.mxu0
    %v4154 = vadd.f32 %v4132, %v4153
    %4155 = vdwg.mxu0
    %v4156 = vadd.f32 %v3694, %v3862
    %v4157 = vadd.f32 %v3695, %v4008
    %v4158 = vadd.f32 %v3696, %v4154
    %v4159 = vld [vmem:[%s2] sm:$0x1f]
    %4161 = vset.pattern.permute.xlu0 0
    %4162 = vperm.xlu0 %4161, %v4159
    %v4163 = vpop.permute.xlu0 %4162
    %v4165 = vadd.f32 %v4156, %v4163
    %v4166 = vadd.f32 %v4157, %v4163
    %v4167 = vadd.f32 %v4158, %v4163
    %v4168 = vmax.f32 %v4165, -1.0
    %v4169 = vmax.f32 %v4166, -1.0
    %v4170 = vmax.f32 %v4167, -1.0
    %v4171 = vmin.f32 %v4168, 1.0
    %v4172 = vmin.f32 %v4169, 1.0
    %v4173 = vmin.f32 %v4170, 1.0
    %v4174 = vlaneseq
    %v4175 = vand.u32 %v4174, 127
    %v4176 = vadd.s32 %v4175, 128
    %v4177 = vadd.s32 %v4175, 256
    %vm4178 = vcmp.lt.s32.totalorder %v4175, 0
    %v4179 = vsub.s32 0, %v4175
    %v4180 = vsel %vm4178, %v4179, %v4175
    %v4181 = vand.u32 %v4180, 65535
    %v4182 = vshrl.u32 %v4180, 16
    %v4184 = vmul.u32 %v4181, 52429
    %v4185 = vmul.u32 %v4181, 52428
    %v4186 = vmul.u32 %v4182, 52429
    %v4187 = vmul.u32 %v4182, 52428
    %v4188 = vshll.u32 %v4185, 16
    %v4189 = vshrl.u32 %v4185, 16
    %v4190 = vshll.u32 %v4186, 16
    %v4191 = vshrl.u32 %v4186, 16
    %vm4192 = vc.u32 %v4184, %v4188
    %v4193 = vsel %vm4192, 1, 0
    %v4194 = vadd.s32 %v4184, %v4188
    %v4195 = vadd.s32 %v4187, %v4193
    %vm4196 = vc.u32 %v4194, %v4190
    %v4197 = vsel %vm4196, 1, 0
    %v4198 = vadd.s32 %v4194, %v4190
    %v4199 = vadd.s32 %v4195, %v4197
    %v4200 = vadd.s32 %v4199, %v4189
    %v4201 = vadd.s32 %v4200, %v4191
    %v4202 = vshrl.u32 %v4201, 4
    %v4203 = vmul.u32 %v4202, 20
    %v4204 = vsub.s32 %v4180, %v4203
    %v4205 = vsub.s32 0, %v4204
    %v4206 = vsel %vm4178, %v4205, %v4204
    %vm4207 = vcmp.lt.s32.totalorder %v4176, 0
    %v4208 = vsub.s32 0, %v4176
    %v4209 = vsel %vm4207, %v4208, %v4176
    %v4210 = vand.u32 %v4209, 65535
    %v4211 = vshrl.u32 %v4209, 16
    %v4213 = vmul.u32 %v4210, 52429
    %v4214 = vmul.u32 %v4210, 52428
    %v4215 = vmul.u32 %v4211, 52429
    %v4216 = vmul.u32 %v4211, 52428
    %v4217 = vshll.u32 %v4214, 16
    %v4218 = vshrl.u32 %v4214, 16
    %v4219 = vshll.u32 %v4215, 16
    %v4220 = vshrl.u32 %v4215, 16
    %vm4221 = vc.u32 %v4213, %v4217
    %v4222 = vsel %vm4221, 1, 0
    %v4223 = vadd.s32 %v4213, %v4217
    %v4224 = vadd.s32 %v4216, %v4222
    %vm4225 = vc.u32 %v4223, %v4219
    %v4226 = vsel %vm4225, 1, 0
    %v4227 = vadd.s32 %v4223, %v4219
    %v4228 = vadd.s32 %v4224, %v4226
    %v4229 = vadd.s32 %v4228, %v4218
    %v4230 = vadd.s32 %v4229, %v4220
    %v4231 = vshrl.u32 %v4230, 4
    %v4232 = vmul.u32 %v4231, 20
    %v4233 = vsub.s32 %v4209, %v4232
    %v4234 = vsub.s32 0, %v4233
    %v4235 = vsel %vm4207, %v4234, %v4233
    %vm4236 = vcmp.lt.s32.totalorder %v4177, 0
    %v4237 = vsub.s32 0, %v4177
    %v4238 = vsel %vm4236, %v4237, %v4177
    %v4239 = vand.u32 %v4238, 65535
    %v4240 = vshrl.u32 %v4238, 16
    %v4242 = vmul.u32 %v4239, 52429
    %v4243 = vmul.u32 %v4239, 52428
    %v4244 = vmul.u32 %v4240, 52429
    %v4245 = vmul.u32 %v4240, 52428
    %v4246 = vshll.u32 %v4243, 16
    %v4247 = vshrl.u32 %v4243, 16
    %v4248 = vshll.u32 %v4244, 16
    %v4249 = vshrl.u32 %v4244, 16
    %vm4250 = vc.u32 %v4242, %v4246
    %v4251 = vsel %vm4250, 1, 0
    %v4252 = vadd.s32 %v4242, %v4246
    %v4253 = vadd.s32 %v4245, %v4251
    %vm4254 = vc.u32 %v4252, %v4248
    %v4255 = vsel %vm4254, 1, 0
    %v4256 = vadd.s32 %v4252, %v4248
    %v4257 = vadd.s32 %v4253, %v4255
    %v4258 = vadd.s32 %v4257, %v4247
    %v4259 = vadd.s32 %v4258, %v4249
    %v4260 = vshrl.u32 %v4259, 4
    %v4261 = vmul.u32 %v4260, 20
    %v4262 = vsub.s32 %v4238, %v4261
    %v4263 = vsub.s32 0, %v4262
    %v4264 = vsel %vm4236, %v4263, %v4262
    %vm4265 = vcmp.ne.s32.totalorder %v4206, 0
    %vm4266 = vcmp.ne.s32.totalorder %v4235, 0
    %vm4267 = vcmp.ne.s32.totalorder %v4264, 0
    %vm4268 = vcmp.lt.s32.totalorder %v4206, 0
    %vm4269 = vcmp.lt.s32.totalorder %v4235, 0
    %vm4270 = vcmp.lt.s32.totalorder %v4264, 0
    %vm4271 = vmand %vm4268, %vm4265
    %vm4272 = vmand %vm4269, %vm4266
    %vm4273 = vmand %vm4270, %vm4267
    %v4274 = vadd.s32 %v4206, 20
    %v4275 = vadd.s32 %v4235, 20
    %v4276 = vadd.s32 %v4264, 20
    %v4277 = vsel %vm4271, %v4274, %v4206
    %v4278 = vsel %vm4272, %v4275, %v4235
    %v4279 = vsel %vm4273, %v4276, %v4264
    %vm4280 = vcmp.lt.s32.totalorder %v4277, 18
    %vm4281 = vcmp.lt.s32.totalorder %v4278, 18
    %vm4282 = vcmp.lt.s32.totalorder %v4279, 18
    %v4283 = vsel %vm4280, %v4171, 0.0
    %v4284 = vsel %vm4281, %v4172, 0.0
    %v4285 = vsel %vm4282, %v4173, 0.0
    %v4286 = vsel %vm44, %v4283, 0.0
    %v4287 = vsel %vm44, %v4284, 0.0
    %v4288 = vadd.f32 %v4286, %v4287
    %vm4289 = vcmask 847872
    %v4290 = vsel %vm4289, %v4285, 0.0
    %v4291 = vadd.f32 %v4288, %v4290
    %4292 = vadd.xlane.f32.xlu0 %v4291
    %v4293 = vpop.xlane.xlu0 %4292
    %v4294 = vmul.f32 %v4293, 0.0030864198
    %v4295 = vsub.f32 %v4171, %v4294
    %v4296 = vsub.f32 %v4172, %v4294
    %v4297 = vsub.f32 %v4173, %v4294
    %v4298 = vsel %vm4280, %v4295, 0.0
    %v4299 = vsel %vm4281, %v4296, 0.0
    %v4300 = vsel %vm4282, %v4297, 0.0
    %v4301 = vmul.f32 %v4298, %v4298
    %v4302 = vmul.f32 %v4299, %v4299
    %v4303 = vmul.f32 %v4300, %v4300
    %v4304 = vsel %vm44, %v4301, 0.0
    %v4305 = vsel %vm44, %v4302, 0.0
    %v4306 = vadd.f32 %v4304, %v4305
    %v4307 = vsel %vm4289, %v4303, 0.0
    %v4308 = vadd.f32 %v4306, %v4307
    %4309 = vadd.xlane.f32.xlu0 %v4308
    %v4310 = vpop.xlane.xlu0 %4309
    %v4311 = vmul.f32 %v4310, 0.0030864198
    %v4312 = vadd.f32 %v4311, 1e-05
    %v4313 = vrsqrt.pop %v4312
    %v4314 = vmul.f32 %v4313, %v4312
    %v4315 = vmul.f32 %v4314, %v4313
    %v4316 = vmul.f32 0.5, %v4315
    %v4317 = vsub.f32 1.5, %v4316
    %v4318 = vmul.f32 %v4313, %v4317
    %vm4319 = vweird.f32 %v4312
    %vm4320 = vweird.f32 %v4313
    %vm4321 = vmor %vm4319, %vm4320
    %v4322 = vsel %vm4321, %v4313, %v4318
    %v4323 = vmul.f32 %v4159, %v4322
    %v4324 = vmul.f32 %v4294, %v4323
    %4326 = vrot.lane.b32.xlu0 %v4324, 1
    %v4327 = vpop.permute.xlu0 %4326
    %v4329 = vsub.f32 %v4159, %v4327
    %4331 = vset.pattern.permute.xlu0 1
    %4332 = vperm.xlu0 %4331, %v4323
    %v4333 = vpop.permute.xlu0 %4332
    %v4335 = vmul.f32 %v4171, %v4333
    %v4336 = vmul.f32 %v4172, %v4333
    %v4337 = vmul.f32 %v4173, %v4333
    %4339 = vset.pattern.permute.xlu0 2
    %4340 = vperm.xlu0 %4339, %v4329
    %v4341 = vpop.permute.xlu0 %4340
    %v4343 = vadd.f32 %v4335, %v4341
    %v4344 = vadd.f32 %v4336, %v4341
    %v4345 = vadd.f32 %v4337, %v4341
    %v4346 = vmax.f32 %v4343, 0.0
    %v4347 = vmax.f32 %v4344, 0.0
    %v4348 = vmax.f32 %v4345, 0.0
    %4349 = vst [vmem:[#allocation2] sm:$0x1f] %v4346
    %4350 = vst [vmem:[#allocation2 + $0x8] sm:$0x1f] %v4347
    %4351 = vst.msk [vmem:[#allocation2 + $0x10] sm:$0x1f] %vm4289, %v4348
    // Predicated region
    $region14: #{tpu_custom_call.1} parent=1 // pred_check
      _
    $region15: #{tpu_custom_call.1} parent=1 // pred_check_branch
      %4353 = sbr.rel (0) target = $region17
    $region16: #{tpu_custom_call.1} parent=1 // pred_region
      %4355 = vsyncadd [#allocation3], 0
      %s4357 = sshll.u32 [#allocation2], 4
      %s4358 = int_to_ptr.vmem [resolvable:$true] %s4357
      %s4359 = sshll.u32 %s3, 4
      %s4360 = int_to_ptr.hbm [resolvable:$true] %s4359
      %4362 = dma.vmem_to_hbm [thread:$0]  %s4358, 384, %s4360, [#allocation3]
    $region17: #{tpu_custom_call.1} parent=1 // pred_fallthru
      _
    // Predicated region
    $region18: #{tpu_custom_call.1} parent=1 // pred_check
      _
    $region19: #{tpu_custom_call.1} parent=1 // pred_check_branch
      %4364 = sbr.rel (0) target = $region21
    $region20: #{tpu_custom_call.1} parent=1 // pred_region
      %4366 = dma.done [#allocation3], 384
    $region21: #{tpu_custom_call.1} parent=1 // pred_fallthru
      _
    %4367 = vsyncpa [#allocation3], 1

</llo_original>
